<compile_context>
chip_gen: v7x
topology: tpu7x:2x2x1
jax: 0.10.0
libtpu: 0.0.40
codegen_flags: <defaults>
</compile_context>

<pallas_src>
import functools

import jax
import jax.numpy as jnp
import numpy as np
from jax import lax
from jax.experimental import pallas as pl
from jax.experimental.pallas import tpu as pltpu

NUM_GROUPS = 32
EPS = 1e-6
LANES = 128


def _vmem_budget_bytes():
  """Per-generation scoped-VMEM budget (v5e/v6e: ~96 MiB, v7x: ~48 MiB)."""
  cap = 64 * 1024 * 1024  # conservative default if the query is unavailable
  try:
    cap = int(pltpu.get_tpu_info().vmem_capacity_bytes)
  except Exception:
    pass
  return min((cap * 3) // 4, 96 * 1024 * 1024)


def _pick_tile(n, preferred):
  for t in preferred:
    if t <= n and n % t == 0:
      return t
  return n


def _lanes_bcast(x, width):
  """Broadcast an all-lanes-equal (rows, L) tile to (rows, width)."""
  rows, l = x.shape
  if width == l:
    return x
  if width % l == 0:
    return jnp.tile(x, (1, width // l))
  return jnp.broadcast_to(x[:, :1], (rows, width))


# ---------------------------------------------------------------------------
# Pass 1: GroupNorm column statistics (sum, sum of squares) per batch.
# ---------------------------------------------------------------------------
def _gn_stats_kernel(x_ref, sum_ref, sq_ref):
  @pl.when(pl.program_id(1) == 0)
  def _():
    sum_ref[...] = jnp.zeros_like(sum_ref)
    sq_ref[...] = jnp.zeros_like(sq_ref)

  xb = x_ref[...]                                        # (tn, C) f32
  sum_ref[...] += jnp.sum(xb, axis=0, keepdims=True)     # (1, C)
  sq_ref[...] += jnp.sum(xb * xb, axis=0, keepdims=True)


# ---------------------------------------------------------------------------
# Pass 2: GroupNorm affine + fused QKV projection (bf16 MXU, f32 accum).
# ---------------------------------------------------------------------------
def _qkv_kernel(x_ref, a_ref, b_ref, wqkv_ref, bqkv_ref, q_ref, k_ref, v_ref):
  C = q_ref.shape[-1]
  hn = x_ref[...] * a_ref[...] + b_ref[...]              # (tn, C) f32
  qkv = jnp.dot(hn.astype(jnp.bfloat16), wqkv_ref[...],
                preferred_element_type=jnp.float32) + bqkv_ref[...]
  q_ref[...] = qkv[:, :C].astype(jnp.bfloat16)           # already * C^-0.5
  k_ref[...] = qkv[:, C:2 * C].astype(jnp.bfloat16)
  v_ref[...] = qkv[:, 2 * C:].astype(jnp.bfloat16)


# ---------------------------------------------------------------------------
# Pass 3: flash attention (online softmax) + proj_out + residual.
# ---------------------------------------------------------------------------
def _flash_attn_kernel(q_ref, k_ref, v_ref, x_ref, wp_ref, bp_ref, o_ref,
                       m_sc, l_sc, acc_sc, *, tk, kv_resident):
  ki = pl.program_id(2)
  C = acc_sc.shape[-1]

  @pl.when(ki == 0)
  def _():
    m_sc[...] = jnp.full_like(m_sc, -jnp.inf)
    l_sc[...] = jnp.zeros_like(l_sc)
    acc_sc[...] = jnp.zeros_like(acc_sc)

  if kv_resident:
    # K/V blocks hold the whole (N, C) sequence for this batch; slice the
    # current kv tile out of the resident buffer (no HBM re-streaming).
    off = pl.multiple_of(ki * tk, tk)
    kb = k_ref[pl.ds(off, tk), :]                        # (tk, C) bf16
    vb = v_ref[pl.ds(off, tk), :]
  else:
    kb = k_ref[...]                                      # streamed (tk, C)
    vb = v_ref[...]

  # (tq, C) x (tk, C) contracted on channels -> (tq, tk); no explicit k.T.
  s = lax.dot_general(q_ref[...], kb,
                      dimension_numbers=(((1,), (1,)), ((), ())),
                      preferred_element_type=jnp.float32)

  m_prev = m_sc[...]                                     # (tq, 128), lanes equal
  l_prev = l_sc[...]
  m_cur = jnp.max(s, axis=-1, keepdims=True)             # (tq, 1)
  m_next = jnp.maximum(m_prev, m_cur)                    # (tq, 128)
  alpha = jnp.exp(m_prev - m_next)                       # (tq, 128)
  p = jnp.exp(s - _lanes_bcast(m_next, s.shape[-1]))     # (tq, tk)
  l_sc[...] = alpha * l_prev + jnp.sum(p, axis=-1, keepdims=True)
  acc_sc[...] = _lanes_bcast(alpha, C) * acc_sc[...] + jnp.dot(
      p.astype(jnp.bfloat16), vb, preferred_element_type=jnp.float32)
  m_sc[...] = m_next

  @pl.when(ki == pl.num_programs(2) - 1)
  def _():
    inv_l = pl.reciprocal(l_sc[...], approx=True)
    ho = acc_sc[...] * _lanes_bcast(inv_l, C)
    proj = jnp.dot(ho.astype(jnp.bfloat16), wp_ref[...],
                   preferred_element_type=jnp.float32) + bp_ref[...]
    o_ref[...] = x_ref[...] + proj


# ---------------------------------------------------------------------------
# Weight packing (do ONCE, outside the per-call trace).
# ---------------------------------------------------------------------------
def pack_attn_params(params):
  C = params["wq"].shape[0]
  scale = float(C) ** (-0.5)
  wqkv = jnp.concatenate(
      [params["wq"].T * scale, params["wk"].T, params["wv"].T],
      axis=1).astype(jnp.bfloat16)                       # (C, 3C)
  bqkv = jnp.concatenate(
      [params["bq"] * scale, params["bk"], params["bv"]],
      axis=0).reshape(1, 3 * C).astype(jnp.float32)
  return {
      "gamma": params["gamma"].astype(jnp.float32),
      "beta": params["beta"].astype(jnp.float32),
      "wqkv": wqkv,
      "bqkv": bqkv,
      "wpT": params["wp"].T.astype(jnp.bfloat16),        # (C, C)
      "bp": params["bp"].reshape(1, C).astype(jnp.float32),
  }


# ---------------------------------------------------------------------------
# Wrappers
# ---------------------------------------------------------------------------
def attn_block_pallas_nhwc(x_nhwc, packed, *, tq=None, tk=None, tn=None):
  """x_nhwc: (B, H, W, C) float32, packed = pack_attn_params(...)."""
  B, H, W, C = x_nhwc.shape
  N = H * W
  G = NUM_GROUPS
  assert C % G == 0
  vmem_limit = _vmem_budget_bytes()

  # Mem-bound passes (1-2) want big tiles; attention tiles tuned for the MXU.
  tn = tn or _pick_tile(N, (2048, 1024, 512, 256, 128, 64, 32, 16, 8))
  tq = tq or _pick_tile(N, (256, 128, 512, 64, 32, 16, 8))
  tk = tk or _pick_tile(N, (512, 256, 128, 64, 32, 16, 8))
  assert N % tn == 0 and N % tq == 0 and N % tk == 0

  x = x_nhwc.reshape(B, N, C).astype(jnp.float32)

  # ---- Pass 1: GroupNorm statistics (tiled reduction over N) --------------
  # TODO(synk): fuse passes 1+2 into one pallas_call (per-batch resident x)
  # so x is read from HBM once instead of twice for stats + QKV.
  sums, sqs = pl.pallas_call(
      _gn_stats_kernel,
      out_shape=(jax.ShapeDtypeStruct((B, 1, C), jnp.float32),
                 jax.ShapeDtypeStruct((B, 1, C), jnp.float32)),
      grid=(B, N // tn),
      in_specs=[pl.BlockSpec((None, tn, C), lambda b, nt: (b, nt, 0))],
      out_specs=(pl.BlockSpec((None, 1, C), lambda b, nt: (b, 0, 0)),
                 pl.BlockSpec((None, 1, C), lambda b, nt: (b, 0, 0))),
      compiler_params=pltpu.CompilerParams(
          dimension_semantics=("parallel", "arbitrary"),
          vmem_limit_bytes=vmem_limit),
  )(x)

  # Tiny (B, C)-sized finish: group mean / inv_std -> per-channel affine.
  # (E[x^2]-mean^2 in f32 is adequate for VAE activations at 2e-2 tolerance.)
  count = float(N * (C // G))
  gs = sums.reshape(B, G, C // G).sum(-1)
  gss = sqs.reshape(B, G, C // G).sum(-1)
  mean = gs / count
  var = gss / count - mean * mean
  inv = lax.rsqrt(var + EPS)
  mean_c = jnp.repeat(mean, C // G, axis=-1)             # (B, C)
  inv_c = jnp.repeat(inv, C // G, axis=-1)               # (B, C)
  gamma = packed["gamma"][None, :]
  beta = packed["beta"][None, :]
  gn_a = (inv_c * gamma).reshape(B, 1, C).astype(jnp.float32)
  gn_b = (beta - mean_c * inv_c * gamma).reshape(B, 1, C).astype(jnp.float32)

  # ---- Pass 2: normalize + fused QKV projection ---------------------------
  # TODO(synk): pipeline_mode=pl.Buffered(1) on the constant wqkv/wpT blocks
  # would free a few MiB of VMEM (index never changes, double-buffer wasted).
  const2 = lambda b, nt: (0, 0)
  qkv_spec = pl.BlockSpec((None, tn, C), lambda b, nt: (b, nt, 0))
  q, k, v = pl.pallas_call(
      _qkv_kernel,
      out_shape=tuple(
          jax.ShapeDtypeStruct((B, N, C), jnp.bfloat16) for _ in range(3)),
      grid=(B, N // tn),
      in_specs=[
          pl.BlockSpec((None, tn, C), lambda b, nt: (b, nt, 0)),  # x
          pl.BlockSpec((None, 1, C), lambda b, nt: (b, 0, 0)),    # gn_a
          pl.BlockSpec((None, 1, C), lambda b, nt: (b, 0, 0)),    # gn_b
          pl.BlockSpec((C, 3 * C), const2),                       # wqkv
          pl.BlockSpec((1, 3 * C), const2),                       # bqkv
      ],
      out_specs=(qkv_spec, qkv_spec, qkv_spec),
      compiler_params=pltpu.CompilerParams(
          dimension_semantics=("parallel", "parallel"),
          vmem_limit_bytes=vmem_limit),
  )(x, gn_a, gn_b, packed["wqkv"], packed["bqkv"])

  # ---- Pass 3: flash attention + proj_out + residual ----------------------
  # Keep K/V resident in VMEM per batch when they fit the per-generation
  # budget (counted with default double-buffering); otherwise stream them.
  kv_resident_bytes = 2 * 2 * N * C * 2                  # k+v, 2 bufs, bf16
  pass3_fixed = (2 * tq * C * 2                          # q (bf16, 2 bufs)
                 + 2 * tq * C * 4 * 2                    # x + out (f32, 2 bufs)
                 + 2 * (C * C * 2 + C * 4)               # wpT + bp (2 bufs)
                 + tq * C * 4 + 2 * tq * LANES * 4)      # acc + m/l scratch
  kv_resident = kv_resident_bytes + pass3_fixed <= int(0.8 * vmem_limit)

  if kv_resident:
    k_spec = pl.BlockSpec((None, N, C), lambda b, qi, ki: (b, 0, 0))
    v_spec = pl.BlockSpec((None, N, C), lambda b, qi, ki: (b, 0, 0))
  else:
    k_spec = pl.BlockSpec((None, tk, C), lambda b, qi, ki: (b, ki, 0))
    v_spec = pl.BlockSpec((None, tk, C), lambda b, qi, ki: (b, ki, 0))

  const3 = lambda b, qi, ki: (0, 0)
  out = pl.pallas_call(
      functools.partial(_flash_attn_kernel, tk=tk, kv_resident=kv_resident),
      out_shape=jax.ShapeDtypeStruct((B, N, C), jnp.float32),
      grid=(B, N // tq, N // tk),
      in_specs=[
          pl.BlockSpec((None, tq, C), lambda b, qi, ki: (b, qi, 0)),  # q
          k_spec,                                                     # k
          v_spec,                                                     # v
          pl.BlockSpec((None, tq, C), lambda b, qi, ki: (b, qi, 0)),  # x resid
          pl.BlockSpec((C, C), const3),                               # wpT
          pl.BlockSpec((1, C), const3),                               # bp
      ],
      out_specs=pl.BlockSpec((None, tq, C), lambda b, qi, ki: (b, qi, 0)),
      scratch_shapes=[
          pltpu.VMEM((tq, LANES), jnp.float32),   # running max (128 lanes)
          pltpu.VMEM((tq, LANES), jnp.float32),   # running denom (128 lanes)
          pltpu.VMEM((tq, C), jnp.float32),       # output accumulator
      ],
      input_output_aliases={3: 0},                # out = x + proj, reuse x buf
      compiler_params=pltpu.CompilerParams(
          dimension_semantics=("parallel", "parallel", "arbitrary"),
          vmem_limit_bytes=vmem_limit),
  )(q, k, v, x, packed["wpT"], packed["bp"])

  return out.reshape(B, H, W, C)


def attn_block_pallas(x_nchw, packed, **kw):
  """PyTorch-compatible NCHW wrapper (prefer the NHWC entry point: each
  transpose is a full HBM round trip of the activation)."""
  x_nhwc = jnp.transpose(x_nchw, (0, 2, 3, 1))
  out = attn_block_pallas_nhwc(x_nhwc, packed, **kw)
  return jnp.transpose(out, (0, 3, 1, 2))


# ---------------------------------------------------------------------------
# Pure-JAX reference reproducing the PyTorch forward (NCHW).
# ---------------------------------------------------------------------------
def attn_block_reference(x, params):
  B, C, H, W = x.shape
  G = NUM_GROUPS
  xg = x.reshape(B, G, C // G, H, W)
  mean = xg.mean(axis=(2, 3, 4), keepdims=True)
  var = xg.var(axis=(2, 3, 4), keepdims=True)
  hn = (xg - mean) / jnp.sqrt(var + EPS)
  hn = hn.reshape(B, C, H, W)
  hn = hn * params["gamma"][None, :, None, None] + params["beta"][None, :, None, None]

  def conv1x1(h, w, b):
    return jnp.einsum("bchw,oc->bohw", h, w) + b[None, :, None, None]

  q = conv1x1(hn, params["wq"], params["bq"])
  k = conv1x1(hn, params["wk"], params["bk"])
  v = conv1x1(hn, params["wv"], params["bv"])

  q = q.reshape(B, C, H * W).transpose(0, 2, 1)          # (B, N, C)
  k = k.reshape(B, C, H * W)                             # (B, C, N)
  w_ = jnp.einsum("bic,bcj->bij", q, k) * (float(C) ** (-0.5))
  w_ = jax.nn.softmax(w_, axis=2)
  v = v.reshape(B, C, H * W)                             # (B, C, N)
  h_ = jnp.einsum("bcj,bij->bci", v, w_)                 # (B, C, N)
  h_ = h_.reshape(B, C, H, W)
  h_ = conv1x1(h_, params["wp"], params["bp"])
  return x + h_


if __name__ == "__main__":
  # Small-but-representative: C multiple of 128 keeps channels lane-aligned;
  # N = 256 exercises the tiling and resident-K/V path.
  B, C, H, W = 2, 128, 16, 16

  key = jax.random.PRNGKey(0)
  keys = jax.random.split(key, 11)
  wscale = 0.05
  params = {
      "gamma": 1.0 + 0.1 * jax.random.normal(keys[0], (C,), jnp.float32),
      "beta": 0.1 * jax.random.normal(keys[1], (C,), jnp.float32),
      "wq": wscale * jax.random.normal(keys[2], (C, C), jnp.float32),
      "bq": 0.02 * jax.random.normal(keys[3], (C,), jnp.float32),
      "wk": wscale * jax.random.normal(keys[4], (C, C), jnp.float32),
      "bk": 0.02 * jax.random.normal(keys[5], (C,), jnp.float32),
      "wv": wscale * jax.random.normal(keys[6], (C, C), jnp.float32),
      "bv": 0.02 * jax.random.normal(keys[7], (C,), jnp.float32),
      "wp": wscale * jax.random.normal(keys[8], (C, C), jnp.float32),
      "bp": 0.02 * jax.random.normal(keys[9], (C,), jnp.float32),
  }
  x = jax.random.normal(keys[10], (B, C, H, W), jnp.float32)

  packed = pack_attn_params(params)        # packed once, outside the trace
  attn_fn = jax.jit(attn_block_pallas)
  out = jax.block_until_ready(attn_fn(x, packed))

  ref = jax.block_until_ready(attn_block_reference(x, params))
  np.testing.assert_allclose(np.asarray(out), np.asarray(ref),
                             rtol=2e-2, atol=2e-2)

  print("KERNEL_OK")
</pallas_src>

<mosaic_0001>
module attributes {stable_mosaic.version = 11 : i64} {
  func.func @_gn_stats_kernel(%arg0: i32, %arg1: i32, %arg2: memref<1x256x128xf32, #tpu.memory_space<vmem>>, %arg3: memref<1x1x128xf32, #tpu.memory_space<vmem>>, %arg4: memref<1x1x128xf32, #tpu.memory_space<vmem>>) attributes {dimension_semantics = [#tpu.dimension_semantics<parallel>, #tpu.dimension_semantics<arbitrary>], iteration_bounds = array<i64: 2, 1>, scalar_prefetch = 0 : i64, scratch_operands = 0 : i64, tpu.core_type = #tpu.core_type<tc>, window_params = [{transform_indices = @transform_0, window_bounds = array<i64: 1, 256, 128>}, {transform_indices = @transform_1, window_bounds = array<i64: 1, 1, 128>}, {transform_indices = @transform_2, window_bounds = array<i64: 1, 1, 128>}]} {
    %c0_i32 = arith.constant 0 : i32
    %0 = arith.cmpi eq, %arg1, %c0_i32 : i32
    %1 = arith.extui %0 : i1 to i32
    %c0_i32_0 = arith.constant 0 : i32
    %2 = arith.cmpi ne, %1, %c0_i32_0 : i32
    scf.if %2 {
      %cst_16 = arith.constant 0.000000e+00 : f32
      %22 = vector.broadcast %cst_16 : f32 to vector<1x128xf32>
      %c0_17 = arith.constant 0 : index
      %c0_18 = arith.constant 0 : index
      %c0_19 = arith.constant 0 : index
      %23 = vector.load %arg3[%c0_17, %c0_18, %c0_19] : memref<1x1x128xf32, #tpu.memory_space<vmem>>, vector<1x1x128xf32>
      %24 = vector.shape_cast %23 : vector<1x1x128xf32> to vector<1x128xf32>
      %25 = vector.shape_cast %22 : vector<1x128xf32> to vector<1x1x128xf32>
      tpu.vector_store %arg3[%c0_17, %c0_18, %c0_19], %25 {strides = array<i32>} : memref<1x1x128xf32, #tpu.memory_space<vmem>>, vector<1x1x128xf32>,
      %cst_20 = arith.constant 0.000000e+00 : f32
      %26 = vector.broadcast %cst_20 : f32 to vector<1x128xf32>
      %c0_21 = arith.constant 0 : index
      %c0_22 = arith.constant 0 : index
      %c0_23 = arith.constant 0 : index
      %27 = vector.load %arg4[%c0_21, %c0_22, %c0_23] : memref<1x1x128xf32, #tpu.memory_space<vmem>>, vector<1x1x128xf32>
      %28 = vector.shape_cast %27 : vector<1x1x128xf32> to vector<1x128xf32>
      %29 = vector.shape_cast %26 : vector<1x128xf32> to vector<1x1x128xf32>
      tpu.vector_store %arg4[%c0_21, %c0_22, %c0_23], %29 {strides = array<i32>} : memref<1x1x128xf32, #tpu.memory_space<vmem>>, vector<1x1x128xf32>,
    } else {
    }
    %c0 = arith.constant 0 : index
    %c0_1 = arith.constant 0 : index
    %c0_2 = arith.constant 0 : index
    %3 = vector.load %arg2[%c0, %c0_1, %c0_2] : memref<1x256x128xf32, #tpu.memory_space<vmem>>, vector<1x256x128xf32>
    %4 = vector.shape_cast %3 : vector<1x256x128xf32> to vector<256x128xf32>
    %c0_3 = arith.constant 0 : index
    %c0_4 = arith.constant 0 : index
    %c0_5 = arith.constant 0 : index
    %5 = vector.load %arg3[%c0_3, %c0_4, %c0_5] : memref<1x1x128xf32, #tpu.memory_space<vmem>>, vector<1x1x128xf32>
    %6 = vector.shape_cast %5 : vector<1x1x128xf32> to vector<1x128xf32>
    %cst = arith.constant dense<0.000000e+00> : vector<128xf32>
    %7 = vector.multi_reduction <add>, %4, %cst [0] : vector<256x128xf32> to vector<128xf32>
    %8 = vector.shape_cast %7 : vector<128xf32> to vector<1x128xf32>
    %9 = arith.addf %6, %8 : vector<1x128xf32>
    %c0_6 = arith.constant 0 : index
    %c0_7 = arith.constant 0 : index
    %c0_8 = arith.constant 0 : index
    %10 = vector.load %arg3[%c0_6, %c0_7, %c0_8] : memref<1x1x128xf32, #tpu.memory_space<vmem>>, vector<1x1x128xf32>
    %11 = vector.shape_cast %10 : vector<1x1x128xf32> to vector<1x128xf32>
    %12 = vector.shape_cast %9 : vector<1x128xf32> to vector<1x1x128xf32>
    tpu.vector_store %arg3[%c0_6, %c0_7, %c0_8], %12 {strides = array<i32>} : memref<1x1x128xf32, #tpu.memory_space<vmem>>, vector<1x1x128xf32>,
    %c0_9 = arith.constant 0 : index
    %c0_10 = arith.constant 0 : index
    %c0_11 = arith.constant 0 : index
    %13 = vector.load %arg4[%c0_9, %c0_10, %c0_11] : memref<1x1x128xf32, #tpu.memory_space<vmem>>, vector<1x1x128xf32>
    %14 = vector.shape_cast %13 : vector<1x1x128xf32> to vector<1x128xf32>
    %15 = arith.mulf %4, %4 : vector<256x128xf32>
    %cst_12 = arith.constant dense<0.000000e+00> : vector<128xf32>
    %16 = vector.multi_reduction <add>, %15, %cst_12 [0] : vector<256x128xf32> to vector<128xf32>
    %17 = vector.shape_cast %16 : vector<128xf32> to vector<1x128xf32>
    %18 = arith.addf %14, %17 : vector<1x128xf32>
    %c0_13 = arith.constant 0 : index
    %c0_14 = arith.constant 0 : index
    %c0_15 = arith.constant 0 : index
    %19 = vector.load %arg4[%c0_13, %c0_14, %c0_15] : memref<1x1x128xf32, #tpu.memory_space<vmem>>, vector<1x1x128xf32>
    %20 = vector.shape_cast %19 : vector<1x1x128xf32> to vector<1x128xf32>
    %21 = vector.shape_cast %18 : vector<1x128xf32> to vector<1x1x128xf32>
    tpu.vector_store %arg4[%c0_13, %c0_14, %c0_15], %21 {strides = array<i32>} : memref<1x1x128xf32, #tpu.memory_space<vmem>>, vector<1x1x128xf32>,
    return
  }
  func.func @transform_0(%arg0: i32, %arg1: i32) -> (i32, i32, i32) {
    %c0_i32 = arith.constant 0 : i32
    %c0_i32_0 = arith.constant 0 : i32
    return %arg0, %arg1, %c0_i32 : i32, i32, i32
  }
  func.func @transform_1(%arg0: i32, %arg1: i32) -> (i32, i32, i32) {
    %c0_i32 = arith.constant 0 : i32
    %c0_i32_0 = arith.constant 0 : i32
    %c0_i32_1 = arith.constant 0 : i32
    return %arg0, %c0_i32, %c0_i32_0 : i32, i32, i32
  }
  func.func @transform_2(%arg0: i32, %arg1: i32) -> (i32, i32, i32) {
    %c0_i32 = arith.constant 0 : i32
    %c0_i32_0 = arith.constant 0 : i32
    %c0_i32_1 = arith.constant 0 : i32
    return %arg0, %c0_i32, %c0_i32_0 : i32, i32, i32
  }
}

module attributes {stable_mosaic.version = 11 : i64} {
  func.func @_qkv_kernel(%arg0: i32, %arg1: i32, %arg2: memref<1x256x128xf32, #tpu.memory_space<vmem>>, %arg3: memref<1x1x128xf32, #tpu.memory_space<vmem>>, %arg4: memref<1x1x128xf32, #tpu.memory_space<vmem>>, %arg5: memref<128x384xbf16, #tpu.memory_space<vmem>>, %arg6: memref<1x384xf32, #tpu.memory_space<vmem>>, %arg7: memref<1x256x128xbf16, #tpu.memory_space<vmem>>, %arg8: memref<1x256x128xbf16, #tpu.memory_space<vmem>>, %arg9: memref<1x256x128xbf16, #tpu.memory_space<vmem>>) attributes {dimension_semantics = [#tpu.dimension_semantics<parallel>, #tpu.dimension_semantics<parallel>], iteration_bounds = array<i64: 2, 1>, scalar_prefetch = 0 : i64, scratch_operands = 0 : i64, tpu.core_type = #tpu.core_type<tc>, window_params = [{transform_indices = @transform_0, window_bounds = array<i64: 1, 256, 128>}, {transform_indices = @transform_1, window_bounds = array<i64: 1, 1, 128>}, {transform_indices = @transform_2, window_bounds = array<i64: 1, 1, 128>}, {pipeline_mode = #tpu.pipeline_mode<synchronous>, transform_indices = @transform_3, window_bounds = array<i64: 128, 384>}, {pipeline_mode = #tpu.pipeline_mode<synchronous>, transform_indices = @transform_4, window_bounds = array<i64: 1, 384>}, {transform_indices = @transform_5, window_bounds = array<i64: 1, 256, 128>}, {transform_indices = @transform_6, window_bounds = array<i64: 1, 256, 128>}, {transform_indices = @transform_7, window_bounds = array<i64: 1, 256, 128>}]} {
    %c0 = arith.constant 0 : index
    %c0_0 = arith.constant 0 : index
    %c0_1 = arith.constant 0 : index
    %0 = vector.load %arg2[%c0, %c0_0, %c0_1] : memref<1x256x128xf32, #tpu.memory_space<vmem>>, vector<1x256x128xf32>
    %1 = vector.shape_cast %0 : vector<1x256x128xf32> to vector<256x128xf32>
    %c0_2 = arith.constant 0 : index
    %c0_3 = arith.constant 0 : index
    %c0_4 = arith.constant 0 : index
    %2 = vector.load %arg3[%c0_2, %c0_3, %c0_4] : memref<1x1x128xf32, #tpu.memory_space<vmem>>, vector<1x1x128xf32>
    %3 = vector.shape_cast %2 : vector<1x1x128xf32> to vector<1x128xf32>
    %4 = vector.broadcast %3 : vector<1x128xf32> to vector<256x128xf32>
    %5 = arith.mulf %1, %4 : vector<256x128xf32>
    %c0_5 = arith.constant 0 : index
    %c0_6 = arith.constant 0 : index
    %c0_7 = arith.constant 0 : index
    %6 = vector.load %arg4[%c0_5, %c0_6, %c0_7] : memref<1x1x128xf32, #tpu.memory_space<vmem>>, vector<1x1x128xf32>
    %7 = vector.shape_cast %6 : vector<1x1x128xf32> to vector<1x128xf32>
    %8 = vector.broadcast %7 : vector<1x128xf32> to vector<256x128xf32>
    %9 = arith.addf %5, %8 : vector<256x128xf32>
    %10 = arith.truncf %9 : vector<256x128xf32> to vector<256x128xbf16>
    %c0_8 = arith.constant 0 : index
    %c0_9 = arith.constant 0 : index
    %11 = vector.load %arg5[%c0_8, %c0_9] : memref<128x384xbf16, #tpu.memory_space<vmem>>, vector<128x384xbf16>
    %cst = arith.constant dense<0.000000e+00> : vector<256x384xf32>
    %12 = tpu.matmul %10, %11, %cst {dimension_numbers = #tpu.dot_dimension_numbers<[1], [0], [0], [1], [0, 0, 1, 1], [], []>} : vector<256x128xbf16>, vector<128x384xbf16>, vector<256x384xf32> -> vector<256x384xf32>
    %c0_10 = arith.constant 0 : index
    %c0_11 = arith.constant 0 : index
    %13 = vector.load %arg6[%c0_10, %c0_11] : memref<1x384xf32, #tpu.memory_space<vmem>>, vector<1x384xf32>
    %14 = vector.broadcast %13 : vector<1x384xf32> to vector<256x384xf32>
    %15 = arith.addf %12, %14 : vector<256x384xf32>
    %16 = vector.extract_strided_slice %15 {offsets = [0, 0], sizes = [256, 128], strides = [1, 1]} : vector<256x384xf32> to vector<256x128xf32>
    %17 = arith.truncf %16 : vector<256x128xf32> to vector<256x128xbf16>
    %c0_12 = arith.constant 0 : index
    %c0_13 = arith.constant 0 : index
    %c0_14 = arith.constant 0 : index
    %18 = vector.load %arg7[%c0_12, %c0_13, %c0_14] : memref<1x256x128xbf16, #tpu.memory_space<vmem>>, vector<1x256x128xbf16>
    %19 = vector.shape_cast %18 : vector<1x256x128xbf16> to vector<256x128xbf16>
    %20 = vector.shape_cast %17 : vector<256x128xbf16> to vector<1x256x128xbf16>
    tpu.vector_store %arg7[%c0_12, %c0_13, %c0_14], %20 {strides = array<i32>} : memref<1x256x128xbf16, #tpu.memory_space<vmem>>, vector<1x256x128xbf16>,
    %21 = vector.extract_strided_slice %15 {offsets = [0, 128], sizes = [256, 128], strides = [1, 1]} : vector<256x384xf32> to vector<256x128xf32>
    %22 = arith.truncf %21 : vector<256x128xf32> to vector<256x128xbf16>
    %c0_15 = arith.constant 0 : index
    %c0_16 = arith.constant 0 : index
    %c0_17 = arith.constant 0 : index
    %23 = vector.load %arg8[%c0_15, %c0_16, %c0_17] : memref<1x256x128xbf16, #tpu.memory_space<vmem>>, vector<1x256x128xbf16>
    %24 = vector.shape_cast %23 : vector<1x256x128xbf16> to vector<256x128xbf16>
    %25 = vector.shape_cast %22 : vector<256x128xbf16> to vector<1x256x128xbf16>
    tpu.vector_store %arg8[%c0_15, %c0_16, %c0_17], %25 {strides = array<i32>} : memref<1x256x128xbf16, #tpu.memory_space<vmem>>, vector<1x256x128xbf16>,
    %26 = vector.extract_strided_slice %15 {offsets = [0, 256], sizes = [256, 128], strides = [1, 1]} : vector<256x384xf32> to vector<256x128xf32>
    %27 = arith.truncf %26 : vector<256x128xf32> to vector<256x128xbf16>
    %c0_18 = arith.constant 0 : index
    %c0_19 = arith.constant 0 : index
    %c0_20 = arith.constant 0 : index
    %28 = vector.load %arg9[%c0_18, %c0_19, %c0_20] : memref<1x256x128xbf16, #tpu.memory_space<vmem>>, vector<1x256x128xbf16>
    %29 = vector.shape_cast %28 : vector<1x256x128xbf16> to vector<256x128xbf16>
    %30 = vector.shape_cast %27 : vector<256x128xbf16> to vector<1x256x128xbf16>
    tpu.vector_store %arg9[%c0_18, %c0_19, %c0_20], %30 {strides = array<i32>} : memref<1x256x128xbf16, #tpu.memory_space<vmem>>, vector<1x256x128xbf16>,
    return
  }
  func.func @transform_0(%arg0: i32, %arg1: i32) -> (i32, i32, i32) {
    %c0_i32 = arith.constant 0 : i32
    %c0_i32_0 = arith.constant 0 : i32
    return %arg0, %arg1, %c0_i32 : i32, i32, i32
  }
  func.func @transform_1(%arg0: i32, %arg1: i32) -> (i32, i32, i32) {
    %c0_i32 = arith.constant 0 : i32
    %c0_i32_0 = arith.constant 0 : i32
    %c0_i32_1 = arith.constant 0 : i32
    return %arg0, %c0_i32, %c0_i32_0 : i32, i32, i32
  }
  func.func @transform_2(%arg0: i32, %arg1: i32) -> (i32, i32, i32) {
    %c0_i32 = arith.constant 0 : i32
    %c0_i32_0 = arith.constant 0 : i32
    %c0_i32_1 = arith.constant 0 : i32
    return %arg0, %c0_i32, %c0_i32_0 : i32, i32, i32
  }
  func.func @transform_3(%arg0: i32, %arg1: i32) -> (i32, i32) {
    %c0_i32 = arith.constant 0 : i32
    %c0_i32_0 = arith.constant 0 : i32
    %c0_i32_1 = arith.constant 0 : i32
    return %c0_i32, %c0_i32_0 : i32, i32
  }
  func.func @transform_4(%arg0: i32, %arg1: i32) -> (i32, i32) {
    %c0_i32 = arith.constant 0 : i32
    %c0_i32_0 = arith.constant 0 : i32
    %c0_i32_1 = arith.constant 0 : i32
    return %c0_i32, %c0_i32_0 : i32, i32
  }
  func.func @transform_5(%arg0: i32, %arg1: i32) -> (i32, i32, i32) {
    %c0_i32 = arith.constant 0 : i32
    %c0_i32_0 = arith.constant 0 : i32
    return %arg0, %arg1, %c0_i32 : i32, i32, i32
  }
  func.func @transform_6(%arg0: i32, %arg1: i32) -> (i32, i32, i32) {
    %c0_i32 = arith.constant 0 : i32
    %c0_i32_0 = arith.constant 0 : i32
    return %arg0, %arg1, %c0_i32 : i32, i32, i32
  }
  func.func @transform_7(%arg0: i32, %arg1: i32) -> (i32, i32, i32) {
    %c0_i32 = arith.constant 0 : i32
    %c0_i32_0 = arith.constant 0 : i32
    return %arg0, %arg1, %c0_i32 : i32, i32, i32
  }
}

module attributes {stable_mosaic.version = 11 : i64} {
  func.func @_flash_attn_kernel(%arg0: i32, %arg1: i32, %arg2: i32, %arg3: memref<1x256x128xbf16, #tpu.memory_space<vmem>>, %arg4: memref<1x256x128xbf16, #tpu.memory_space<vmem>>, %arg5: memref<1x256x128xbf16, #tpu.memory_space<vmem>>, %arg6: memref<1x256x128xf32, #tpu.memory_space<vmem>>, %arg7: memref<128x128xbf16, #tpu.memory_space<vmem>>, %arg8: memref<1x128xf32, #tpu.memory_space<vmem>>, %arg9: memref<1x256x128xf32, #tpu.memory_space<vmem>>, %arg10: memref<256x128xf32, #tpu.memory_space<vmem>>, %arg11: memref<256x128xf32, #tpu.memory_space<vmem>>, %arg12: memref<256x128xf32, #tpu.memory_space<vmem>>) attributes {dimension_semantics = [#tpu.dimension_semantics<parallel>, #tpu.dimension_semantics<parallel>, #tpu.dimension_semantics<arbitrary>], iteration_bounds = array<i64: 2, 1, 1>, scalar_prefetch = 0 : i64, scratch_operands = 3 : i64, tpu.core_type = #tpu.core_type<tc>, window_params = [{transform_indices = @transform_0, window_bounds = array<i64: 1, 256, 128>}, {transform_indices = @transform_1, window_bounds = array<i64: 1, 256, 128>}, {transform_indices = @transform_2, window_bounds = array<i64: 1, 256, 128>}, {transform_indices = @transform_3, window_bounds = array<i64: 1, 256, 128>}, {pipeline_mode = #tpu.pipeline_mode<synchronous>, transform_indices = @transform_4, window_bounds = array<i64: 128, 128>}, {pipeline_mode = #tpu.pipeline_mode<synchronous>, transform_indices = @transform_5, window_bounds = array<i64: 1, 128>}, {transform_indices = @transform_6, window_bounds = array<i64: 1, 256, 128>}]} {
    %c0_i32 = arith.constant 0 : i32
    %0 = arith.cmpi eq, %arg2, %c0_i32 : i32
    %1 = arith.extui %0 : i1 to i32
    %c0_i32_0 = arith.constant 0 : i32
    %2 = arith.cmpi ne, %1, %c0_i32_0 : i32
    scf.if %2 {
      %cst_24 = arith.constant 0xFF800000 : f32
      %41 = vector.broadcast %cst_24 : f32 to vector<256x128xf32>
      %c0_25 = arith.constant 0 : index
      %c0_26 = arith.constant 0 : index
      %42 = vector.load %arg10[%c0_25, %c0_26] : memref<256x128xf32, #tpu.memory_space<vmem>>, vector<256x128xf32>
      tpu.vector_store %arg10[%c0_25, %c0_26], %41 {strides = array<i32>} : memref<256x128xf32, #tpu.memory_space<vmem>>, vector<256x128xf32>,
      %cst_27 = arith.constant 0.000000e+00 : f32
      %43 = vector.broadcast %cst_27 : f32 to vector<256x128xf32>
      %c0_28 = arith.constant 0 : index
      %c0_29 = arith.constant 0 : index
      %44 = vector.load %arg11[%c0_28, %c0_29] : memref<256x128xf32, #tpu.memory_space<vmem>>, vector<256x128xf32>
      tpu.vector_store %arg11[%c0_28, %c0_29], %43 {strides = array<i32>} : memref<256x128xf32, #tpu.memory_space<vmem>>, vector<256x128xf32>,
      %cst_30 = arith.constant 0.000000e+00 : f32
      %45 = vector.broadcast %cst_30 : f32 to vector<256x128xf32>
      %c0_31 = arith.constant 0 : index
      %c0_32 = arith.constant 0 : index
      %46 = vector.load %arg12[%c0_31, %c0_32] : memref<256x128xf32, #tpu.memory_space<vmem>>, vector<256x128xf32>
      tpu.vector_store %arg12[%c0_31, %c0_32], %45 {strides = array<i32>} : memref<256x128xf32, #tpu.memory_space<vmem>>, vector<256x128xf32>,
    } else {
    }
    %c256_i32 = arith.constant 256 : i32
    %3 = arith.muli %arg2, %c256_i32 : i32
    %4 = tpu.assume_multiple %3, 256 : i32
    %c0 = arith.constant 0 : index
    %5 = arith.index_cast %4 : i32 to index
    %c0_1 = arith.constant 0 : index
    %6 = vector.load %arg4[%c0, %5, %c0_1] : memref<1x256x128xbf16, #tpu.memory_space<vmem>>, vector<1x256x128xbf16>
    %7 = vector.shape_cast %6 : vector<1x256x128xbf16> to vector<256x128xbf16>
    %c0_2 = arith.constant 0 : index
    %8 = arith.index_cast %4 : i32 to index
    %c0_3 = arith.constant 0 : index
    %9 = vector.load %arg5[%c0_2, %8, %c0_3] : memref<1x256x128xbf16, #tpu.memory_space<vmem>>, vector<1x256x128xbf16>
    %10 = vector.shape_cast %9 : vector<1x256x128xbf16> to vector<256x128xbf16>
    %c0_4 = arith.constant 0 : index
    %c0_5 = arith.constant 0 : index
    %c0_6 = arith.constant 0 : index
    %11 = vector.load %arg3[%c0_4, %c0_5, %c0_6] : memref<1x256x128xbf16, #tpu.memory_space<vmem>>, vector<1x256x128xbf16>
    %12 = vector.shape_cast %11 : vector<1x256x128xbf16> to vector<256x128xbf16>
    %cst = arith.constant dense<0.000000e+00> : vector<256x256xf32>
    %13 = tpu.matmul %12, %7, %cst {dimension_numbers = #tpu.dot_dimension_numbers<[1], [1], [0], [0], [0, 0, 1, 0], [], []>} : vector<256x128xbf16>, vector<256x128xbf16>, vector<256x256xf32> -> vector<256x256xf32>
    %c0_7 = arith.constant 0 : index
    %c0_8 = arith.constant 0 : index
    %14 = vector.load %arg10[%c0_7, %c0_8] : memref<256x128xf32, #tpu.memory_space<vmem>>, vector<256x128xf32>
    %c0_9 = arith.constant 0 : index
    %c0_10 = arith.constant 0 : index
    %15 = vector.load %arg11[%c0_9, %c0_10] : memref<256x128xf32, #tpu.memory_space<vmem>>, vector<256x128xf32>
    %cst_11 = arith.constant dense<0xFF800000> : vector<256xf32>
    %16 = vector.multi_reduction <maximumf>, %13, %cst_11 [1] : vector<256x256xf32> to vector<256xf32>
    %17 = vector.shape_cast %16 : vector<256xf32> to vector<256x1xf32>
    %18 = vector.broadcast %17 : vector<256x1xf32> to vector<256x128xf32>
    %19 = arith.maximumf %14, %18 : vector<256x128xf32>
    %20 = arith.subf %14, %19 : vector<256x128xf32>
    %21 = math.exp %20 : vector<256x128xf32>
    %22 = tpu.concatenate %19, %19 in 1 : vector<256x128xf32>, vector<256x128xf32> -> vector<256x256xf32>
    %23 = arith.subf %13, %22 : vector<256x256xf32>
    %24 = math.exp %23 : vector<256x256xf32>
    %25 = arith.mulf %21, %15 : vector<256x128xf32>
    %cst_12 = arith.constant dense<0.000000e+00> : vector<256xf32>
    %26 = vector.multi_reduction <add>, %24, %cst_12 [1] : vector<256x256xf32> to vector<256xf32>
    %27 = vector.shape_cast %26 : vector<256xf32> to vector<256x1xf32>
    %28 = vector.broadcast %27 : vector<256x1xf32> to vector<256x128xf32>
    %29 = arith.addf %25, %28 : vector<256x128xf32>
    %c0_13 = arith.constant 0 : index
    %c0_14 = arith.constant 0 : index
    %30 = vector.load %arg11[%c0_13, %c0_14] : memref<256x128xf32, #tpu.memory_space<vmem>>, vector<256x128xf32>
    tpu.vector_store %arg11[%c0_13, %c0_14], %29 {strides = array<i32>} : memref<256x128xf32, #tpu.memory_space<vmem>>, vector<256x128xf32>,
    %c0_15 = arith.constant 0 : index
    %c0_16 = arith.constant 0 : index
    %31 = vector.load %arg12[%c0_15, %c0_16] : memref<256x128xf32, #tpu.memory_space<vmem>>, vector<256x128xf32>
    %32 = arith.mulf %21, %31 : vector<256x128xf32>
    %33 = arith.truncf %24 : vector<256x256xf32> to vector<256x256xbf16>
    %cst_17 = arith.constant dense<0.000000e+00> : vector<256x128xf32>
    %34 = tpu.matmul %33, %10, %cst_17 {dimension_numbers = #tpu.dot_dimension_numbers<[1], [0], [0], [1], [0, 0, 1, 1], [], []>} : vector<256x256xbf16>, vector<256x128xbf16>, vector<256x128xf32> -> vector<256x128xf32>
    %35 = arith.addf %32, %34 : vector<256x128xf32>
    %c0_18 = arith.constant 0 : index
    %c0_19 = arith.constant 0 : index
    %36 = vector.load %arg12[%c0_18, %c0_19] : memref<256x128xf32, #tpu.memory_space<vmem>>, vector<256x128xf32>
    tpu.vector_store %arg12[%c0_18, %c0_19], %35 {strides = array<i32>} : memref<256x128xf32, #tpu.memory_space<vmem>>, vector<256x128xf32>,
    %c0_20 = arith.constant 0 : index
    %c0_21 = arith.constant 0 : index
    %37 = vector.load %arg10[%c0_20, %c0_21] : memref<256x128xf32, #tpu.memory_space<vmem>>, vector<256x128xf32>
    tpu.vector_store %arg10[%c0_20, %c0_21], %19 {strides = array<i32>} : memref<256x128xf32, #tpu.memory_space<vmem>>, vector<256x128xf32>,
    %c0_i32_22 = arith.constant 0 : i32
    %38 = arith.cmpi eq, %arg2, %c0_i32_22 : i32
    %39 = arith.extui %38 : i1 to i32
    %c0_i32_23 = arith.constant 0 : i32
    %40 = arith.cmpi ne, %39, %c0_i32_23 : i32
    scf.if %40 {
      %c0_24 = arith.constant 0 : index
      %c0_25 = arith.constant 0 : index
      %41 = vector.load %arg11[%c0_24, %c0_25] : memref<256x128xf32, #tpu.memory_space<vmem>>, vector<256x128xf32>
      %42 = tpu.reciprocal %41 {approx = true} : vector<256x128xf32> -> vector<256x128xf32>
      %c0_26 = arith.constant 0 : index
      %c0_27 = arith.constant 0 : index
      %43 = vector.load %arg12[%c0_26, %c0_27] : memref<256x128xf32, #tpu.memory_space<vmem>>, vector<256x128xf32>
      %44 = arith.mulf %43, %42 : vector<256x128xf32>
      %45 = arith.truncf %44 : vector<256x128xf32> to vector<256x128xbf16>
      %c0_28 = arith.constant 0 : index
      %c0_29 = arith.constant 0 : index
      %46 = vector.load %arg7[%c0_28, %c0_29] : memref<128x128xbf16, #tpu.memory_space<vmem>>, vector<128x128xbf16>
      %cst_30 = arith.constant dense<0.000000e+00> : vector<256x128xf32>
      %47 = tpu.matmul %45, %46, %cst_30 {dimension_numbers = #tpu.dot_dimension_numbers<[1], [0], [0], [1], [0, 0, 1, 1], [], []>} : vector<256x128xbf16>, vector<128x128xbf16>, vector<256x128xf32> -> vector<256x128xf32>
      %c0_31 = arith.constant 0 : index
      %c0_32 = arith.constant 0 : index
      %48 = vector.load %arg8[%c0_31, %c0_32] : memref<1x128xf32, #tpu.memory_space<vmem>>, vector<1x128xf32>
      %49 = vector.broadcast %48 : vector<1x128xf32> to vector<256x128xf32>
      %50 = arith.addf %47, %49 : vector<256x128xf32>
      %c0_33 = arith.constant 0 : index
      %c0_34 = arith.constant 0 : index
      %c0_35 = arith.constant 0 : index
      %51 = vector.load %arg6[%c0_33, %c0_34, %c0_35] : memref<1x256x128xf32, #tpu.memory_space<vmem>>, vector<1x256x128xf32>
      %52 = vector.shape_cast %51 : vector<1x256x128xf32> to vector<256x128xf32>
      %53 = arith.addf %52, %50 : vector<256x128xf32>
      %c0_36 = arith.constant 0 : index
      %c0_37 = arith.constant 0 : index
      %c0_38 = arith.constant 0 : index
      %54 = vector.load %arg9[%c0_36, %c0_37, %c0_38] : memref<1x256x128xf32, #tpu.memory_space<vmem>>, vector<1x256x128xf32>
      %55 = vector.shape_cast %54 : vector<1x256x128xf32> to vector<256x128xf32>
      %56 = vector.shape_cast %53 : vector<256x128xf32> to vector<1x256x128xf32>
      tpu.vector_store %arg9[%c0_36, %c0_37, %c0_38], %56 {strides = array<i32>} : memref<1x256x128xf32, #tpu.memory_space<vmem>>, vector<1x256x128xf32>,
    } else {
    }
    return
  }
  func.func @transform_0(%arg0: i32, %arg1: i32, %arg2: i32) -> (i32, i32, i32) {
    %c0_i32 = arith.constant 0 : i32
    %c0_i32_0 = arith.constant 0 : i32
    return %arg0, %arg1, %c0_i32 : i32, i32, i32
  }
  func.func @transform_1(%arg0: i32, %arg1: i32, %arg2: i32) -> (i32, i32, i32) {
    %c0_i32 = arith.constant 0 : i32
    %c0_i32_0 = arith.constant 0 : i32
    %c0_i32_1 = arith.constant 0 : i32
    return %arg0, %c0_i32, %c0_i32_0 : i32, i32, i32
  }
  func.func @transform_2(%arg0: i32, %arg1: i32, %arg2: i32) -> (i32, i32, i32) {
    %c0_i32 = arith.constant 0 : i32
    %c0_i32_0 = arith.constant 0 : i32
    %c0_i32_1 = arith.constant 0 : i32
    return %arg0, %c0_i32, %c0_i32_0 : i32, i32, i32
  }
  func.func @transform_3(%arg0: i32, %arg1: i32, %arg2: i32) -> (i32, i32, i32) {
    %c0_i32 = arith.constant 0 : i32
    %c0_i32_0 = arith.constant 0 : i32
    return %arg0, %arg1, %c0_i32 : i32, i32, i32
  }
  func.func @transform_4(%arg0: i32, %arg1: i32, %arg2: i32) -> (i32, i32) {
    %c0_i32 = arith.constant 0 : i32
    %c0_i32_0 = arith.constant 0 : i32
    %c0_i32_1 = arith.constant 0 : i32
    return %c0_i32, %c0_i32_0 : i32, i32
  }
  func.func @transform_5(%arg0: i32, %arg1: i32, %arg2: i32) -> (i32, i32) {
    %c0_i32 = arith.constant 0 : i32
    %c0_i32_0 = arith.constant 0 : i32
    %c0_i32_1 = arith.constant 0 : i32
    return %c0_i32, %c0_i32_0 : i32, i32
  }
  func.func @transform_6(%arg0: i32, %arg1: i32, %arg2: i32) -> (i32, i32, i32) {
    %c0_i32 = arith.constant 0 : i32
    %c0_i32_0 = arith.constant 0 : i32
    return %arg0, %arg1, %c0_i32 : i32, i32, i32
  }
}

</mosaic_0001>

<llo_original>
// kernel: attn_block_pallas.3
$region0: #{attn_block_pallas.3}
  #allocation0 [shape = 'u32[]', space=smem, size = 0x4, offset = 0x4, fixed_abs, tag = 'smem constant byte address 0x4 - core index']
  #allocation1 [shape = 'u32[144,128]{1,0:T(1,128)}', space=vmem, size = 0x12000, scoped, tag = 'internal scratch']
  %s0 = inlined_call_operand.vmem [shape: f32[2,256,128], index: 0, kind: input, shape index: {}]
  %s1 = inlined_call_operand.vmem [shape: f32[2,1,128], index: 1, kind: output, shape index: {0}]
  %s2 = inlined_call_operand.vmem [shape: f32[2,1,128], index: 2, kind: output, shape index: {1}]
  %3 = xla_tuple %s1, %s2
  %s4 = sld [smem:[#allocation0]]
  $region49: #{attn_block_pallas.3} parent=0
    _
  %s6 = ssub.s32 1, %s4
  %s7 = scalar_select 0, %s6, %s4
  loop: start=0, step=1, limit=4
  $region2: #{attn_block_pallas.3} parent=0 // loop_pre_header
    _
  $region3: #{attn_block_pallas.3} parent=0 // loop_header
    %s9 = sphi 0, %s13
    %p10 = scmp.ge.s32.totalorder %s9, 4
    %s16 = sphi 0, %s28
    %s17 = sphi 0, %s24
    %s18 = sphi 0, %s16
    %s19 = sphi 0, %s17
    %s20 = sphi 0, %s18
    %s21 = sphi 0, %s19
    %s33 = sphi 0, %s35
    %s36 = sphi 0, %s33
    %s37 = sphi 0, %s36
    %s53 = sphi 0, %s37
    %s59 = sphi 0, %s61
    %s62 = sphi 0, %s59
    %s63 = sphi 0, %s62
    %s79 = sphi 0, %s63
    %s85 = sphi 0, %s87
    %s88 = sphi 0, %s85
    %s89 = sphi 0, %s88
    %s105 = sphi 0, %s89
  $region4: #{attn_block_pallas.3} parent=0 // loop_header_branch
    %12 = sbr.rel (%p10) target = $region8
  $region5: #{attn_block_pallas.3} parent=0 // loop_body
    %s14 = ssub.s32 %s9, 1
    %s15 = ssub.s32 %s9, 2
    %s22 = sadd.s32 1, %s17
    %p23 = scmp.ge.s32.totalorder %s22, 1
    %s24 = scalar_select %p23, 0, %s22
    %s25 = sadd.s32 1, %s16
    %s26 = scalar_select %p23, %s25, %s16
    %p27 = scmp.ge.s32.totalorder %s26, 2
    %s28 = scalar_select %p27, 0, %s26
    %s29 = ssub.s32 %s16, %s28
    %s30 = ssub.s32 %s17, %s24
    %s31 = sor.u32 %s29, %s30
    %p32 = scmp.eq.s32.totalorder %s31, 0
    %s34 = sadd.s32 %s33, 1
    %s35 = scalar_select %p32, %s33, %s34
    %p38 = pneg %p32
    %p39 = scmp.eq.s32.totalorder %s9, 1
    %p40 = por %p38, %p39
    %p41 = scmp.ne.s32.totalorder %s33, %s36
    %p42 = scmp.eq.s32.totalorder %s9, 0
    %p43 = por %p41, %p42
    %p44 = scmp.ne.s32.totalorder %s33, %s36
    %p45 = scmp.eq.s32.totalorder %s14, 1
    %p46 = por %p44, %p45
    %p47 = scmp.ne.s32.totalorder %s36, %s37
    %p48 = scmp.eq.s32.totalorder %s14, 0
    %p49 = por %p47, %p48
    %p50 = scmp.ne.s32.totalorder %s36, %s37
    %p51 = scmp.eq.s32.totalorder %s15, 1
    %p52 = por %p50, %p51
    %p54 = scmp.ne.s32.totalorder %s37, %s53
    %p55 = scmp.eq.s32.totalorder %s15, 0
    %p56 = por %p54, %p55
    %s57 = ssub.s32 %s16, %s28
    %p58 = scmp.eq.s32.totalorder %s57, 0
    %s60 = sadd.s32 %s59, 1
    %s61 = scalar_select %p58, %s59, %s60
    %p64 = pneg %p58
    %p65 = scmp.eq.s32.totalorder %s9, 1
    %p66 = por %p64, %p65
    %p67 = scmp.ne.s32.totalorder %s59, %s62
    %p68 = scmp.eq.s32.totalorder %s9, 0
    %p69 = por %p67, %p68
    %p70 = scmp.ne.s32.totalorder %s59, %s62
    %p71 = scmp.eq.s32.totalorder %s14, 1
    %p72 = por %p70, %p71
    %p73 = scmp.ne.s32.totalorder %s62, %s63
    %p74 = scmp.eq.s32.totalorder %s14, 0
    %p75 = por %p73, %p74
    %p76 = scmp.ne.s32.totalorder %s62, %s63
    %p77 = scmp.eq.s32.totalorder %s15, 1
    %p78 = por %p76, %p77
    %p80 = scmp.ne.s32.totalorder %s63, %s79
    %p81 = scmp.eq.s32.totalorder %s15, 0
    %p82 = por %p80, %p81
    %s83 = ssub.s32 %s16, %s28
    %p84 = scmp.eq.s32.totalorder %s83, 0
    %s86 = sadd.s32 %s85, 1
    %s87 = scalar_select %p84, %s85, %s86
    %p90 = pneg %p84
    %p91 = scmp.eq.s32.totalorder %s9, 1
    %p92 = por %p90, %p91
    %p93 = scmp.ne.s32.totalorder %s85, %s88
    %p94 = scmp.eq.s32.totalorder %s9, 0
    %p95 = por %p93, %p94
    %p96 = scmp.ne.s32.totalorder %s85, %s88
    %p97 = scmp.eq.s32.totalorder %s14, 1
    %p98 = por %p96, %p97
    %p99 = scmp.ne.s32.totalorder %s88, %s89
    %p100 = scmp.eq.s32.totalorder %s14, 0
    %p101 = por %p99, %p100
    %p102 = scmp.ne.s32.totalorder %s88, %s89
    %p103 = scmp.eq.s32.totalorder %s15, 1
    %p104 = por %p102, %p103
    %p106 = scmp.ne.s32.totalorder %s89, %s105
    %p107 = scmp.eq.s32.totalorder %s15, 0
    %p108 = por %p106, %p107
    %p109 = scmp.le.s32.totalorder 1, %s9
    %p110 = scmp.lt.s32.totalorder %s9, 3
    %p111 = pnand %p109, %p110
    %p112 = pneg %p111
    // Predicated region
    $region9: #{attn_block_pallas.3} parent=5 // pred_check
      _
    $region10: #{attn_block_pallas.3} parent=5 // pred_check_branch
      %114 = sbr.rel (%p111) target = $region12
    $region11: #{attn_block_pallas.3} parent=5 // pred_region
      %s115 = ssub.s32 %s9, 1
    $region12: #{attn_block_pallas.3} parent=5 // pred_fallthru
      _
    %p116 = scmp.lt.s32.totalorder %s9, 2
    // Predicated region
    $region13: #{attn_block_pallas.3} parent=5 // pred_check
      %p117 = pneg %p116
    $region14: #{attn_block_pallas.3} parent=5 // pred_check_branch
      %119 = sbr.rel (%p117) target = $region16
    $region15: #{attn_block_pallas.3} parent=5 // pred_region
      // Predicated region
      $region17: #{attn_block_pallas.3} parent=15 // pred_check
        %p120 = pneg %p43
      $region18: #{attn_block_pallas.3} parent=15 // pred_check_branch
        %122 = sbr.rel (%p120) target = $region20
      $region19: #{attn_block_pallas.3} parent=15 // pred_region
        %s123 = smul.u32 32, %s17
        %p124 = scmp.lt.s32.totalorder %s16, 1
        %s125 = scalar_select %p124, %s16, 1
        %p126 = scmp.lt.s32.totalorder %s123, 31
        %s127 = scalar_select %p126, %s123, 31
        %s128 = smul.addr %s125, 32
        %s129 = sadd.s32 %s127, %s128
        %s130 = smul.addr %s129, 8
        %s131 = scalar_lea.vmem %s0, %s130
        %s132 = smul.u32 32, %s17
      $region20: #{attn_block_pallas.3} parent=15 // pred_fallthru
        _
    $region16: #{attn_block_pallas.3} parent=5 // pred_fallthru
      _
    %p133 = scmp.le.s32.totalorder 1, %s9
    %p134 = scmp.lt.s32.totalorder %s9, 3
    %p135 = pnand %p133, %p134
    %p136 = pneg %p135
    // Predicated region
    $region21: #{attn_block_pallas.3} parent=5 // pred_check
      _
    $region22: #{attn_block_pallas.3} parent=5 // pred_check_branch
      %138 = sbr.rel (%p135) target = $region24
    $region23: #{attn_block_pallas.3} parent=5 // pred_region
      %s139 = ssub.s32 %s9, 1
      %s140 = smul.u32 32, %s19
      %p141 = scmp.lt.s32.totalorder %s18, 1
      %s142 = scalar_select %p141, %s18, 1
      %p143 = scmp.lt.s32.totalorder %s140, 31
      %s144 = scalar_select %p143, %s140, 31
      %s145 = smul.addr %s142, 32
      %s146 = sadd.s32 %s144, %s145
      %s147 = smul.addr %s146, 8
      %s148 = scalar_lea.vmem %s0, %s147
      %p149 = pneg %p49
      %p150 = pneg %p46
      %p151 = pneg %p75
      %p152 = pneg %p72
      %p153 = scmp.lt.s32.totalorder %s18, 1
      %s154 = scalar_select %p153, %s18, 1
      %s155 = scalar_lea.vmem %s1, %s154
      %p156 = pneg %p101
      %p157 = pneg %p98
      %p158 = scmp.lt.s32.totalorder %s18, 1
      %s159 = scalar_select %p158, %s18, 1
      %s160 = scalar_lea.vmem %s2, %s159
      %s161 = smul.u32 32, %s19
      %p162 = scmp.lt.s32.totalorder %s18, 1
      %s163 = scalar_select %p162, %s18, 1
      %p164 = scmp.lt.s32.totalorder %s161, 31
      %s165 = scalar_select %p164, %s161, 31
      %s166 = smul.addr %s163, 32
      %s167 = sadd.s32 %s165, %s166
      %s168 = smul.addr %s167, 8
      %s169 = scalar_lea.vmem %s0, %s168
      %s170 = smul.u32 32, %s19
      %p171 = scmp.lt.s32.totalorder %s18, 1
      %s172 = scalar_select %p171, %s18, 1
      %s173 = scalar_lea.vmem %s1, %s172
      %p174 = scmp.lt.s32.totalorder %s18, 1
      %s175 = scalar_select %p174, %s18, 1
      %s176 = scalar_lea.vmem %s2, %s175
      %p177 = scmp.eq.s32.totalorder %s19, 0
      // Predicated region
      $region25: #{attn_block_pallas.3} parent=23 // pred_check
        %p178 = pneg %p177
      $region26: #{attn_block_pallas.3} parent=23 // pred_check_branch
        %180 = sbr.rel (%p178) target = $region28
      $region27: #{attn_block_pallas.3} parent=23 // pred_region
        %181 = vst [vmem:[%s173] sm:$0x1] 0.0
        %182 = vst [vmem:[%s176] sm:$0x1] 0.0
      $region28: #{attn_block_pallas.3} parent=23 // pred_fallthru
        _
      %v183 = vld [vmem:[%s169] sm:$0xff]
      %v184 = vld [vmem:[%s169 + $0x8] sm:$0xff]
      %v185 = vld [vmem:[%s169 + $0x10] sm:$0xff]
      %v186 = vld [vmem:[%s169 + $0x18] sm:$0xff]
      %v187 = vld [vmem:[%s169 + $0x20] sm:$0xff]
      %v188 = vld [vmem:[%s169 + $0x28] sm:$0xff]
      %v189 = vld [vmem:[%s169 + $0x30] sm:$0xff]
      %v190 = vld [vmem:[%s169 + $0x38] sm:$0xff]
      %v191 = vld [vmem:[%s169 + $0x40] sm:$0xff]
      %v192 = vld [vmem:[%s169 + $0x48] sm:$0xff]
      %v193 = vld [vmem:[%s169 + $0x50] sm:$0xff]
      %v194 = vld [vmem:[%s169 + $0x58] sm:$0xff]
      %v195 = vld [vmem:[%s169 + $0x60] sm:$0xff]
      %v196 = vld [vmem:[%s169 + $0x68] sm:$0xff]
      %v197 = vld [vmem:[%s169 + $0x70] sm:$0xff]
      %v198 = vld [vmem:[%s169 + $0x78] sm:$0xff]
      %v199 = vld [vmem:[%s169 + $0x80] sm:$0xff]
      %v200 = vld [vmem:[%s169 + $0x88] sm:$0xff]
      %v201 = vld [vmem:[%s169 + $0x90] sm:$0xff]
      %v202 = vld [vmem:[%s169 + $0x98] sm:$0xff]
      %v203 = vld [vmem:[%s169 + $0xa0] sm:$0xff]
      %v204 = vld [vmem:[%s169 + $0xa8] sm:$0xff]
      %v205 = vld [vmem:[%s169 + $0xb0] sm:$0xff]
      %v206 = vld [vmem:[%s169 + $0xb8] sm:$0xff]
      %v207 = vld [vmem:[%s169 + $0xc0] sm:$0xff]
      %v208 = vld [vmem:[%s169 + $0xc8] sm:$0xff]
      %v209 = vld [vmem:[%s169 + $0xd0] sm:$0xff]
      %v210 = vld [vmem:[%s169 + $0xd8] sm:$0xff]
      %v211 = vld [vmem:[%s169 + $0xe0] sm:$0xff]
      %v212 = vld [vmem:[%s169 + $0xe8] sm:$0xff]
      %v213 = vld [vmem:[%s169 + $0xf0] sm:$0xff]
      %v214 = vld [vmem:[%s169 + $0xf8] sm:$0xff]
      %v215 = vld [vmem:[%s173] sm:$0x1]
      %v216 = vadd.f32 %v183, %v184
      %v217 = vadd.f32 %v216, %v185
      %v218 = vadd.f32 %v217, %v186
      %v219 = vadd.f32 %v218, %v187
      %v220 = vadd.f32 %v219, %v188
      %v221 = vadd.f32 %v220, %v189
      %v222 = vadd.f32 %v221, %v190
      %v223 = vadd.f32 %v222, %v191
      %v224 = vadd.f32 %v223, %v192
      %v225 = vadd.f32 %v224, %v193
      %v226 = vadd.f32 %v225, %v194
      %v227 = vadd.f32 %v226, %v195
      %v228 = vadd.f32 %v227, %v196
      %v229 = vadd.f32 %v228, %v197
      %v230 = vadd.f32 %v229, %v198
      %v231 = vadd.f32 %v230, %v199
      %v232 = vadd.f32 %v231, %v200
      %v233 = vadd.f32 %v232, %v201
      %v234 = vadd.f32 %v233, %v202
      %v235 = vadd.f32 %v234, %v203
      %v236 = vadd.f32 %v235, %v204
      %v237 = vadd.f32 %v236, %v205
      %v238 = vadd.f32 %v237, %v206
      %v239 = vadd.f32 %v238, %v207
      %v240 = vadd.f32 %v239, %v208
      %v241 = vadd.f32 %v240, %v209
      %v242 = vadd.f32 %v241, %v210
      %v243 = vadd.f32 %v242, %v211
      %v244 = vadd.f32 %v243, %v212
      %v245 = vadd.f32 %v244, %v213
      %v246 = vadd.f32 %v245, %v214
      %v247 = vrot.slane %v246, 4
      %v248 = vadd.f32 %v246, %v247
      %v249 = vrot.slane %v248, 2
      %v250 = vadd.f32 %v248, %v249
      %v251 = vrot.slane %v250, 1
      %v252 = vadd.f32 %v250, %v251
      %v253 = vadd.f32 %v215, %v252
      %254 = vst [vmem:[%s173] sm:$0x1] %v253
      %v255 = vld [vmem:[%s176] sm:$0x1]
      %v256 = vmul.f32 %v183, %v183
      %v257 = vmul.f32 %v184, %v184
      %v258 = vmul.f32 %v185, %v185
      %v259 = vmul.f32 %v186, %v186
      %v260 = vmul.f32 %v187, %v187
      %v261 = vmul.f32 %v188, %v188
      %v262 = vmul.f32 %v189, %v189
      %v263 = vmul.f32 %v190, %v190
      %v264 = vmul.f32 %v191, %v191
      %v265 = vmul.f32 %v192, %v192
      %v266 = vmul.f32 %v193, %v193
      %v267 = vmul.f32 %v194, %v194
      %v268 = vmul.f32 %v195, %v195
      %v269 = vmul.f32 %v196, %v196
      %v270 = vmul.f32 %v197, %v197
      %v271 = vmul.f32 %v198, %v198
      %v272 = vmul.f32 %v199, %v199
      %v273 = vmul.f32 %v200, %v200
      %v274 = vmul.f32 %v201, %v201
      %v275 = vmul.f32 %v202, %v202
      %v276 = vmul.f32 %v203, %v203
      %v277 = vmul.f32 %v204, %v204
      %v278 = vmul.f32 %v205, %v205
      %v279 = vmul.f32 %v206, %v206
      %v280 = vmul.f32 %v207, %v207
      %v281 = vmul.f32 %v208, %v208
      %v282 = vmul.f32 %v209, %v209
      %v283 = vmul.f32 %v210, %v210
      %v284 = vmul.f32 %v211, %v211
      %v285 = vmul.f32 %v212, %v212
      %v286 = vmul.f32 %v213, %v213
      %v287 = vmul.f32 %v214, %v214
      %v288 = vadd.f32 %v256, %v257
      %v289 = vadd.f32 %v288, %v258
      %v290 = vadd.f32 %v289, %v259
      %v291 = vadd.f32 %v290, %v260
      %v292 = vadd.f32 %v291, %v261
      %v293 = vadd.f32 %v292, %v262
      %v294 = vadd.f32 %v293, %v263
      %v295 = vadd.f32 %v294, %v264
      %v296 = vadd.f32 %v295, %v265
      %v297 = vadd.f32 %v296, %v266
      %v298 = vadd.f32 %v297, %v267
      %v299 = vadd.f32 %v298, %v268
      %v300 = vadd.f32 %v299, %v269
      %v301 = vadd.f32 %v300, %v270
      %v302 = vadd.f32 %v301, %v271
      %v303 = vadd.f32 %v302, %v272
      %v304 = vadd.f32 %v303, %v273
      %v305 = vadd.f32 %v304, %v274
      %v306 = vadd.f32 %v305, %v275
      %v307 = vadd.f32 %v306, %v276
      %v308 = vadd.f32 %v307, %v277
      %v309 = vadd.f32 %v308, %v278
      %v310 = vadd.f32 %v309, %v279
      %v311 = vadd.f32 %v310, %v280
      %v312 = vadd.f32 %v311, %v281
      %v313 = vadd.f32 %v312, %v282
      %v314 = vadd.f32 %v313, %v283
      %v315 = vadd.f32 %v314, %v284
      %v316 = vadd.f32 %v315, %v285
      %v317 = vadd.f32 %v316, %v286
      %v318 = vadd.f32 %v317, %v287
      %v319 = vrot.slane %v318, 4
      %v320 = vadd.f32 %v318, %v319
      %v321 = vrot.slane %v320, 2
      %v322 = vadd.f32 %v320, %v321
      %v323 = vrot.slane %v322, 1
      %v324 = vadd.f32 %v322, %v323
      %v325 = vadd.f32 %v255, %v324
      %326 = vst [vmem:[%s176] sm:$0x1] %v325
      %p327 = scmp.lt.s32.totalorder %s18, 1
      %s328 = scalar_select %p327, %s18, 1
      %s329 = scalar_lea.vmem %s1, %s328
      %p330 = scmp.lt.s32.totalorder %s18, 1
      %s331 = scalar_select %p330, %s18, 1
      %s332 = scalar_lea.vmem %s2, %s331
      // Predicated region
      $region29: #{attn_block_pallas.3} parent=23 // pred_check
        %p333 = pneg %p72
      $region30: #{attn_block_pallas.3} parent=23 // pred_check_branch
        %335 = sbr.rel (%p333) target = $region32
      $region31: #{attn_block_pallas.3} parent=23 // pred_region
        _
      $region32: #{attn_block_pallas.3} parent=23 // pred_fallthru
        _
      // Predicated region
      $region33: #{attn_block_pallas.3} parent=23 // pred_check
        %p336 = pneg %p98
      $region34: #{attn_block_pallas.3} parent=23 // pred_check_branch
        %338 = sbr.rel (%p336) target = $region36
      $region35: #{attn_block_pallas.3} parent=23 // pred_region
        _
      $region36: #{attn_block_pallas.3} parent=23 // pred_fallthru
        _
    $region24: #{attn_block_pallas.3} parent=5 // pred_fallthru
      _
    %p339 = scmp.le.s32.totalorder 2, %s9
    // Predicated region
    $region37: #{attn_block_pallas.3} parent=5 // pred_check
      %p340 = pneg %p339
    $region38: #{attn_block_pallas.3} parent=5 // pred_check_branch
      %342 = sbr.rel (%p340) target = $region40
    $region39: #{attn_block_pallas.3} parent=5 // pred_region
      %s343 = ssub.s32 %s9, 2
      // Predicated region
      $region41: #{attn_block_pallas.3} parent=39 // pred_check
        %p344 = pneg %p78
      $region42: #{attn_block_pallas.3} parent=39 // pred_check_branch
        %346 = sbr.rel (%p344) target = $region44
      $region43: #{attn_block_pallas.3} parent=39 // pred_region
        %p347 = scmp.lt.s32.totalorder %s20, 1
        %s348 = scalar_select %p347, %s20, 1
        %s349 = scalar_lea.vmem %s1, %s348
      $region44: #{attn_block_pallas.3} parent=39 // pred_fallthru
        _
      // Predicated region
      $region45: #{attn_block_pallas.3} parent=39 // pred_check
        %p350 = pneg %p104
      $region46: #{attn_block_pallas.3} parent=39 // pred_check_branch
        %352 = sbr.rel (%p350) target = $region48
      $region47: #{attn_block_pallas.3} parent=39 // pred_region
        %p353 = scmp.lt.s32.totalorder %s20, 1
        %s354 = scalar_select %p353, %s20, 1
        %s355 = scalar_lea.vmem %s2, %s354
      $region48: #{attn_block_pallas.3} parent=39 // pred_fallthru
        _
    $region40: #{attn_block_pallas.3} parent=5 // pred_fallthru
      _
  $region6: #{attn_block_pallas.3} parent=0 // loop_footer
    %s13 = sadd.s32 1, %s9
  $region7: #{attn_block_pallas.3} parent=0 // loop_footer_branch
    %8 = sbr.rel target = $region3
  $region8: #{attn_block_pallas.3} parent=0 // loop_exit
    _

// kernel: attn_block_pallas.4
$region0: #{attn_block_pallas.4}
  #allocation0 [shape = 'u32[]', space=smem, size = 0x4, offset = 0x4, fixed_abs, tag = 'smem constant byte address 0x4 - core index']
  #allocation1 [shape = 'u32[144,128]{1,0:T(1,128)}', space=vmem, size = 0x12000, scoped, tag = 'internal scratch']
  %s0 = inlined_call_operand.vmem [shape: f32[2,256,128], index: 0, kind: input, shape index: {}]
  %s1 = inlined_call_operand.vmem [shape: f32[2,1,128], index: 1, kind: input, shape index: {}]
  %s2 = inlined_call_operand.vmem [shape: f32[2,1,128], index: 2, kind: input, shape index: {}]
  %s3 = inlined_call_operand.vmem [shape: bf16[128,384], index: 3, kind: input, shape index: {}]
  %s4 = inlined_call_operand.vmem [shape: f32[1,384], index: 4, kind: input, shape index: {}]
  %s5 = inlined_call_operand.vmem [shape: bf16[2,256,128], index: 5, kind: output, shape index: {0}]
  %s6 = inlined_call_operand.vmem [shape: bf16[2,256,128], index: 6, kind: output, shape index: {1}]
  %s7 = inlined_call_operand.vmem [shape: bf16[2,256,128], index: 7, kind: output, shape index: {2}]
  %8 = xla_tuple %s5, %s6, %s7
  %s9 = sld [smem:[#allocation0]]
  $region69: #{attn_block_pallas.4} parent=0
    _
  %s11 = ssub.s32 1, %s9
  %s12 = scalar_select 0, %s11, %s9
  loop: start=0, step=1, limit=4
  $region2: #{attn_block_pallas.4} parent=0 // loop_pre_header
    _
  $region3: #{attn_block_pallas.4} parent=0 // loop_header
    %s14 = sphi 0, %s18
    %p15 = scmp.ge.s32.totalorder %s14, 4
    %s21 = sphi 0, %s33
    %s22 = sphi 0, %s29
    %s23 = sphi 0, %s21
    %s24 = sphi 0, %s22
    %s25 = sphi 0, %s23
    %s26 = sphi 0, %s24
    %s38 = sphi 0, %s40
    %s41 = sphi 0, %s38
    %s42 = sphi 0, %s41
    %s58 = sphi 0, %s42
    %s64 = sphi 0, %s66
    %s67 = sphi 0, %s64
    %s68 = sphi 0, %s67
    %s84 = sphi 0, %s68
    %s90 = sphi 0, %s92
    %s93 = sphi 0, %s90
    %s94 = sphi 0, %s93
    %s110 = sphi 0, %s94
    %s114 = sphi 0, %s114
    %s116 = sphi 0, %s114
    %s117 = sphi 0, %s116
    %s131 = sphi 0, %s117
    %s135 = sphi 0, %s135
    %s137 = sphi 0, %s135
    %s138 = sphi 0, %s137
    %s152 = sphi 0, %s138
    %s160 = sphi 0, %s162
    %s163 = sphi 0, %s160
    %s164 = sphi 0, %s163
    %s180 = sphi 0, %s164
    %s188 = sphi 0, %s190
    %s191 = sphi 0, %s188
    %s192 = sphi 0, %s191
    %s208 = sphi 0, %s192
    %s216 = sphi 0, %s218
    %s219 = sphi 0, %s216
    %s220 = sphi 0, %s219
    %s236 = sphi 0, %s220
  $region4: #{attn_block_pallas.4} parent=0 // loop_header_branch
    %17 = sbr.rel (%p15) target = $region8
  $region5: #{attn_block_pallas.4} parent=0 // loop_body
    %s19 = ssub.s32 %s14, 1
    %s20 = ssub.s32 %s14, 2
    %s27 = sadd.s32 1, %s22
    %p28 = scmp.ge.s32.totalorder %s27, 1
    %s29 = scalar_select %p28, 0, %s27
    %s30 = sadd.s32 1, %s21
    %s31 = scalar_select %p28, %s30, %s21
    %p32 = scmp.ge.s32.totalorder %s31, 2
    %s33 = scalar_select %p32, 0, %s31
    %s34 = ssub.s32 %s21, %s33
    %s35 = ssub.s32 %s22, %s29
    %s36 = sor.u32 %s34, %s35
    %p37 = scmp.eq.s32.totalorder %s36, 0
    %s39 = sadd.s32 %s38, 1
    %s40 = scalar_select %p37, %s38, %s39
    %p43 = pneg %p37
    %p44 = scmp.eq.s32.totalorder %s14, 1
    %p45 = por %p43, %p44
    %p46 = scmp.ne.s32.totalorder %s38, %s41
    %p47 = scmp.eq.s32.totalorder %s14, 0
    %p48 = por %p46, %p47
    %p49 = scmp.ne.s32.totalorder %s38, %s41
    %p50 = scmp.eq.s32.totalorder %s19, 1
    %p51 = por %p49, %p50
    %p52 = scmp.ne.s32.totalorder %s41, %s42
    %p53 = scmp.eq.s32.totalorder %s19, 0
    %p54 = por %p52, %p53
    %p55 = scmp.ne.s32.totalorder %s41, %s42
    %p56 = scmp.eq.s32.totalorder %s20, 1
    %p57 = por %p55, %p56
    %p59 = scmp.ne.s32.totalorder %s42, %s58
    %p60 = scmp.eq.s32.totalorder %s20, 0
    %p61 = por %p59, %p60
    %s62 = ssub.s32 %s21, %s33
    %p63 = scmp.eq.s32.totalorder %s62, 0
    %s65 = sadd.s32 %s64, 1
    %s66 = scalar_select %p63, %s64, %s65
    %p69 = pneg %p63
    %p70 = scmp.eq.s32.totalorder %s14, 1
    %p71 = por %p69, %p70
    %p72 = scmp.ne.s32.totalorder %s64, %s67
    %p73 = scmp.eq.s32.totalorder %s14, 0
    %p74 = por %p72, %p73
    %p75 = scmp.ne.s32.totalorder %s64, %s67
    %p76 = scmp.eq.s32.totalorder %s19, 1
    %p77 = por %p75, %p76
    %p78 = scmp.ne.s32.totalorder %s67, %s68
    %p79 = scmp.eq.s32.totalorder %s19, 0
    %p80 = por %p78, %p79
    %p81 = scmp.ne.s32.totalorder %s67, %s68
    %p82 = scmp.eq.s32.totalorder %s20, 1
    %p83 = por %p81, %p82
    %p85 = scmp.ne.s32.totalorder %s68, %s84
    %p86 = scmp.eq.s32.totalorder %s20, 0
    %p87 = por %p85, %p86
    %s88 = ssub.s32 %s21, %s33
    %p89 = scmp.eq.s32.totalorder %s88, 0
    %s91 = sadd.s32 %s90, 1
    %s92 = scalar_select %p89, %s90, %s91
    %p95 = pneg %p89
    %p96 = scmp.eq.s32.totalorder %s14, 1
    %p97 = por %p95, %p96
    %p98 = scmp.ne.s32.totalorder %s90, %s93
    %p99 = scmp.eq.s32.totalorder %s14, 0
    %p100 = por %p98, %p99
    %p101 = scmp.ne.s32.totalorder %s90, %s93
    %p102 = scmp.eq.s32.totalorder %s19, 1
    %p103 = por %p101, %p102
    %p104 = scmp.ne.s32.totalorder %s93, %s94
    %p105 = scmp.eq.s32.totalorder %s19, 0
    %p106 = por %p104, %p105
    %p107 = scmp.ne.s32.totalorder %s93, %s94
    %p108 = scmp.eq.s32.totalorder %s20, 1
    %p109 = por %p107, %p108
    %p111 = scmp.ne.s32.totalorder %s94, %s110
    %p112 = scmp.eq.s32.totalorder %s20, 0
    %p113 = por %p111, %p112
    %s115 = sadd.s32 %s114, 1
    %p118 = scmp.eq.s32.totalorder %s14, 1
    %p119 = scmp.ne.s32.totalorder %s114, %s116
    %p120 = scmp.eq.s32.totalorder %s14, 0
    %p121 = por %p119, %p120
    %p122 = scmp.ne.s32.totalorder %s114, %s116
    %p123 = scmp.eq.s32.totalorder %s19, 1
    %p124 = por %p122, %p123
    %p125 = scmp.ne.s32.totalorder %s116, %s117
    %p126 = scmp.eq.s32.totalorder %s19, 0
    %p127 = por %p125, %p126
    %p128 = scmp.ne.s32.totalorder %s116, %s117
    %p129 = scmp.eq.s32.totalorder %s20, 1
    %p130 = por %p128, %p129
    %p132 = scmp.ne.s32.totalorder %s117, %s131
    %p133 = scmp.eq.s32.totalorder %s20, 0
    %p134 = por %p132, %p133
    %s136 = sadd.s32 %s135, 1
    %p139 = scmp.eq.s32.totalorder %s14, 1
    %p140 = scmp.ne.s32.totalorder %s135, %s137
    %p141 = scmp.eq.s32.totalorder %s14, 0
    %p142 = por %p140, %p141
    %p143 = scmp.ne.s32.totalorder %s135, %s137
    %p144 = scmp.eq.s32.totalorder %s19, 1
    %p145 = por %p143, %p144
    %p146 = scmp.ne.s32.totalorder %s137, %s138
    %p147 = scmp.eq.s32.totalorder %s19, 0
    %p148 = por %p146, %p147
    %p149 = scmp.ne.s32.totalorder %s137, %s138
    %p150 = scmp.eq.s32.totalorder %s20, 1
    %p151 = por %p149, %p150
    %p153 = scmp.ne.s32.totalorder %s138, %s152
    %p154 = scmp.eq.s32.totalorder %s20, 0
    %p155 = por %p153, %p154
    %s156 = ssub.s32 %s21, %s33
    %s157 = ssub.s32 %s22, %s29
    %s158 = sor.u32 %s156, %s157
    %p159 = scmp.eq.s32.totalorder %s158, 0
    %s161 = sadd.s32 %s160, 1
    %s162 = scalar_select %p159, %s160, %s161
    %p165 = pneg %p159
    %p166 = scmp.eq.s32.totalorder %s14, 1
    %p167 = por %p165, %p166
    %p168 = scmp.ne.s32.totalorder %s160, %s163
    %p169 = scmp.eq.s32.totalorder %s14, 0
    %p170 = por %p168, %p169
    %p171 = scmp.ne.s32.totalorder %s160, %s163
    %p172 = scmp.eq.s32.totalorder %s19, 1
    %p173 = por %p171, %p172
    %p174 = scmp.ne.s32.totalorder %s163, %s164
    %p175 = scmp.eq.s32.totalorder %s19, 0
    %p176 = por %p174, %p175
    %p177 = scmp.ne.s32.totalorder %s163, %s164
    %p178 = scmp.eq.s32.totalorder %s20, 1
    %p179 = por %p177, %p178
    %p181 = scmp.ne.s32.totalorder %s164, %s180
    %p182 = scmp.eq.s32.totalorder %s20, 0
    %p183 = por %p181, %p182
    %s184 = ssub.s32 %s21, %s33
    %s185 = ssub.s32 %s22, %s29
    %s186 = sor.u32 %s184, %s185
    %p187 = scmp.eq.s32.totalorder %s186, 0
    %s189 = sadd.s32 %s188, 1
    %s190 = scalar_select %p187, %s188, %s189
    %p193 = pneg %p187
    %p194 = scmp.eq.s32.totalorder %s14, 1
    %p195 = por %p193, %p194
    %p196 = scmp.ne.s32.totalorder %s188, %s191
    %p197 = scmp.eq.s32.totalorder %s14, 0
    %p198 = por %p196, %p197
    %p199 = scmp.ne.s32.totalorder %s188, %s191
    %p200 = scmp.eq.s32.totalorder %s19, 1
    %p201 = por %p199, %p200
    %p202 = scmp.ne.s32.totalorder %s191, %s192
    %p203 = scmp.eq.s32.totalorder %s19, 0
    %p204 = por %p202, %p203
    %p205 = scmp.ne.s32.totalorder %s191, %s192
    %p206 = scmp.eq.s32.totalorder %s20, 1
    %p207 = por %p205, %p206
    %p209 = scmp.ne.s32.totalorder %s192, %s208
    %p210 = scmp.eq.s32.totalorder %s20, 0
    %p211 = por %p209, %p210
    %s212 = ssub.s32 %s21, %s33
    %s213 = ssub.s32 %s22, %s29
    %s214 = sor.u32 %s212, %s213
    %p215 = scmp.eq.s32.totalorder %s214, 0
    %s217 = sadd.s32 %s216, 1
    %s218 = scalar_select %p215, %s216, %s217
    %p221 = pneg %p215
    %p222 = scmp.eq.s32.totalorder %s14, 1
    %p223 = por %p221, %p222
    %p224 = scmp.ne.s32.totalorder %s216, %s219
    %p225 = scmp.eq.s32.totalorder %s14, 0
    %p226 = por %p224, %p225
    %p227 = scmp.ne.s32.totalorder %s216, %s219
    %p228 = scmp.eq.s32.totalorder %s19, 1
    %p229 = por %p227, %p228
    %p230 = scmp.ne.s32.totalorder %s219, %s220
    %p231 = scmp.eq.s32.totalorder %s19, 0
    %p232 = por %p230, %p231
    %p233 = scmp.ne.s32.totalorder %s219, %s220
    %p234 = scmp.eq.s32.totalorder %s20, 1
    %p235 = por %p233, %p234
    %p237 = scmp.ne.s32.totalorder %s220, %s236
    %p238 = scmp.eq.s32.totalorder %s20, 0
    %p239 = por %p237, %p238
    %p240 = scmp.le.s32.totalorder 1, %s14
    %p241 = scmp.lt.s32.totalorder %s14, 3
    %p242 = pnand %p240, %p241
    %p243 = pneg %p242
    // Predicated region
    $region9: #{attn_block_pallas.4} parent=5 // pred_check
      _
    $region10: #{attn_block_pallas.4} parent=5 // pred_check_branch
      %245 = sbr.rel (%p242) target = $region12
    $region11: #{attn_block_pallas.4} parent=5 // pred_region
      %s246 = ssub.s32 %s14, 1
      // Predicated region
      $region13: #{attn_block_pallas.4} parent=11 // pred_check
        %p247 = pneg %p127
      $region14: #{attn_block_pallas.4} parent=11 // pred_check_branch
        %249 = sbr.rel (%p247) target = $region16
      $region15: #{attn_block_pallas.4} parent=11 // pred_region
        _
      $region16: #{attn_block_pallas.4} parent=11 // pred_fallthru
        _
      // Predicated region
      $region17: #{attn_block_pallas.4} parent=11 // pred_check
        %p250 = pneg %p148
      $region18: #{attn_block_pallas.4} parent=11 // pred_check_branch
        %252 = sbr.rel (%p250) target = $region20
      $region19: #{attn_block_pallas.4} parent=11 // pred_region
        _
      $region20: #{attn_block_pallas.4} parent=11 // pred_fallthru
        _
    $region12: #{attn_block_pallas.4} parent=5 // pred_fallthru
      _
    %p253 = scmp.lt.s32.totalorder %s14, 2
    // Predicated region
    $region21: #{attn_block_pallas.4} parent=5 // pred_check
      %p254 = pneg %p253
    $region22: #{attn_block_pallas.4} parent=5 // pred_check_branch
      %256 = sbr.rel (%p254) target = $region24
    $region23: #{attn_block_pallas.4} parent=5 // pred_region
      // Predicated region
      $region25: #{attn_block_pallas.4} parent=23 // pred_check
        %p257 = pneg %p48
      $region26: #{attn_block_pallas.4} parent=23 // pred_check_branch
        %259 = sbr.rel (%p257) target = $region28
      $region27: #{attn_block_pallas.4} parent=23 // pred_region
        %s260 = smul.u32 32, %s22
        %p261 = scmp.lt.s32.totalorder %s21, 1
        %s262 = scalar_select %p261, %s21, 1
        %p263 = scmp.lt.s32.totalorder %s260, 31
        %s264 = scalar_select %p263, %s260, 31
        %s265 = smul.addr %s262, 32
        %s266 = sadd.s32 %s264, %s265
        %s267 = smul.addr %s266, 8
        %s268 = scalar_lea.vmem %s0, %s267
        %s269 = smul.u32 32, %s22
      $region28: #{attn_block_pallas.4} parent=23 // pred_fallthru
        _
      // Predicated region
      $region29: #{attn_block_pallas.4} parent=23 // pred_check
        %p270 = pneg %p74
      $region30: #{attn_block_pallas.4} parent=23 // pred_check_branch
        %272 = sbr.rel (%p270) target = $region32
      $region31: #{attn_block_pallas.4} parent=23 // pred_region
        %p273 = scmp.lt.s32.totalorder %s21, 1
        %s274 = scalar_select %p273, %s21, 1
        %s275 = scalar_lea.vmem %s1, %s274
      $region32: #{attn_block_pallas.4} parent=23 // pred_fallthru
        _
      // Predicated region
      $region33: #{attn_block_pallas.4} parent=23 // pred_check
        %p276 = pneg %p100
      $region34: #{attn_block_pallas.4} parent=23 // pred_check_branch
        %278 = sbr.rel (%p276) target = $region36
      $region35: #{attn_block_pallas.4} parent=23 // pred_region
        %p279 = scmp.lt.s32.totalorder %s21, 1
        %s280 = scalar_select %p279, %s21, 1
        %s281 = scalar_lea.vmem %s2, %s280
      $region36: #{attn_block_pallas.4} parent=23 // pred_fallthru
        _
    $region24: #{attn_block_pallas.4} parent=5 // pred_fallthru
      _
    %p282 = scmp.le.s32.totalorder 1, %s14
    %p283 = scmp.lt.s32.totalorder %s14, 3
    %p284 = pnand %p282, %p283
    %p285 = pneg %p284
    // Predicated region
    $region37: #{attn_block_pallas.4} parent=5 // pred_check
      _
    $region38: #{attn_block_pallas.4} parent=5 // pred_check_branch
      %287 = sbr.rel (%p284) target = $region40
    $region39: #{attn_block_pallas.4} parent=5 // pred_region
      %s288 = ssub.s32 %s14, 1
      %s289 = smul.u32 32, %s24
      %p290 = scmp.lt.s32.totalorder %s23, 1
      %s291 = scalar_select %p290, %s23, 1
      %p292 = scmp.lt.s32.totalorder %s289, 31
      %s293 = scalar_select %p292, %s289, 31
      %s294 = smul.addr %s291, 32
      %s295 = sadd.s32 %s293, %s294
      %s296 = smul.addr %s295, 8
      %s297 = scalar_lea.vmem %s0, %s296
      %p298 = pneg %p54
      %p299 = pneg %p51
      %p300 = scmp.lt.s32.totalorder %s23, 1
      %s301 = scalar_select %p300, %s23, 1
      %s302 = scalar_lea.vmem %s1, %s301
      %p303 = pneg %p80
      %p304 = pneg %p77
      %p305 = scmp.lt.s32.totalorder %s23, 1
      %s306 = scalar_select %p305, %s23, 1
      %s307 = scalar_lea.vmem %s2, %s306
      %p308 = pneg %p106
      %p309 = pneg %p103
      %p310 = pneg %p127
      %p311 = pneg %p124
      %p312 = pneg %p148
      %p313 = pneg %p145
      %p314 = pneg %p176
      %p315 = pneg %p173
      %s316 = smul.u32 32, %s24
      %p317 = scmp.lt.s32.totalorder %s23, 1
      %s318 = scalar_select %p317, %s23, 1
      %p319 = scmp.lt.s32.totalorder %s316, 31
      %s320 = scalar_select %p319, %s316, 31
      %s321 = smul.addr %s318, 32
      %s322 = sadd.s32 %s320, %s321
      %s323 = smul.addr %s322, 4
      %s324 = scalar_lea.vmem %s5, %s323
      %p325 = pneg %p204
      %p326 = pneg %p201
      %s327 = smul.u32 32, %s24
      %p328 = scmp.lt.s32.totalorder %s23, 1
      %s329 = scalar_select %p328, %s23, 1
      %p330 = scmp.lt.s32.totalorder %s327, 31
      %s331 = scalar_select %p330, %s327, 31
      %s332 = smul.addr %s329, 32
      %s333 = sadd.s32 %s331, %s332
      %s334 = smul.addr %s333, 4
      %s335 = scalar_lea.vmem %s6, %s334
      %p336 = pneg %p232
      %p337 = pneg %p229
      %s338 = smul.u32 32, %s24
      %p339 = scmp.lt.s32.totalorder %s23, 1
      %s340 = scalar_select %p339, %s23, 1
      %p341 = scmp.lt.s32.totalorder %s338, 31
      %s342 = scalar_select %p341, %s338, 31
      %s343 = smul.addr %s340, 32
      %s344 = sadd.s32 %s342, %s343
      %s345 = smul.addr %s344, 4
      %s346 = scalar_lea.vmem %s7, %s345
      %s347 = smul.u32 32, %s24
      %p348 = scmp.lt.s32.totalorder %s23, 1
      %s349 = scalar_select %p348, %s23, 1
      %p350 = scmp.lt.s32.totalorder %s347, 31
      %s351 = scalar_select %p350, %s347, 31
      %s352 = smul.addr %s349, 32
      %s353 = sadd.s32 %s351, %s352
      %s354 = smul.addr %s353, 8
      %s355 = scalar_lea.vmem %s0, %s354
      %s356 = smul.u32 32, %s24
      %p357 = scmp.lt.s32.totalorder %s23, 1
      %s358 = scalar_select %p357, %s23, 1
      %s359 = scalar_lea.vmem %s1, %s358
      %p360 = scmp.lt.s32.totalorder %s23, 1
      %s361 = scalar_select %p360, %s23, 1
      %s362 = scalar_lea.vmem %s2, %s361
      %s363 = smul.u32 32, %s24
      %p364 = scmp.lt.s32.totalorder %s23, 1
      %s365 = scalar_select %p364, %s23, 1
      %p366 = scmp.lt.s32.totalorder %s363, 31
      %s367 = scalar_select %p366, %s363, 31
      %s368 = smul.addr %s365, 32
      %s369 = sadd.s32 %s367, %s368
      %s370 = smul.addr %s369, 4
      %s371 = scalar_lea.vmem %s5, %s370
      %s372 = smul.u32 32, %s24
      %s373 = smul.u32 32, %s24
      %p374 = scmp.lt.s32.totalorder %s23, 1
      %s375 = scalar_select %p374, %s23, 1
      %p376 = scmp.lt.s32.totalorder %s373, 31
      %s377 = scalar_select %p376, %s373, 31
      %s378 = smul.addr %s375, 32
      %s379 = sadd.s32 %s377, %s378
      %s380 = smul.addr %s379, 4
      %s381 = scalar_lea.vmem %s6, %s380
      %s382 = smul.u32 32, %s24
      %s383 = smul.u32 32, %s24
      %p384 = scmp.lt.s32.totalorder %s23, 1
      %s385 = scalar_select %p384, %s23, 1
      %p386 = scmp.lt.s32.totalorder %s383, 31
      %s387 = scalar_select %p386, %s383, 31
      %s388 = smul.addr %s385, 32
      %s389 = sadd.s32 %s387, %s388
      %s390 = smul.addr %s389, 4
      %s391 = scalar_lea.vmem %s7, %s390
      %s392 = smul.u32 32, %s24
      %v394 = vld [vmem:[%s355] sm:$0xff]
      %v395 = vld [vmem:[%s355 + $0x8] sm:$0xff]
      %v396 = vld [vmem:[%s355 + $0x10] sm:$0xff]
      %v397 = vld [vmem:[%s355 + $0x18] sm:$0xff]
      %v398 = vld [vmem:[%s355 + $0x20] sm:$0xff]
      %v399 = vld [vmem:[%s355 + $0x28] sm:$0xff]
      %v400 = vld [vmem:[%s355 + $0x30] sm:$0xff]
      %v401 = vld [vmem:[%s355 + $0x38] sm:$0xff]
      %v402 = vld [vmem:[%s355 + $0x40] sm:$0xff]
      %v403 = vld [vmem:[%s355 + $0x48] sm:$0xff]
      %v404 = vld [vmem:[%s355 + $0x50] sm:$0xff]
      %v405 = vld [vmem:[%s355 + $0x58] sm:$0xff]
      %v406 = vld [vmem:[%s355 + $0x60] sm:$0xff]
      %v407 = vld [vmem:[%s355 + $0x68] sm:$0xff]
      %v408 = vld [vmem:[%s355 + $0x70] sm:$0xff]
      %v409 = vld [vmem:[%s355 + $0x78] sm:$0xff]
      %v410 = vld [vmem:[%s355 + $0x80] sm:$0xff]
      %v411 = vld [vmem:[%s355 + $0x88] sm:$0xff]
      %v412 = vld [vmem:[%s355 + $0x90] sm:$0xff]
      %v413 = vld [vmem:[%s355 + $0x98] sm:$0xff]
      %v414 = vld [vmem:[%s355 + $0xa0] sm:$0xff]
      %v415 = vld [vmem:[%s355 + $0xa8] sm:$0xff]
      %v416 = vld [vmem:[%s355 + $0xb0] sm:$0xff]
      %v417 = vld [vmem:[%s355 + $0xb8] sm:$0xff]
      %v418 = vld [vmem:[%s355 + $0xc0] sm:$0xff]
      %v419 = vld [vmem:[%s355 + $0xc8] sm:$0xff]
      %v420 = vld [vmem:[%s355 + $0xd0] sm:$0xff]
      %v421 = vld [vmem:[%s355 + $0xd8] sm:$0xff]
      %v422 = vld [vmem:[%s355 + $0xe0] sm:$0xff]
      %v423 = vld [vmem:[%s355 + $0xe8] sm:$0xff]
      %v424 = vld [vmem:[%s355 + $0xf0] sm:$0xff]
      %v425 = vld [vmem:[%s355 + $0xf8] sm:$0xff]
      %v426 = vld [vmem:[%s359] sm:$0x1]
      %v428 = vlaneseq
      %v429 = vshrl.u32 %v428, 7
      %v430 = vsub.s32 0, %v429
      %v431 = vrot.slane %v426, %v430
      %v433 = vmul.f32 %v394, %v431
      %v434 = vmul.f32 %v395, %v431
      %v435 = vmul.f32 %v396, %v431
      %v436 = vmul.f32 %v397, %v431
      %v437 = vmul.f32 %v398, %v431
      %v438 = vmul.f32 %v399, %v431
      %v439 = vmul.f32 %v400, %v431
      %v440 = vmul.f32 %v401, %v431
      %v441 = vmul.f32 %v402, %v431
      %v442 = vmul.f32 %v403, %v431
      %v443 = vmul.f32 %v404, %v431
      %v444 = vmul.f32 %v405, %v431
      %v445 = vmul.f32 %v406, %v431
      %v446 = vmul.f32 %v407, %v431
      %v447 = vmul.f32 %v408, %v431
      %v448 = vmul.f32 %v409, %v431
      %v449 = vmul.f32 %v410, %v431
      %v450 = vmul.f32 %v411, %v431
      %v451 = vmul.f32 %v412, %v431
      %v452 = vmul.f32 %v413, %v431
      %v453 = vmul.f32 %v414, %v431
      %v454 = vmul.f32 %v415, %v431
      %v455 = vmul.f32 %v416, %v431
      %v456 = vmul.f32 %v417, %v431
      %v457 = vmul.f32 %v418, %v431
      %v458 = vmul.f32 %v419, %v431
      %v459 = vmul.f32 %v420, %v431
      %v460 = vmul.f32 %v421, %v431
      %v461 = vmul.f32 %v422, %v431
      %v462 = vmul.f32 %v423, %v431
      %v463 = vmul.f32 %v424, %v431
      %v464 = vmul.f32 %v425, %v431
      %v465 = vld [vmem:[%s362] sm:$0x1]
      %v467 = vlaneseq
      %v468 = vshrl.u32 %v467, 7
      %v469 = vsub.s32 0, %v468
      %v470 = vrot.slane %v465, %v469
      %v472 = vadd.f32 %v433, %v470
      %v473 = vadd.f32 %v434, %v470
      %v474 = vadd.f32 %v435, %v470
      %v475 = vadd.f32 %v436, %v470
      %v476 = vadd.f32 %v437, %v470
      %v477 = vadd.f32 %v438, %v470
      %v478 = vadd.f32 %v439, %v470
      %v479 = vadd.f32 %v440, %v470
      %v480 = vadd.f32 %v441, %v470
      %v481 = vadd.f32 %v442, %v470
      %v482 = vadd.f32 %v443, %v470
      %v483 = vadd.f32 %v444, %v470
      %v484 = vadd.f32 %v445, %v470
      %v485 = vadd.f32 %v446, %v470
      %v486 = vadd.f32 %v447, %v470
      %v487 = vadd.f32 %v448, %v470
      %v488 = vadd.f32 %v449, %v470
      %v489 = vadd.f32 %v450, %v470
      %v490 = vadd.f32 %v451, %v470
      %v491 = vadd.f32 %v452, %v470
      %v492 = vadd.f32 %v453, %v470
      %v493 = vadd.f32 %v454, %v470
      %v494 = vadd.f32 %v455, %v470
      %v495 = vadd.f32 %v456, %v470
      %v496 = vadd.f32 %v457, %v470
      %v497 = vadd.f32 %v458, %v470
      %v498 = vadd.f32 %v459, %v470
      %v499 = vadd.f32 %v460, %v470
      %v500 = vadd.f32 %v461, %v470
      %v501 = vadd.f32 %v462, %v470
      %v502 = vadd.f32 %v463, %v470
      %v503 = vadd.f32 %v464, %v470
      %v504 = vpack.c.bf16 %v473, %v472
      %v505 = vpack.c.bf16 %v475, %v474
      %v506 = vpack.c.bf16 %v477, %v476
      %v507 = vpack.c.bf16 %v479, %v478
      %v508 = vpack.c.bf16 %v481, %v480
      %v509 = vpack.c.bf16 %v483, %v482
      %v510 = vpack.c.bf16 %v485, %v484
      %v511 = vpack.c.bf16 %v487, %v486
      %v512 = vpack.c.bf16 %v489, %v488
      %v513 = vpack.c.bf16 %v491, %v490
      %v514 = vpack.c.bf16 %v493, %v492
      %v515 = vpack.c.bf16 %v495, %v494
      %v516 = vpack.c.bf16 %v497, %v496
      %v517 = vpack.c.bf16 %v499, %v498
      %v518 = vpack.c.bf16 %v501, %v500
      %v519 = vpack.c.bf16 %v503, %v502
      %v520 = vld [vmem:[%s3] sm:$0xff]
      %v521 = vld [vmem:[%s3 + $0x8] sm:$0xf]
      %v522 = vld [vmem:[%s3 + $0xc] sm:$0xff]
      %v523 = vld [vmem:[%s3 + $0x14] sm:$0xf]
      %v524 = vld [vmem:[%s3 + $0x18] sm:$0xff]
      %v525 = vld [vmem:[%s3 + $0x20] sm:$0xf]
      %v526 = vld [vmem:[%s3 + $0x24] sm:$0xff]
      %v527 = vld [vmem:[%s3 + $0x2c] sm:$0xf]
      %v528 = vld [vmem:[%s3 + $0x30] sm:$0xff]
      %v529 = vld [vmem:[%s3 + $0x38] sm:$0xf]
      %v530 = vld [vmem:[%s3 + $0x3c] sm:$0xff]
      %v531 = vld [vmem:[%s3 + $0x44] sm:$0xf]
      %v532 = vld [vmem:[%s3 + $0x48] sm:$0xff]
      %v533 = vld [vmem:[%s3 + $0x50] sm:$0xf]
      %v534 = vld [vmem:[%s3 + $0x54] sm:$0xff]
      %v535 = vld [vmem:[%s3 + $0x5c] sm:$0xf]
      %v536 = vld [vmem:[%s3 + $0x60] sm:$0xff]
      %v537 = vld [vmem:[%s3 + $0x68] sm:$0xf]
      %v538 = vld [vmem:[%s3 + $0x6c] sm:$0xff]
      %v539 = vld [vmem:[%s3 + $0x74] sm:$0xf]
      %v540 = vld [vmem:[%s3 + $0x78] sm:$0xff]
      %v541 = vld [vmem:[%s3 + $0x80] sm:$0xf]
      %v542 = vld [vmem:[%s3 + $0x84] sm:$0xff]
      %v543 = vld [vmem:[%s3 + $0x8c] sm:$0xf]
      %v544 = vld [vmem:[%s3 + $0x90] sm:$0xff]
      %v545 = vld [vmem:[%s3 + $0x98] sm:$0xf]
      %v546 = vld [vmem:[%s3 + $0x9c] sm:$0xff]
      %v547 = vld [vmem:[%s3 + $0xa4] sm:$0xf]
      %v548 = vld [vmem:[%s3 + $0xa8] sm:$0xff]
      %v549 = vld [vmem:[%s3 + $0xb0] sm:$0xf]
      %v550 = vld [vmem:[%s3 + $0xb4] sm:$0xff]
      %v551 = vld [vmem:[%s3 + $0xbc] sm:$0xf]
      %v552 = vld [vmem:[%s4] sm:$0x7]
      %v554 = vlaneseq
      %v555 = vshrl.u32 %v554, 7
      %v556 = vsub.s32 0, %v555
      %v557 = vrot.slane %v552, %v556
      %v558 = vlaneseq
      %v559 = vshrl.u32 %v558, 7
      %v560 = vsub.s32 1, %v559
      %v561 = vrot.slane %v552, %v560
      %v562 = vlaneseq
      %v563 = vshrl.u32 %v562, 7
      %v564 = vsub.s32 2, %v563
      %v565 = vrot.slane %v552, %v564
      %v601 = vunpack.c.l.b16 %v520
      %v602 = vunpack.c.h.b16 %v520
      %v603 = vunpack.c.l.b16 %v521
      %v604 = vunpack.c.l.b16 %v522
      %v605 = vunpack.c.h.b16 %v522
      %v606 = vunpack.c.l.b16 %v523
      %v607 = vunpack.c.l.b16 %v524
      %v608 = vunpack.c.h.b16 %v524
      %v609 = vunpack.c.l.b16 %v525
      %v610 = vunpack.c.l.b16 %v526
      %v611 = vunpack.c.h.b16 %v526
      %v612 = vunpack.c.l.b16 %v527
      %v613 = vunpack.c.l.b16 %v528
      %v614 = vunpack.c.h.b16 %v528
      %v615 = vunpack.c.l.b16 %v529
      %v616 = vunpack.c.l.b16 %v530
      %v617 = vunpack.c.h.b16 %v530
      %v618 = vunpack.c.l.b16 %v531
      %v619 = vunpack.c.l.b16 %v532
      %v620 = vunpack.c.h.b16 %v532
      %v621 = vunpack.c.l.b16 %v533
      %v622 = vunpack.c.l.b16 %v534
      %v623 = vunpack.c.h.b16 %v534
      %v624 = vunpack.c.l.b16 %v535
      %v625 = vunpack.c.l.b16 %v536
      %v626 = vunpack.c.h.b16 %v536
      %v627 = vunpack.c.l.b16 %v537
      %v628 = vunpack.c.l.b16 %v538
      %v629 = vunpack.c.h.b16 %v538
      %v630 = vunpack.c.l.b16 %v539
      %v631 = vunpack.c.l.b16 %v540
      %v632 = vunpack.c.h.b16 %v540
      %v633 = vunpack.c.l.b16 %v541
      %v634 = vunpack.c.l.b16 %v542
      %v635 = vunpack.c.h.b16 %v542
      %v636 = vunpack.c.l.b16 %v543
      %v637 = vunpack.c.l.b16 %v544
      %v638 = vunpack.c.h.b16 %v544
      %v639 = vunpack.c.l.b16 %v545
      %v640 = vunpack.c.l.b16 %v546
      %v641 = vunpack.c.h.b16 %v546
      %v642 = vunpack.c.l.b16 %v547
      %v643 = vunpack.c.l.b16 %v548
      %v644 = vunpack.c.h.b16 %v548
      %v645 = vunpack.c.l.b16 %v549
      %v646 = vunpack.c.l.b16 %v550
      %v647 = vunpack.c.h.b16 %v550
      %v648 = vunpack.c.l.b16 %v551
      %v649 = vpack.c.b16 %v604, %v601
      %v650 = vpack.c.b16 %v605, %v602
      %v651 = vpack.c.b16 %v606, %v603
      %v652 = vpack.c.b16 %v610, %v607
      %v653 = vpack.c.b16 %v611, %v608
      %v654 = vpack.c.b16 %v612, %v609
      %v655 = vpack.c.b16 %v616, %v613
      %v656 = vpack.c.b16 %v617, %v614
      %v657 = vpack.c.b16 %v618, %v615
      %v658 = vpack.c.b16 %v622, %v619
      %v659 = vpack.c.b16 %v623, %v620
      %v660 = vpack.c.b16 %v624, %v621
      %v661 = vpack.c.b16 %v628, %v625
      %v662 = vpack.c.b16 %v629, %v626
      %v663 = vpack.c.b16 %v630, %v627
      %v664 = vpack.c.b16 %v634, %v631
      %v665 = vpack.c.b16 %v635, %v632
      %v666 = vpack.c.b16 %v636, %v633
      %v667 = vpack.c.b16 %v640, %v637
      %v668 = vpack.c.b16 %v641, %v638
      %v669 = vpack.c.b16 %v642, %v639
      %v670 = vpack.c.b16 %v646, %v643
      %v671 = vpack.c.b16 %v647, %v644
      %v672 = vpack.c.b16 %v648, %v645
      %697 = vmatprep.subr.bf16.mxu0 %v650
      %698 = vmatpush1.bf16.msra.mxu0 %v649
      %699 = vmatprep.subr.bf16.mxu0 %v653
      %700 = vmatpush1.bf16.msra.mxu0 %v652
      %701 = vmatprep.subr.bf16.mxu0 %v656
      %702 = vmatpush1.bf16.msra.mxu0 %v655
      %703 = vmatprep.subr.bf16.mxu0 %v659
      %704 = vmatpush1.bf16.msra.mxu0 %v658
      %705 = vmatprep.subr.bf16.mxu0 %v662
      %706 = vmatpush1.bf16.msra.mxu0 %v661
      %707 = vmatprep.subr.bf16.mxu0 %v665
      %708 = vmatpush1.bf16.msra.mxu0 %v664
      %709 = vmatprep.subr.bf16.mxu0 %v668
      %710 = vmatpush1.bf16.msra.mxu0 %v667
      %711 = vmatprep.subr.bf16.mxu0 %v671
      %712 = vmatpush1.bf16.msra.mxu0 %v670
      %713 = vmatprep.subr.bf16.mxu0 0
      %714 = vmatpush1.bf16.msra.mxu0 0
      %715 = vmatprep.subr.bf16.mxu0 0
      %716 = vmatpush1.bf16.msra.mxu0 0
      %717 = vmatprep.subr.bf16.mxu0 0
      %718 = vmatpush1.bf16.msra.mxu0 0
      %719 = vmatprep.subr.bf16.mxu0 0
      %720 = vmatpush1.bf16.msra.mxu0 0
      %721 = vmatprep.subr.bf16.mxu0 0
      %722 = vmatpush1.bf16.msra.mxu0 0
      %723 = vmatprep.subr.bf16.mxu0 0
      %724 = vmatpush1.bf16.msra.mxu0 0
      %725 = vmatprep.subr.bf16.mxu0 0
      %726 = vmatpush1.bf16.msra.mxu0 0
      %727 = vmatprep.subr.bf16.mxu0 0
      %728 = vmatpush1.bf16.msra.mxu0 0
      %729 = vmatprep.mubr.bf16.mxu0 0
      %730 = vmatmul.mubr.bf16.gmra.mrb[0].mxu0 %v504
      %v731 = vpop.f32.mrb[0].mxu0
      %v732 = vadd.f32 %v557, %v731
      %v733 = vpop.f32.mrb[0].mxu0
      %v734 = vadd.f32 %v561, %v733
      %v735 = vpop.f32.mrb[0].mxu0
      %v736 = vadd.f32 %v557, %v735
      %v737 = vpop.f32.mrb[0].mxu0
      %v738 = vadd.f32 %v561, %v737
      %739 = vmatprep.mubr.bf16.mxu0 0
      %740 = vmatmul.mubr.bf16.gmra.mrb[0].mxu0 %v505
      %v741 = vpop.f32.mrb[0].mxu0
      %v742 = vadd.f32 %v557, %v741
      %v743 = vpop.f32.mrb[0].mxu0
      %v744 = vadd.f32 %v561, %v743
      %v745 = vpop.f32.mrb[0].mxu0
      %v746 = vadd.f32 %v557, %v745
      %v747 = vpop.f32.mrb[0].mxu0
      %v748 = vadd.f32 %v561, %v747
      %749 = vmatprep.mubr.bf16.mxu0 0
      %750 = vmatmul.mubr.bf16.gmra.mrb[0].mxu0 %v506
      %v751 = vpop.f32.mrb[0].mxu0
      %v752 = vadd.f32 %v557, %v751
      %v753 = vpop.f32.mrb[0].mxu0
      %v754 = vadd.f32 %v561, %v753
      %v755 = vpop.f32.mrb[0].mxu0
      %v756 = vadd.f32 %v557, %v755
      %v757 = vpop.f32.mrb[0].mxu0
      %v758 = vadd.f32 %v561, %v757
      %759 = vmatprep.mubr.bf16.mxu0 0
      %760 = vmatmul.mubr.bf16.gmra.mrb[0].mxu0 %v507
      %v761 = vpop.f32.mrb[0].mxu0
      %v762 = vadd.f32 %v557, %v761
      %v763 = vpop.f32.mrb[0].mxu0
      %v764 = vadd.f32 %v561, %v763
      %v765 = vpop.f32.mrb[0].mxu0
      %v766 = vadd.f32 %v557, %v765
      %v767 = vpop.f32.mrb[0].mxu0
      %v768 = vadd.f32 %v561, %v767
      %769 = vmatprep.mubr.bf16.mxu0 0
      %770 = vmatmul.mubr.bf16.gmra.mrb[0].mxu0 %v508
      %v771 = vpop.f32.mrb[0].mxu0
      %v772 = vadd.f32 %v557, %v771
      %v773 = vpop.f32.mrb[0].mxu0
      %v774 = vadd.f32 %v561, %v773
      %v775 = vpop.f32.mrb[0].mxu0
      %v776 = vadd.f32 %v557, %v775
      %v777 = vpop.f32.mrb[0].mxu0
      %v778 = vadd.f32 %v561, %v777
      %779 = vmatprep.mubr.bf16.mxu0 0
      %780 = vmatmul.mubr.bf16.gmra.mrb[0].mxu0 %v509
      %v781 = vpop.f32.mrb[0].mxu0
      %v782 = vadd.f32 %v557, %v781
      %v783 = vpop.f32.mrb[0].mxu0
      %v784 = vadd.f32 %v561, %v783
      %v785 = vpop.f32.mrb[0].mxu0
      %v786 = vadd.f32 %v557, %v785
      %v787 = vpop.f32.mrb[0].mxu0
      %v788 = vadd.f32 %v561, %v787
      %789 = vmatprep.mubr.bf16.mxu0 0
      %790 = vmatmul.mubr.bf16.gmra.mrb[0].mxu0 %v510
      %v791 = vpop.f32.mrb[0].mxu0
      %v792 = vadd.f32 %v557, %v791
      %v793 = vpop.f32.mrb[0].mxu0
      %v794 = vadd.f32 %v561, %v793
      %v795 = vpop.f32.mrb[0].mxu0
      %v796 = vadd.f32 %v557, %v795
      %v797 = vpop.f32.mrb[0].mxu0
      %v798 = vadd.f32 %v561, %v797
      %799 = vmatprep.mubr.bf16.mxu0 0
      %800 = vmatmul.mubr.bf16.gmra.mrb[0].mxu0 %v511
      %v801 = vpop.f32.mrb[0].mxu0
      %v802 = vadd.f32 %v557, %v801
      %v803 = vpop.f32.mrb[0].mxu0
      %v804 = vadd.f32 %v561, %v803
      %v805 = vpop.f32.mrb[0].mxu0
      %v806 = vadd.f32 %v557, %v805
      %v807 = vpop.f32.mrb[0].mxu0
      %v808 = vadd.f32 %v561, %v807
      %809 = vmatprep.mubr.bf16.mxu0 0
      %810 = vmatmul.mubr.bf16.gmra.mrb[0].mxu0 %v512
      %v811 = vpop.f32.mrb[0].mxu0
      %v812 = vadd.f32 %v557, %v811
      %v813 = vpop.f32.mrb[0].mxu0
      %v814 = vadd.f32 %v561, %v813
      %v815 = vpop.f32.mrb[0].mxu0
      %v816 = vadd.f32 %v557, %v815
      %v817 = vpop.f32.mrb[0].mxu0
      %v818 = vadd.f32 %v561, %v817
      %819 = vmatprep.mubr.bf16.mxu0 0
      %820 = vmatmul.mubr.bf16.gmra.mrb[0].mxu0 %v513
      %v821 = vpop.f32.mrb[0].mxu0
      %v822 = vadd.f32 %v557, %v821
      %v823 = vpop.f32.mrb[0].mxu0
      %v824 = vadd.f32 %v561, %v823
      %v825 = vpop.f32.mrb[0].mxu0
      %v826 = vadd.f32 %v557, %v825
      %v827 = vpop.f32.mrb[0].mxu0
      %v828 = vadd.f32 %v561, %v827
      %829 = vmatprep.mubr.bf16.mxu0 0
      %830 = vmatmul.mubr.bf16.gmra.mrb[0].mxu0 %v514
      %v831 = vpop.f32.mrb[0].mxu0
      %v832 = vadd.f32 %v557, %v831
      %v833 = vpop.f32.mrb[0].mxu0
      %v834 = vadd.f32 %v561, %v833
      %v835 = vpop.f32.mrb[0].mxu0
      %v836 = vadd.f32 %v557, %v835
      %v837 = vpop.f32.mrb[0].mxu0
      %v838 = vadd.f32 %v561, %v837
      %839 = vmatprep.mubr.bf16.mxu0 0
      %840 = vmatmul.mubr.bf16.gmra.mrb[0].mxu0 %v515
      %v841 = vpop.f32.mrb[0].mxu0
      %v842 = vadd.f32 %v557, %v841
      %v843 = vpop.f32.mrb[0].mxu0
      %v844 = vadd.f32 %v561, %v843
      %v845 = vpop.f32.mrb[0].mxu0
      %v846 = vadd.f32 %v557, %v845
      %v847 = vpop.f32.mrb[0].mxu0
      %v848 = vadd.f32 %v561, %v847
      %849 = vmatprep.mubr.bf16.mxu0 0
      %850 = vmatmul.mubr.bf16.gmra.mrb[0].mxu0 %v516
      %v851 = vpop.f32.mrb[0].mxu0
      %v852 = vadd.f32 %v557, %v851
      %v853 = vpop.f32.mrb[0].mxu0
      %v854 = vadd.f32 %v561, %v853
      %v855 = vpop.f32.mrb[0].mxu0
      %v856 = vadd.f32 %v557, %v855
      %v857 = vpop.f32.mrb[0].mxu0
      %v858 = vadd.f32 %v561, %v857
      %859 = vmatprep.mubr.bf16.mxu0 0
      %860 = vmatmul.mubr.bf16.gmra.mrb[0].mxu0 %v517
      %v861 = vpop.f32.mrb[0].mxu0
      %v862 = vadd.f32 %v557, %v861
      %v863 = vpop.f32.mrb[0].mxu0
      %v864 = vadd.f32 %v561, %v863
      %v865 = vpop.f32.mrb[0].mxu0
      %v866 = vadd.f32 %v557, %v865
      %v867 = vpop.f32.mrb[0].mxu0
      %v868 = vadd.f32 %v561, %v867
      %869 = vmatprep.mubr.bf16.mxu0 0
      %870 = vmatmul.mubr.bf16.gmra.mrb[0].mxu0 %v518
      %v871 = vpop.f32.mrb[0].mxu0
      %v872 = vadd.f32 %v557, %v871
      %v873 = vpop.f32.mrb[0].mxu0
      %v874 = vadd.f32 %v561, %v873
      %v875 = vpop.f32.mrb[0].mxu0
      %v876 = vadd.f32 %v557, %v875
      %v877 = vpop.f32.mrb[0].mxu0
      %v878 = vadd.f32 %v561, %v877
      %879 = vmatprep.mubr.bf16.mxu0 0
      %880 = vmatmul.mubr.bf16.gmra.mrb[0].mxu0 %v519
      %v881 = vpop.f32.mrb[0].mxu0
      %v882 = vadd.f32 %v557, %v881
      %v883 = vpop.f32.mrb[0].mxu0
      %v884 = vadd.f32 %v561, %v883
      %v885 = vpop.f32.mrb[0].mxu0
      %v886 = vadd.f32 %v557, %v885
      %v887 = vpop.f32.mrb[0].mxu0
      %v888 = vadd.f32 %v561, %v887
      %889 = vdwg.mxu0
      %890 = vmatprep.subr.bf16.mxu0 0
      %891 = vmatpush1.bf16.msra.mxu0 %v651
      %892 = vmatprep.subr.bf16.mxu0 0
      %893 = vmatpush1.bf16.msra.mxu0 %v654
      %894 = vmatprep.subr.bf16.mxu0 0
      %895 = vmatpush1.bf16.msra.mxu0 %v657
      %896 = vmatprep.subr.bf16.mxu0 0
      %897 = vmatpush1.bf16.msra.mxu0 %v660
      %898 = vmatprep.subr.bf16.mxu0 0
      %899 = vmatpush1.bf16.msra.mxu0 %v663
      %900 = vmatprep.subr.bf16.mxu0 0
      %901 = vmatpush1.bf16.msra.mxu0 %v666
      %902 = vmatprep.subr.bf16.mxu0 0
      %903 = vmatpush1.bf16.msra.mxu0 %v669
      %904 = vmatprep.subr.bf16.mxu0 0
      %905 = vmatpush1.bf16.msra.mxu0 %v672
      %906 = vmatprep.subr.bf16.mxu0 0
      %907 = vmatpush1.bf16.msra.mxu0 0
      %908 = vmatprep.subr.bf16.mxu0 0
      %909 = vmatpush1.bf16.msra.mxu0 0
      %910 = vmatprep.subr.bf16.mxu0 0
      %911 = vmatpush1.bf16.msra.mxu0 0
      %912 = vmatprep.subr.bf16.mxu0 0
      %913 = vmatpush1.bf16.msra.mxu0 0
      %914 = vmatprep.subr.bf16.mxu0 0
      %915 = vmatpush1.bf16.msra.mxu0 0
      %916 = vmatprep.subr.bf16.mxu0 0
      %917 = vmatpush1.bf16.msra.mxu0 0
      %918 = vmatprep.subr.bf16.mxu0 0
      %919 = vmatpush1.bf16.msra.mxu0 0
      %920 = vmatprep.subr.bf16.mxu0 0
      %921 = vmatpush1.bf16.msra.mxu0 0
      %922 = vmatprep.mubr.bf16.mxu0 0
      %923 = vmatmul.mubr.bf16.gmra.mrb[0].mxu0 %v504
      %v924 = vpop.f32.mrb[0].mxu0
      %v925 = vadd.f32 %v565, %v924
      %v926 = vpop.f32.mrb[0].mxu0
      %v927 = vpop.f32.mrb[0].mxu0
      %v928 = vadd.f32 %v565, %v927
      %v929 = vpop.f32.mrb[0].mxu0
      %930 = vmatprep.mubr.bf16.mxu0 0
      %931 = vmatmul.mubr.bf16.gmra.mrb[0].mxu0 %v505
      %v932 = vpop.f32.mrb[0].mxu0
      %v933 = vadd.f32 %v565, %v932
      %v934 = vpop.f32.mrb[0].mxu0
      %v935 = vpop.f32.mrb[0].mxu0
      %v936 = vadd.f32 %v565, %v935
      %v937 = vpop.f32.mrb[0].mxu0
      %938 = vmatprep.mubr.bf16.mxu0 0
      %939 = vmatmul.mubr.bf16.gmra.mrb[0].mxu0 %v506
      %v940 = vpop.f32.mrb[0].mxu0
      %v941 = vadd.f32 %v565, %v940
      %v942 = vpop.f32.mrb[0].mxu0
      %v943 = vpop.f32.mrb[0].mxu0
      %v944 = vadd.f32 %v565, %v943
      %v945 = vpop.f32.mrb[0].mxu0
      %946 = vmatprep.mubr.bf16.mxu0 0
      %947 = vmatmul.mubr.bf16.gmra.mrb[0].mxu0 %v507
      %v948 = vpop.f32.mrb[0].mxu0
      %v949 = vadd.f32 %v565, %v948
      %v950 = vpop.f32.mrb[0].mxu0
      %v951 = vpop.f32.mrb[0].mxu0
      %v952 = vadd.f32 %v565, %v951
      %v953 = vpop.f32.mrb[0].mxu0
      %954 = vmatprep.mubr.bf16.mxu0 0
      %955 = vmatmul.mubr.bf16.gmra.mrb[0].mxu0 %v508
      %v956 = vpop.f32.mrb[0].mxu0
      %v957 = vadd.f32 %v565, %v956
      %v958 = vpop.f32.mrb[0].mxu0
      %v959 = vpop.f32.mrb[0].mxu0
      %v960 = vadd.f32 %v565, %v959
      %v961 = vpop.f32.mrb[0].mxu0
      %962 = vmatprep.mubr.bf16.mxu0 0
      %963 = vmatmul.mubr.bf16.gmra.mrb[0].mxu0 %v509
      %v964 = vpop.f32.mrb[0].mxu0
      %v965 = vadd.f32 %v565, %v964
      %v966 = vpop.f32.mrb[0].mxu0
      %v967 = vpop.f32.mrb[0].mxu0
      %v968 = vadd.f32 %v565, %v967
      %v969 = vpop.f32.mrb[0].mxu0
      %970 = vmatprep.mubr.bf16.mxu0 0
      %971 = vmatmul.mubr.bf16.gmra.mrb[0].mxu0 %v510
      %v972 = vpop.f32.mrb[0].mxu0
      %v973 = vadd.f32 %v565, %v972
      %v974 = vpop.f32.mrb[0].mxu0
      %v975 = vpop.f32.mrb[0].mxu0
      %v976 = vadd.f32 %v565, %v975
      %v977 = vpop.f32.mrb[0].mxu0
      %978 = vmatprep.mubr.bf16.mxu0 0
      %979 = vmatmul.mubr.bf16.gmra.mrb[0].mxu0 %v511
      %v980 = vpop.f32.mrb[0].mxu0
      %v981 = vadd.f32 %v565, %v980
      %v982 = vpop.f32.mrb[0].mxu0
      %v983 = vpop.f32.mrb[0].mxu0
      %v984 = vadd.f32 %v565, %v983
      %v985 = vpop.f32.mrb[0].mxu0
      %986 = vmatprep.mubr.bf16.mxu0 0
      %987 = vmatmul.mubr.bf16.gmra.mrb[0].mxu0 %v512
      %v988 = vpop.f32.mrb[0].mxu0
      %v989 = vadd.f32 %v565, %v988
      %v990 = vpop.f32.mrb[0].mxu0
      %v991 = vpop.f32.mrb[0].mxu0
      %v992 = vadd.f32 %v565, %v991
      %v993 = vpop.f32.mrb[0].mxu0
      %994 = vmatprep.mubr.bf16.mxu0 0
      %995 = vmatmul.mubr.bf16.gmra.mrb[0].mxu0 %v513
      %v996 = vpop.f32.mrb[0].mxu0
      %v997 = vadd.f32 %v565, %v996
      %v998 = vpop.f32.mrb[0].mxu0
      %v999 = vpop.f32.mrb[0].mxu0
      %v1000 = vadd.f32 %v565, %v999
      %v1001 = vpop.f32.mrb[0].mxu0
      %1002 = vmatprep.mubr.bf16.mxu0 0
      %1003 = vmatmul.mubr.bf16.gmra.mrb[0].mxu0 %v514
      %v1004 = vpop.f32.mrb[0].mxu0
      %v1005 = vadd.f32 %v565, %v1004
      %v1006 = vpop.f32.mrb[0].mxu0
      %v1007 = vpop.f32.mrb[0].mxu0
      %v1008 = vadd.f32 %v565, %v1007
      %v1009 = vpop.f32.mrb[0].mxu0
      %1010 = vmatprep.mubr.bf16.mxu0 0
      %1011 = vmatmul.mubr.bf16.gmra.mrb[0].mxu0 %v515
      %v1012 = vpop.f32.mrb[0].mxu0
      %v1013 = vadd.f32 %v565, %v1012
      %v1014 = vpop.f32.mrb[0].mxu0
      %v1015 = vpop.f32.mrb[0].mxu0
      %v1016 = vadd.f32 %v565, %v1015
      %v1017 = vpop.f32.mrb[0].mxu0
      %1018 = vmatprep.mubr.bf16.mxu0 0
      %1019 = vmatmul.mubr.bf16.gmra.mrb[0].mxu0 %v516
      %v1020 = vpop.f32.mrb[0].mxu0
      %v1021 = vadd.f32 %v565, %v1020
      %v1022 = vpop.f32.mrb[0].mxu0
      %v1023 = vpop.f32.mrb[0].mxu0
      %v1024 = vadd.f32 %v565, %v1023
      %v1025 = vpop.f32.mrb[0].mxu0
      %1026 = vmatprep.mubr.bf16.mxu0 0
      %1027 = vmatmul.mubr.bf16.gmra.mrb[0].mxu0 %v517
      %v1028 = vpop.f32.mrb[0].mxu0
      %v1029 = vadd.f32 %v565, %v1028
      %v1030 = vpop.f32.mrb[0].mxu0
      %v1031 = vpop.f32.mrb[0].mxu0
      %v1032 = vadd.f32 %v565, %v1031
      %v1033 = vpop.f32.mrb[0].mxu0
      %1034 = vmatprep.mubr.bf16.mxu0 0
      %1035 = vmatmul.mubr.bf16.gmra.mrb[0].mxu0 %v518
      %v1036 = vpop.f32.mrb[0].mxu0
      %v1037 = vadd.f32 %v565, %v1036
      %v1038 = vpop.f32.mrb[0].mxu0
      %v1039 = vpop.f32.mrb[0].mxu0
      %v1040 = vadd.f32 %v565, %v1039
      %v1041 = vpop.f32.mrb[0].mxu0
      %1042 = vmatprep.mubr.bf16.mxu0 0
      %1043 = vmatmul.mubr.bf16.gmra.mrb[0].mxu0 %v519
      %v1044 = vpop.f32.mrb[0].mxu0
      %v1045 = vadd.f32 %v565, %v1044
      %v1046 = vpop.f32.mrb[0].mxu0
      %v1047 = vpop.f32.mrb[0].mxu0
      %v1048 = vadd.f32 %v565, %v1047
      %v1049 = vpop.f32.mrb[0].mxu0
      %1050 = vdwg.mxu0
      %v1051 = vpack.c.bf16 %v736, %v732
      %v1052 = vpack.c.bf16 %v746, %v742
      %v1053 = vpack.c.bf16 %v756, %v752
      %v1054 = vpack.c.bf16 %v766, %v762
      %v1055 = vpack.c.bf16 %v776, %v772
      %v1056 = vpack.c.bf16 %v786, %v782
      %v1057 = vpack.c.bf16 %v796, %v792
      %v1058 = vpack.c.bf16 %v806, %v802
      %v1059 = vpack.c.bf16 %v816, %v812
      %v1060 = vpack.c.bf16 %v826, %v822
      %v1061 = vpack.c.bf16 %v836, %v832
      %v1062 = vpack.c.bf16 %v846, %v842
      %v1063 = vpack.c.bf16 %v856, %v852
      %v1064 = vpack.c.bf16 %v866, %v862
      %v1065 = vpack.c.bf16 %v876, %v872
      %v1066 = vpack.c.bf16 %v886, %v882
      %v1083 = vunpack.c.l.b16 %v1051
      %v1084 = vunpack.c.h.b16 %v1051
      %v1085 = vunpack.c.l.b16 %v1052
      %v1086 = vunpack.c.h.b16 %v1052
      %v1087 = vunpack.c.l.b16 %v1053
      %v1088 = vunpack.c.h.b16 %v1053
      %v1089 = vunpack.c.l.b16 %v1054
      %v1090 = vunpack.c.h.b16 %v1054
      %v1091 = vunpack.c.l.b16 %v1055
      %v1092 = vunpack.c.h.b16 %v1055
      %v1093 = vunpack.c.l.b16 %v1056
      %v1094 = vunpack.c.h.b16 %v1056
      %v1095 = vunpack.c.l.b16 %v1057
      %v1096 = vunpack.c.h.b16 %v1057
      %v1097 = vunpack.c.l.b16 %v1058
      %v1098 = vunpack.c.h.b16 %v1058
      %v1099 = vunpack.c.l.b16 %v1059
      %v1100 = vunpack.c.h.b16 %v1059
      %v1101 = vunpack.c.l.b16 %v1060
      %v1102 = vunpack.c.h.b16 %v1060
      %v1103 = vunpack.c.l.b16 %v1061
      %v1104 = vunpack.c.h.b16 %v1061
      %v1105 = vunpack.c.l.b16 %v1062
      %v1106 = vunpack.c.h.b16 %v1062
      %v1107 = vunpack.c.l.b16 %v1063
      %v1108 = vunpack.c.h.b16 %v1063
      %v1109 = vunpack.c.l.b16 %v1064
      %v1110 = vunpack.c.h.b16 %v1064
      %v1111 = vunpack.c.l.b16 %v1065
      %v1112 = vunpack.c.h.b16 %v1065
      %v1113 = vunpack.c.l.b16 %v1066
      %v1114 = vunpack.c.h.b16 %v1066
      %v1115 = vpack.c.b16 %v1083, %v1083
      %v1116 = vpack.c.b16 %v1084, %v1084
      %v1117 = vpack.c.b16 %v1085, %v1085
      %v1118 = vpack.c.b16 %v1086, %v1086
      %v1119 = vpack.c.b16 %v1087, %v1087
      %v1120 = vpack.c.b16 %v1088, %v1088
      %v1121 = vpack.c.b16 %v1089, %v1089
      %v1122 = vpack.c.b16 %v1090, %v1090
      %v1123 = vpack.c.b16 %v1091, %v1091
      %v1124 = vpack.c.b16 %v1092, %v1092
      %v1125 = vpack.c.b16 %v1093, %v1093
      %v1126 = vpack.c.b16 %v1094, %v1094
      %v1127 = vpack.c.b16 %v1095, %v1095
      %v1128 = vpack.c.b16 %v1096, %v1096
      %v1129 = vpack.c.b16 %v1097, %v1097
      %v1130 = vpack.c.b16 %v1098, %v1098
      %v1131 = vpack.c.b16 %v1099, %v1099
      %v1132 = vpack.c.b16 %v1100, %v1100
      %v1133 = vpack.c.b16 %v1101, %v1101
      %v1134 = vpack.c.b16 %v1102, %v1102
      %v1135 = vpack.c.b16 %v1103, %v1103
      %v1136 = vpack.c.b16 %v1104, %v1104
      %v1137 = vpack.c.b16 %v1105, %v1105
      %v1138 = vpack.c.b16 %v1106, %v1106
      %v1139 = vpack.c.b16 %v1107, %v1107
      %v1140 = vpack.c.b16 %v1108, %v1108
      %v1141 = vpack.c.b16 %v1109, %v1109
      %v1142 = vpack.c.b16 %v1110, %v1110
      %v1143 = vpack.c.b16 %v1111, %v1111
      %v1144 = vpack.c.b16 %v1112, %v1112
      %v1145 = vpack.c.b16 %v1113, %v1113
      %v1146 = vpack.c.b16 %v1114, %v1114
      %1179 = vst [vmem:[%s371] sm:$0xf] %v1115
      %1180 = vst [vmem:[%s371 + $0x4] sm:$0xf] %v1116
      %1181 = vst [vmem:[%s371 + $0x8] sm:$0xf] %v1117
      %1182 = vst [vmem:[%s371 + $0xc] sm:$0xf] %v1118
      %1183 = vst [vmem:[%s371 + $0x10] sm:$0xf] %v1119
      %1184 = vst [vmem:[%s371 + $0x14] sm:$0xf] %v1120
      %1185 = vst [vmem:[%s371 + $0x18] sm:$0xf] %v1121
      %1186 = vst [vmem:[%s371 + $0x1c] sm:$0xf] %v1122
      %1187 = vst [vmem:[%s371 + $0x20] sm:$0xf] %v1123
      %1188 = vst [vmem:[%s371 + $0x24] sm:$0xf] %v1124
      %1189 = vst [vmem:[%s371 + $0x28] sm:$0xf] %v1125
      %1190 = vst [vmem:[%s371 + $0x2c] sm:$0xf] %v1126
      %1191 = vst [vmem:[%s371 + $0x30] sm:$0xf] %v1127
      %1192 = vst [vmem:[%s371 + $0x34] sm:$0xf] %v1128
      %1193 = vst [vmem:[%s371 + $0x38] sm:$0xf] %v1129
      %1194 = vst [vmem:[%s371 + $0x3c] sm:$0xf] %v1130
      %1195 = vst [vmem:[%s371 + $0x40] sm:$0xf] %v1131
      %1196 = vst [vmem:[%s371 + $0x44] sm:$0xf] %v1132
      %1197 = vst [vmem:[%s371 + $0x48] sm:$0xf] %v1133
      %1198 = vst [vmem:[%s371 + $0x4c] sm:$0xf] %v1134
      %1199 = vst [vmem:[%s371 + $0x50] sm:$0xf] %v1135
      %1200 = vst [vmem:[%s371 + $0x54] sm:$0xf] %v1136
      %1201 = vst [vmem:[%s371 + $0x58] sm:$0xf] %v1137
      %1202 = vst [vmem:[%s371 + $0x5c] sm:$0xf] %v1138
      %1203 = vst [vmem:[%s371 + $0x60] sm:$0xf] %v1139
      %1204 = vst [vmem:[%s371 + $0x64] sm:$0xf] %v1140
      %1205 = vst [vmem:[%s371 + $0x68] sm:$0xf] %v1141
      %1206 = vst [vmem:[%s371 + $0x6c] sm:$0xf] %v1142
      %1207 = vst [vmem:[%s371 + $0x70] sm:$0xf] %v1143
      %1208 = vst [vmem:[%s371 + $0x74] sm:$0xf] %v1144
      %1209 = vst [vmem:[%s371 + $0x78] sm:$0xf] %v1145
      %1210 = vst [vmem:[%s371 + $0x7c] sm:$0xf] %v1146
      %v1211 = vpack.c.bf16 %v738, %v734
      %v1212 = vpack.c.bf16 %v748, %v744
      %v1213 = vpack.c.bf16 %v758, %v754
      %v1214 = vpack.c.bf16 %v768, %v764
      %v1215 = vpack.c.bf16 %v778, %v774
      %v1216 = vpack.c.bf16 %v788, %v784
      %v1217 = vpack.c.bf16 %v798, %v794
      %v1218 = vpack.c.bf16 %v808, %v804
      %v1219 = vpack.c.bf16 %v818, %v814
      %v1220 = vpack.c.bf16 %v828, %v824
      %v1221 = vpack.c.bf16 %v838, %v834
      %v1222 = vpack.c.bf16 %v848, %v844
      %v1223 = vpack.c.bf16 %v858, %v854
      %v1224 = vpack.c.bf16 %v868, %v864
      %v1225 = vpack.c.bf16 %v878, %v874
      %v1226 = vpack.c.bf16 %v888, %v884
      %v1243 = vunpack.c.l.b16 %v1211
      %v1244 = vunpack.c.h.b16 %v1211
      %v1245 = vunpack.c.l.b16 %v1212
      %v1246 = vunpack.c.h.b16 %v1212
      %v1247 = vunpack.c.l.b16 %v1213
      %v1248 = vunpack.c.h.b16 %v1213
      %v1249 = vunpack.c.l.b16 %v1214
      %v1250 = vunpack.c.h.b16 %v1214
      %v1251 = vunpack.c.l.b16 %v1215
      %v1252 = vunpack.c.h.b16 %v1215
      %v1253 = vunpack.c.l.b16 %v1216
      %v1254 = vunpack.c.h.b16 %v1216
      %v1255 = vunpack.c.l.b16 %v1217
      %v1256 = vunpack.c.h.b16 %v1217
      %v1257 = vunpack.c.l.b16 %v1218
      %v1258 = vunpack.c.h.b16 %v1218
      %v1259 = vunpack.c.l.b16 %v1219
      %v1260 = vunpack.c.h.b16 %v1219
      %v1261 = vunpack.c.l.b16 %v1220
      %v1262 = vunpack.c.h.b16 %v1220
      %v1263 = vunpack.c.l.b16 %v1221
      %v1264 = vunpack.c.h.b16 %v1221
      %v1265 = vunpack.c.l.b16 %v1222
      %v1266 = vunpack.c.h.b16 %v1222
      %v1267 = vunpack.c.l.b16 %v1223
      %v1268 = vunpack.c.h.b16 %v1223
      %v1269 = vunpack.c.l.b16 %v1224
      %v1270 = vunpack.c.h.b16 %v1224
      %v1271 = vunpack.c.l.b16 %v1225
      %v1272 = vunpack.c.h.b16 %v1225
      %v1273 = vunpack.c.l.b16 %v1226
      %v1274 = vunpack.c.h.b16 %v1226
      %v1275 = vpack.c.b16 %v1243, %v1243
      %v1276 = vpack.c.b16 %v1244, %v1244
      %v1277 = vpack.c.b16 %v1245, %v1245
      %v1278 = vpack.c.b16 %v1246, %v1246
      %v1279 = vpack.c.b16 %v1247, %v1247
      %v1280 = vpack.c.b16 %v1248, %v1248
      %v1281 = vpack.c.b16 %v1249, %v1249
      %v1282 = vpack.c.b16 %v1250, %v1250
      %v1283 = vpack.c.b16 %v1251, %v1251
      %v1284 = vpack.c.b16 %v1252, %v1252
      %v1285 = vpack.c.b16 %v1253, %v1253
      %v1286 = vpack.c.b16 %v1254, %v1254
      %v1287 = vpack.c.b16 %v1255, %v1255
      %v1288 = vpack.c.b16 %v1256, %v1256
      %v1289 = vpack.c.b16 %v1257, %v1257
      %v1290 = vpack.c.b16 %v1258, %v1258
      %v1291 = vpack.c.b16 %v1259, %v1259
      %v1292 = vpack.c.b16 %v1260, %v1260
      %v1293 = vpack.c.b16 %v1261, %v1261
      %v1294 = vpack.c.b16 %v1262, %v1262
      %v1295 = vpack.c.b16 %v1263, %v1263
      %v1296 = vpack.c.b16 %v1264, %v1264
      %v1297 = vpack.c.b16 %v1265, %v1265
      %v1298 = vpack.c.b16 %v1266, %v1266
      %v1299 = vpack.c.b16 %v1267, %v1267
      %v1300 = vpack.c.b16 %v1268, %v1268
      %v1301 = vpack.c.b16 %v1269, %v1269
      %v1302 = vpack.c.b16 %v1270, %v1270
      %v1303 = vpack.c.b16 %v1271, %v1271
      %v1304 = vpack.c.b16 %v1272, %v1272
      %v1305 = vpack.c.b16 %v1273, %v1273
      %v1306 = vpack.c.b16 %v1274, %v1274
      %1339 = vst [vmem:[%s381] sm:$0xf] %v1275
      %1340 = vst [vmem:[%s381 + $0x4] sm:$0xf] %v1276
      %1341 = vst [vmem:[%s381 + $0x8] sm:$0xf] %v1277
      %1342 = vst [vmem:[%s381 + $0xc] sm:$0xf] %v1278
      %1343 = vst [vmem:[%s381 + $0x10] sm:$0xf] %v1279
      %1344 = vst [vmem:[%s381 + $0x14] sm:$0xf] %v1280
      %1345 = vst [vmem:[%s381 + $0x18] sm:$0xf] %v1281
      %1346 = vst [vmem:[%s381 + $0x1c] sm:$0xf] %v1282
      %1347 = vst [vmem:[%s381 + $0x20] sm:$0xf] %v1283
      %1348 = vst [vmem:[%s381 + $0x24] sm:$0xf] %v1284
      %1349 = vst [vmem:[%s381 + $0x28] sm:$0xf] %v1285
      %1350 = vst [vmem:[%s381 + $0x2c] sm:$0xf] %v1286
      %1351 = vst [vmem:[%s381 + $0x30] sm:$0xf] %v1287
      %1352 = vst [vmem:[%s381 + $0x34] sm:$0xf] %v1288
      %1353 = vst [vmem:[%s381 + $0x38] sm:$0xf] %v1289
      %1354 = vst [vmem:[%s381 + $0x3c] sm:$0xf] %v1290
      %1355 = vst [vmem:[%s381 + $0x40] sm:$0xf] %v1291
      %1356 = vst [vmem:[%s381 + $0x44] sm:$0xf] %v1292
      %1357 = vst [vmem:[%s381 + $0x48] sm:$0xf] %v1293
      %1358 = vst [vmem:[%s381 + $0x4c] sm:$0xf] %v1294
      %1359 = vst [vmem:[%s381 + $0x50] sm:$0xf] %v1295
      %1360 = vst [vmem:[%s381 + $0x54] sm:$0xf] %v1296
      %1361 = vst [vmem:[%s381 + $0x58] sm:$0xf] %v1297
      %1362 = vst [vmem:[%s381 + $0x5c] sm:$0xf] %v1298
      %1363 = vst [vmem:[%s381 + $0x60] sm:$0xf] %v1299
      %1364 = vst [vmem:[%s381 + $0x64] sm:$0xf] %v1300
      %1365 = vst [vmem:[%s381 + $0x68] sm:$0xf] %v1301
      %1366 = vst [vmem:[%s381 + $0x6c] sm:$0xf] %v1302
      %1367 = vst [vmem:[%s381 + $0x70] sm:$0xf] %v1303
      %1368 = vst [vmem:[%s381 + $0x74] sm:$0xf] %v1304
      %1369 = vst [vmem:[%s381 + $0x78] sm:$0xf] %v1305
      %1370 = vst [vmem:[%s381 + $0x7c] sm:$0xf] %v1306
      %v1371 = vpack.c.bf16 %v928, %v925
      %v1372 = vpack.c.bf16 %v936, %v933
      %v1373 = vpack.c.bf16 %v944, %v941
      %v1374 = vpack.c.bf16 %v952, %v949
      %v1375 = vpack.c.bf16 %v960, %v957
      %v1376 = vpack.c.bf16 %v968, %v965
      %v1377 = vpack.c.bf16 %v976, %v973
      %v1378 = vpack.c.bf16 %v984, %v981
      %v1379 = vpack.c.bf16 %v992, %v989
      %v1380 = vpack.c.bf16 %v1000, %v997
      %v1381 = vpack.c.bf16 %v1008, %v1005
      %v1382 = vpack.c.bf16 %v1016, %v1013
      %v1383 = vpack.c.bf16 %v1024, %v1021
      %v1384 = vpack.c.bf16 %v1032, %v1029
      %v1385 = vpack.c.bf16 %v1040, %v1037
      %v1386 = vpack.c.bf16 %v1048, %v1045
      %v1403 = vunpack.c.l.b16 %v1371
      %v1404 = vunpack.c.h.b16 %v1371
      %v1405 = vunpack.c.l.b16 %v1372
      %v1406 = vunpack.c.h.b16 %v1372
      %v1407 = vunpack.c.l.b16 %v1373
      %v1408 = vunpack.c.h.b16 %v1373
      %v1409 = vunpack.c.l.b16 %v1374
      %v1410 = vunpack.c.h.b16 %v1374
      %v1411 = vunpack.c.l.b16 %v1375
      %v1412 = vunpack.c.h.b16 %v1375
      %v1413 = vunpack.c.l.b16 %v1376
      %v1414 = vunpack.c.h.b16 %v1376
      %v1415 = vunpack.c.l.b16 %v1377
      %v1416 = vunpack.c.h.b16 %v1377
      %v1417 = vunpack.c.l.b16 %v1378
      %v1418 = vunpack.c.h.b16 %v1378
      %v1419 = vunpack.c.l.b16 %v1379
      %v1420 = vunpack.c.h.b16 %v1379
      %v1421 = vunpack.c.l.b16 %v1380
      %v1422 = vunpack.c.h.b16 %v1380
      %v1423 = vunpack.c.l.b16 %v1381
      %v1424 = vunpack.c.h.b16 %v1381
      %v1425 = vunpack.c.l.b16 %v1382
      %v1426 = vunpack.c.h.b16 %v1382
      %v1427 = vunpack.c.l.b16 %v1383
      %v1428 = vunpack.c.h.b16 %v1383
      %v1429 = vunpack.c.l.b16 %v1384
      %v1430 = vunpack.c.h.b16 %v1384
      %v1431 = vunpack.c.l.b16 %v1385
      %v1432 = vunpack.c.h.b16 %v1385
      %v1433 = vunpack.c.l.b16 %v1386
      %v1434 = vunpack.c.h.b16 %v1386
      %v1435 = vpack.c.b16 %v1403, %v1403
      %v1436 = vpack.c.b16 %v1404, %v1404
      %v1437 = vpack.c.b16 %v1405, %v1405
      %v1438 = vpack.c.b16 %v1406, %v1406
      %v1439 = vpack.c.b16 %v1407, %v1407
      %v1440 = vpack.c.b16 %v1408, %v1408
      %v1441 = vpack.c.b16 %v1409, %v1409
      %v1442 = vpack.c.b16 %v1410, %v1410
      %v1443 = vpack.c.b16 %v1411, %v1411
      %v1444 = vpack.c.b16 %v1412, %v1412
      %v1445 = vpack.c.b16 %v1413, %v1413
      %v1446 = vpack.c.b16 %v1414, %v1414
      %v1447 = vpack.c.b16 %v1415, %v1415
      %v1448 = vpack.c.b16 %v1416, %v1416
      %v1449 = vpack.c.b16 %v1417, %v1417
      %v1450 = vpack.c.b16 %v1418, %v1418
      %v1451 = vpack.c.b16 %v1419, %v1419
      %v1452 = vpack.c.b16 %v1420, %v1420
      %v1453 = vpack.c.b16 %v1421, %v1421
      %v1454 = vpack.c.b16 %v1422, %v1422
      %v1455 = vpack.c.b16 %v1423, %v1423
      %v1456 = vpack.c.b16 %v1424, %v1424
      %v1457 = vpack.c.b16 %v1425, %v1425
      %v1458 = vpack.c.b16 %v1426, %v1426
      %v1459 = vpack.c.b16 %v1427, %v1427
      %v1460 = vpack.c.b16 %v1428, %v1428
      %v1461 = vpack.c.b16 %v1429, %v1429
      %v1462 = vpack.c.b16 %v1430, %v1430
      %v1463 = vpack.c.b16 %v1431, %v1431
      %v1464 = vpack.c.b16 %v1432, %v1432
      %v1465 = vpack.c.b16 %v1433, %v1433
      %v1466 = vpack.c.b16 %v1434, %v1434
      %1499 = vst [vmem:[%s391] sm:$0xf] %v1435
      %1500 = vst [vmem:[%s391 + $0x4] sm:$0xf] %v1436
      %1501 = vst [vmem:[%s391 + $0x8] sm:$0xf] %v1437
      %1502 = vst [vmem:[%s391 + $0xc] sm:$0xf] %v1438
      %1503 = vst [vmem:[%s391 + $0x10] sm:$0xf] %v1439
      %1504 = vst [vmem:[%s391 + $0x14] sm:$0xf] %v1440
      %1505 = vst [vmem:[%s391 + $0x18] sm:$0xf] %v1441
      %1506 = vst [vmem:[%s391 + $0x1c] sm:$0xf] %v1442
      %1507 = vst [vmem:[%s391 + $0x20] sm:$0xf] %v1443
      %1508 = vst [vmem:[%s391 + $0x24] sm:$0xf] %v1444
      %1509 = vst [vmem:[%s391 + $0x28] sm:$0xf] %v1445
      %1510 = vst [vmem:[%s391 + $0x2c] sm:$0xf] %v1446
      %1511 = vst [vmem:[%s391 + $0x30] sm:$0xf] %v1447
      %1512 = vst [vmem:[%s391 + $0x34] sm:$0xf] %v1448
      %1513 = vst [vmem:[%s391 + $0x38] sm:$0xf] %v1449
      %1514 = vst [vmem:[%s391 + $0x3c] sm:$0xf] %v1450
      %1515 = vst [vmem:[%s391 + $0x40] sm:$0xf] %v1451
      %1516 = vst [vmem:[%s391 + $0x44] sm:$0xf] %v1452
      %1517 = vst [vmem:[%s391 + $0x48] sm:$0xf] %v1453
      %1518 = vst [vmem:[%s391 + $0x4c] sm:$0xf] %v1454
      %1519 = vst [vmem:[%s391 + $0x50] sm:$0xf] %v1455
      %1520 = vst [vmem:[%s391 + $0x54] sm:$0xf] %v1456
      %1521 = vst [vmem:[%s391 + $0x58] sm:$0xf] %v1457
      %1522 = vst [vmem:[%s391 + $0x5c] sm:$0xf] %v1458
      %1523 = vst [vmem:[%s391 + $0x60] sm:$0xf] %v1459
      %1524 = vst [vmem:[%s391 + $0x64] sm:$0xf] %v1460
      %1525 = vst [vmem:[%s391 + $0x68] sm:$0xf] %v1461
      %1526 = vst [vmem:[%s391 + $0x6c] sm:$0xf] %v1462
      %1527 = vst [vmem:[%s391 + $0x70] sm:$0xf] %v1463
      %1528 = vst [vmem:[%s391 + $0x74] sm:$0xf] %v1464
      %1529 = vst [vmem:[%s391 + $0x78] sm:$0xf] %v1465
      %1530 = vst [vmem:[%s391 + $0x7c] sm:$0xf] %v1466
      %s1531 = smul.u32 32, %s24
      %p1532 = scmp.lt.s32.totalorder %s23, 1
      %s1533 = scalar_select %p1532, %s23, 1
      %p1534 = scmp.lt.s32.totalorder %s1531, 31
      %s1535 = scalar_select %p1534, %s1531, 31
      %s1536 = smul.addr %s1533, 32
      %s1537 = sadd.s32 %s1535, %s1536
      %s1538 = smul.addr %s1537, 4
      %s1539 = scalar_lea.vmem %s5, %s1538
      %s1540 = smul.u32 32, %s24
      %p1541 = scmp.lt.s32.totalorder %s23, 1
      %s1542 = scalar_select %p1541, %s23, 1
      %p1543 = scmp.lt.s32.totalorder %s1540, 31
      %s1544 = scalar_select %p1543, %s1540, 31
      %s1545 = smul.addr %s1542, 32
      %s1546 = sadd.s32 %s1544, %s1545
      %s1547 = smul.addr %s1546, 4
      %s1548 = scalar_lea.vmem %s6, %s1547
      %s1549 = smul.u32 32, %s24
      %p1550 = scmp.lt.s32.totalorder %s23, 1
      %s1551 = scalar_select %p1550, %s23, 1
      %p1552 = scmp.lt.s32.totalorder %s1549, 31
      %s1553 = scalar_select %p1552, %s1549, 31
      %s1554 = smul.addr %s1551, 32
      %s1555 = sadd.s32 %s1553, %s1554
      %s1556 = smul.addr %s1555, 4
      %s1557 = scalar_lea.vmem %s7, %s1556
      // Predicated region
      $region41: #{attn_block_pallas.4} parent=39 // pred_check
        %p1558 = pneg %p173
      $region42: #{attn_block_pallas.4} parent=39 // pred_check_branch
        %1560 = sbr.rel (%p1558) target = $region44
      $region43: #{attn_block_pallas.4} parent=39 // pred_region
        %s1561 = smul.u32 32, %s24
      $region44: #{attn_block_pallas.4} parent=39 // pred_fallthru
        _
      // Predicated region
      $region45: #{attn_block_pallas.4} parent=39 // pred_check
        %p1562 = pneg %p201
      $region46: #{attn_block_pallas.4} parent=39 // pred_check_branch
        %1564 = sbr.rel (%p1562) target = $region48
      $region47: #{attn_block_pallas.4} parent=39 // pred_region
        %s1565 = smul.u32 32, %s24
      $region48: #{attn_block_pallas.4} parent=39 // pred_fallthru
        _
      // Predicated region
      $region49: #{attn_block_pallas.4} parent=39 // pred_check
        %p1566 = pneg %p229
      $region50: #{attn_block_pallas.4} parent=39 // pred_check_branch
        %1568 = sbr.rel (%p1566) target = $region52
      $region51: #{attn_block_pallas.4} parent=39 // pred_region
        %s1569 = smul.u32 32, %s24
      $region52: #{attn_block_pallas.4} parent=39 // pred_fallthru
        _
    $region40: #{attn_block_pallas.4} parent=5 // pred_fallthru
      _
    %p1570 = scmp.le.s32.totalorder 2, %s14
    // Predicated region
    $region53: #{attn_block_pallas.4} parent=5 // pred_check
      %p1571 = pneg %p1570
    $region54: #{attn_block_pallas.4} parent=5 // pred_check_branch
      %1573 = sbr.rel (%p1571) target = $region56
    $region55: #{attn_block_pallas.4} parent=5 // pred_region
      %s1574 = ssub.s32 %s14, 2
      // Predicated region
      $region57: #{attn_block_pallas.4} parent=55 // pred_check
        %p1575 = pneg %p179
      $region58: #{attn_block_pallas.4} parent=55 // pred_check_branch
        %1577 = sbr.rel (%p1575) target = $region60
      $region59: #{attn_block_pallas.4} parent=55 // pred_region
        %s1578 = smul.u32 32, %s26
        %p1579 = scmp.lt.s32.totalorder %s25, 1
        %s1580 = scalar_select %p1579, %s25, 1
        %p1581 = scmp.lt.s32.totalorder %s1578, 31
        %s1582 = scalar_select %p1581, %s1578, 31
        %s1583 = smul.addr %s1580, 32
        %s1584 = sadd.s32 %s1582, %s1583
        %s1585 = smul.addr %s1584, 4
        %s1586 = scalar_lea.vmem %s5, %s1585
      $region60: #{attn_block_pallas.4} parent=55 // pred_fallthru
        _
      // Predicated region
      $region61: #{attn_block_pallas.4} parent=55 // pred_check
        %p1587 = pneg %p207
      $region62: #{attn_block_pallas.4} parent=55 // pred_check_branch
        %1589 = sbr.rel (%p1587) target = $region64
      $region63: #{attn_block_pallas.4} parent=55 // pred_region
        %s1590 = smul.u32 32, %s26
        %p1591 = scmp.lt.s32.totalorder %s25, 1
        %s1592 = scalar_select %p1591, %s25, 1
        %p1593 = scmp.lt.s32.totalorder %s1590, 31
        %s1594 = scalar_select %p1593, %s1590, 31
        %s1595 = smul.addr %s1592, 32
        %s1596 = sadd.s32 %s1594, %s1595
        %s1597 = smul.addr %s1596, 4
        %s1598 = scalar_lea.vmem %s6, %s1597
      $region64: #{attn_block_pallas.4} parent=55 // pred_fallthru
        _
      // Predicated region
      $region65: #{attn_block_pallas.4} parent=55 // pred_check
        %p1599 = pneg %p235
      $region66: #{attn_block_pallas.4} parent=55 // pred_check_branch
        %1601 = sbr.rel (%p1599) target = $region68
      $region67: #{attn_block_pallas.4} parent=55 // pred_region
        %s1602 = smul.u32 32, %s26
        %p1603 = scmp.lt.s32.totalorder %s25, 1
        %s1604 = scalar_select %p1603, %s25, 1
        %p1605 = scmp.lt.s32.totalorder %s1602, 31
        %s1606 = scalar_select %p1605, %s1602, 31
        %s1607 = smul.addr %s1604, 32
        %s1608 = sadd.s32 %s1606, %s1607
        %s1609 = smul.addr %s1608, 4
        %s1610 = scalar_lea.vmem %s7, %s1609
      $region68: #{attn_block_pallas.4} parent=55 // pred_fallthru
        _
    $region56: #{attn_block_pallas.4} parent=5 // pred_fallthru
      _
  $region6: #{attn_block_pallas.4} parent=0 // loop_footer
    %s18 = sadd.s32 1, %s14
  $region7: #{attn_block_pallas.4} parent=0 // loop_footer_branch
    %13 = sbr.rel target = $region3
  $region8: #{attn_block_pallas.4} parent=0 // loop_exit
    _

// kernel: attn_block_pallas.5
$region0: #{attn_block_pallas.5}
  #allocation0 [shape = 'u32[]', space=smem, size = 0x4, offset = 0x4, fixed_abs, tag = 'smem constant byte address 0x4 - core index']
  #allocation1 [shape = 'u32[144,128]{1,0:T(1,128)}', space=vmem, size = 0x12000, scoped, tag = 'internal scratch']
  #allocation2 [shape = 'f32[256,128]{1,0:T(8,128)}', space=vmem, size = 0x20000, scoped, tag = 'scratch operand']
  #allocation3 [shape = 'f32[256,128]{1,0:T(8,128)}', space=vmem, size = 0x20000, scoped, tag = 'scratch operand']
  #allocation4 [shape = 'f32[256,128]{1,0:T(8,128)}', space=vmem, size = 0x20000, scoped, tag = 'scratch operand']
  %s0 = inlined_call_operand.vmem [shape: bf16[2,256,128], index: 0, kind: input, shape index: {}]
  %s1 = inlined_call_operand.vmem [shape: bf16[2,256,128], index: 1, kind: input, shape index: {}]
  %s2 = inlined_call_operand.vmem [shape: bf16[2,256,128], index: 2, kind: input, shape index: {}]
  %s3 = inlined_call_operand.vmem [shape: f32[2,256,128], index: 3, kind: input, shape index: {}, may-alias: {3,6}]
  %s4 = inlined_call_operand.vmem [shape: bf16[128,128], index: 4, kind: input, shape index: {}]
  %s5 = inlined_call_operand.vmem [shape: f32[1,128], index: 5, kind: input, shape index: {}]
  %s6 = inlined_call_operand.vmem [shape: f32[2,256,128], index: 6, kind: output, shape index: {}, may-alias: {3,6}]
  %s7 = sld [smem:[#allocation0]]
  $region65: #{attn_block_pallas.5} parent=0
    _
  %s9 = ssub.s32 1, %s7
  %s10 = scalar_select 0, %s9, %s7
  loop: start=0, step=1, limit=4
  $region2: #{attn_block_pallas.5} parent=0 // loop_pre_header
    _
  $region3: #{attn_block_pallas.5} parent=0 // loop_header
    %s12 = sphi 0, %s16
    %p13 = scmp.ge.s32.totalorder %s12, 4
    %s19 = sphi 0, %s38
    %s20 = sphi 0, %s34
    %s21 = sphi 0, %s30
    %s22 = sphi 0, %s19
    %s23 = sphi 0, %s20
    %s24 = sphi 0, %s21
    %s25 = sphi 0, %s22
    %s26 = sphi 0, %s23
    %s27 = sphi 0, %s24
    %s43 = sphi 0, %s45
    %s46 = sphi 0, %s43
    %s47 = sphi 0, %s46
    %s63 = sphi 0, %s47
    %s69 = sphi 0, %s71
    %s72 = sphi 0, %s69
    %s73 = sphi 0, %s72
    %s89 = sphi 0, %s73
    %s95 = sphi 0, %s97
    %s98 = sphi 0, %s95
    %s99 = sphi 0, %s98
    %s115 = sphi 0, %s99
    %s123 = sphi 0, %s125
    %s126 = sphi 0, %s123
    %s127 = sphi 0, %s126
    %s143 = sphi 0, %s127
    %s147 = sphi 0, %s147
    %s149 = sphi 0, %s147
    %s150 = sphi 0, %s149
    %s164 = sphi 0, %s150
    %s168 = sphi 0, %s168
    %s170 = sphi 0, %s168
    %s171 = sphi 0, %s170
    %s185 = sphi 0, %s171
    %s193 = sphi 0, %s195
    %s196 = sphi 0, %s193
    %s197 = sphi 0, %s196
    %s213 = sphi 0, %s197
  $region4: #{attn_block_pallas.5} parent=0 // loop_header_branch
    %15 = sbr.rel (%p13) target = $region8
  $region5: #{attn_block_pallas.5} parent=0 // loop_body
    %s17 = ssub.s32 %s12, 1
    %s18 = ssub.s32 %s12, 2
    %s28 = sadd.s32 1, %s21
    %p29 = scmp.ge.s32.totalorder %s28, 1
    %s30 = scalar_select %p29, 0, %s28
    %s31 = sadd.s32 1, %s20
    %s32 = scalar_select %p29, %s31, %s20
    %p33 = scmp.ge.s32.totalorder %s32, 1
    %s34 = scalar_select %p33, 0, %s32
    %s35 = sadd.s32 1, %s19
    %s36 = scalar_select %p33, %s35, %s19
    %p37 = scmp.ge.s32.totalorder %s36, 2
    %s38 = scalar_select %p37, 0, %s36
    %s39 = ssub.s32 %s19, %s38
    %s40 = ssub.s32 %s20, %s34
    %s41 = sor.u32 %s39, %s40
    %p42 = scmp.eq.s32.totalorder %s41, 0
    %s44 = sadd.s32 %s43, 1
    %s45 = scalar_select %p42, %s43, %s44
    %p48 = pneg %p42
    %p49 = scmp.eq.s32.totalorder %s12, 1
    %p50 = por %p48, %p49
    %p51 = scmp.ne.s32.totalorder %s43, %s46
    %p52 = scmp.eq.s32.totalorder %s12, 0
    %p53 = por %p51, %p52
    %p54 = scmp.ne.s32.totalorder %s43, %s46
    %p55 = scmp.eq.s32.totalorder %s17, 1
    %p56 = por %p54, %p55
    %p57 = scmp.ne.s32.totalorder %s46, %s47
    %p58 = scmp.eq.s32.totalorder %s17, 0
    %p59 = por %p57, %p58
    %p60 = scmp.ne.s32.totalorder %s46, %s47
    %p61 = scmp.eq.s32.totalorder %s18, 1
    %p62 = por %p60, %p61
    %p64 = scmp.ne.s32.totalorder %s47, %s63
    %p65 = scmp.eq.s32.totalorder %s18, 0
    %p66 = por %p64, %p65
    %s67 = ssub.s32 %s19, %s38
    %p68 = scmp.eq.s32.totalorder %s67, 0
    %s70 = sadd.s32 %s69, 1
    %s71 = scalar_select %p68, %s69, %s70
    %p74 = pneg %p68
    %p75 = scmp.eq.s32.totalorder %s12, 1
    %p76 = por %p74, %p75
    %p77 = scmp.ne.s32.totalorder %s69, %s72
    %p78 = scmp.eq.s32.totalorder %s12, 0
    %p79 = por %p77, %p78
    %p80 = scmp.ne.s32.totalorder %s69, %s72
    %p81 = scmp.eq.s32.totalorder %s17, 1
    %p82 = por %p80, %p81
    %p83 = scmp.ne.s32.totalorder %s72, %s73
    %p84 = scmp.eq.s32.totalorder %s17, 0
    %p85 = por %p83, %p84
    %p86 = scmp.ne.s32.totalorder %s72, %s73
    %p87 = scmp.eq.s32.totalorder %s18, 1
    %p88 = por %p86, %p87
    %p90 = scmp.ne.s32.totalorder %s73, %s89
    %p91 = scmp.eq.s32.totalorder %s18, 0
    %p92 = por %p90, %p91
    %s93 = ssub.s32 %s19, %s38
    %p94 = scmp.eq.s32.totalorder %s93, 0
    %s96 = sadd.s32 %s95, 1
    %s97 = scalar_select %p94, %s95, %s96
    %p100 = pneg %p94
    %p101 = scmp.eq.s32.totalorder %s12, 1
    %p102 = por %p100, %p101
    %p103 = scmp.ne.s32.totalorder %s95, %s98
    %p104 = scmp.eq.s32.totalorder %s12, 0
    %p105 = por %p103, %p104
    %p106 = scmp.ne.s32.totalorder %s95, %s98
    %p107 = scmp.eq.s32.totalorder %s17, 1
    %p108 = por %p106, %p107
    %p109 = scmp.ne.s32.totalorder %s98, %s99
    %p110 = scmp.eq.s32.totalorder %s17, 0
    %p111 = por %p109, %p110
    %p112 = scmp.ne.s32.totalorder %s98, %s99
    %p113 = scmp.eq.s32.totalorder %s18, 1
    %p114 = por %p112, %p113
    %p116 = scmp.ne.s32.totalorder %s99, %s115
    %p117 = scmp.eq.s32.totalorder %s18, 0
    %p118 = por %p116, %p117
    %s119 = ssub.s32 %s19, %s38
    %s120 = ssub.s32 %s20, %s34
    %s121 = sor.u32 %s119, %s120
    %p122 = scmp.eq.s32.totalorder %s121, 0
    %s124 = sadd.s32 %s123, 1
    %s125 = scalar_select %p122, %s123, %s124
    %p128 = pneg %p122
    %p129 = scmp.eq.s32.totalorder %s12, 1
    %p130 = por %p128, %p129
    %p131 = scmp.ne.s32.totalorder %s123, %s126
    %p132 = scmp.eq.s32.totalorder %s12, 0
    %p133 = por %p131, %p132
    %p134 = scmp.ne.s32.totalorder %s123, %s126
    %p135 = scmp.eq.s32.totalorder %s17, 1
    %p136 = por %p134, %p135
    %p137 = scmp.ne.s32.totalorder %s126, %s127
    %p138 = scmp.eq.s32.totalorder %s17, 0
    %p139 = por %p137, %p138
    %p140 = scmp.ne.s32.totalorder %s126, %s127
    %p141 = scmp.eq.s32.totalorder %s18, 1
    %p142 = por %p140, %p141
    %p144 = scmp.ne.s32.totalorder %s127, %s143
    %p145 = scmp.eq.s32.totalorder %s18, 0
    %p146 = por %p144, %p145
    %s148 = sadd.s32 %s147, 1
    %p151 = scmp.eq.s32.totalorder %s12, 1
    %p152 = scmp.ne.s32.totalorder %s147, %s149
    %p153 = scmp.eq.s32.totalorder %s12, 0
    %p154 = por %p152, %p153
    %p155 = scmp.ne.s32.totalorder %s147, %s149
    %p156 = scmp.eq.s32.totalorder %s17, 1
    %p157 = por %p155, %p156
    %p158 = scmp.ne.s32.totalorder %s149, %s150
    %p159 = scmp.eq.s32.totalorder %s17, 0
    %p160 = por %p158, %p159
    %p161 = scmp.ne.s32.totalorder %s149, %s150
    %p162 = scmp.eq.s32.totalorder %s18, 1
    %p163 = por %p161, %p162
    %p165 = scmp.ne.s32.totalorder %s150, %s164
    %p166 = scmp.eq.s32.totalorder %s18, 0
    %p167 = por %p165, %p166
    %s169 = sadd.s32 %s168, 1
    %p172 = scmp.eq.s32.totalorder %s12, 1
    %p173 = scmp.ne.s32.totalorder %s168, %s170
    %p174 = scmp.eq.s32.totalorder %s12, 0
    %p175 = por %p173, %p174
    %p176 = scmp.ne.s32.totalorder %s168, %s170
    %p177 = scmp.eq.s32.totalorder %s17, 1
    %p178 = por %p176, %p177
    %p179 = scmp.ne.s32.totalorder %s170, %s171
    %p180 = scmp.eq.s32.totalorder %s17, 0
    %p181 = por %p179, %p180
    %p182 = scmp.ne.s32.totalorder %s170, %s171
    %p183 = scmp.eq.s32.totalorder %s18, 1
    %p184 = por %p182, %p183
    %p186 = scmp.ne.s32.totalorder %s171, %s185
    %p187 = scmp.eq.s32.totalorder %s18, 0
    %p188 = por %p186, %p187
    %s189 = ssub.s32 %s19, %s38
    %s190 = ssub.s32 %s20, %s34
    %s191 = sor.u32 %s189, %s190
    %p192 = scmp.eq.s32.totalorder %s191, 0
    %s194 = sadd.s32 %s193, 1
    %s195 = scalar_select %p192, %s193, %s194
    %p198 = pneg %p192
    %p199 = scmp.eq.s32.totalorder %s12, 1
    %p200 = por %p198, %p199
    %p201 = scmp.ne.s32.totalorder %s193, %s196
    %p202 = scmp.eq.s32.totalorder %s12, 0
    %p203 = por %p201, %p202
    %p204 = scmp.ne.s32.totalorder %s193, %s196
    %p205 = scmp.eq.s32.totalorder %s17, 1
    %p206 = por %p204, %p205
    %p207 = scmp.ne.s32.totalorder %s196, %s197
    %p208 = scmp.eq.s32.totalorder %s17, 0
    %p209 = por %p207, %p208
    %p210 = scmp.ne.s32.totalorder %s196, %s197
    %p211 = scmp.eq.s32.totalorder %s18, 1
    %p212 = por %p210, %p211
    %p214 = scmp.ne.s32.totalorder %s197, %s213
    %p215 = scmp.eq.s32.totalorder %s18, 0
    %p216 = por %p214, %p215
    %p217 = scmp.le.s32.totalorder 1, %s12
    %p218 = scmp.lt.s32.totalorder %s12, 3
    %p219 = pnand %p217, %p218
    %p220 = pneg %p219
    // Predicated region
    $region9: #{attn_block_pallas.5} parent=5 // pred_check
      _
    $region10: #{attn_block_pallas.5} parent=5 // pred_check_branch
      %222 = sbr.rel (%p219) target = $region12
    $region11: #{attn_block_pallas.5} parent=5 // pred_region
      %s223 = ssub.s32 %s12, 1
      // Predicated region
      $region13: #{attn_block_pallas.5} parent=11 // pred_check
        %p224 = pneg %p160
      $region14: #{attn_block_pallas.5} parent=11 // pred_check_branch
        %226 = sbr.rel (%p224) target = $region16
      $region15: #{attn_block_pallas.5} parent=11 // pred_region
        _
      $region16: #{attn_block_pallas.5} parent=11 // pred_fallthru
        _
      // Predicated region
      $region17: #{attn_block_pallas.5} parent=11 // pred_check
        %p227 = pneg %p181
      $region18: #{attn_block_pallas.5} parent=11 // pred_check_branch
        %229 = sbr.rel (%p227) target = $region20
      $region19: #{attn_block_pallas.5} parent=11 // pred_region
        _
      $region20: #{attn_block_pallas.5} parent=11 // pred_fallthru
        _
    $region12: #{attn_block_pallas.5} parent=5 // pred_fallthru
      _
    %p230 = scmp.lt.s32.totalorder %s12, 2
    // Predicated region
    $region21: #{attn_block_pallas.5} parent=5 // pred_check
      %p231 = pneg %p230
    $region22: #{attn_block_pallas.5} parent=5 // pred_check_branch
      %233 = sbr.rel (%p231) target = $region24
    $region23: #{attn_block_pallas.5} parent=5 // pred_region
      // Predicated region
      $region25: #{attn_block_pallas.5} parent=23 // pred_check
        %p234 = pneg %p53
      $region26: #{attn_block_pallas.5} parent=23 // pred_check_branch
        %236 = sbr.rel (%p234) target = $region28
      $region27: #{attn_block_pallas.5} parent=23 // pred_region
        %s237 = smul.u32 32, %s20
        %p238 = scmp.lt.s32.totalorder %s19, 1
        %s239 = scalar_select %p238, %s19, 1
        %p240 = scmp.lt.s32.totalorder %s237, 31
        %s241 = scalar_select %p240, %s237, 31
        %s242 = smul.addr %s239, 32
        %s243 = sadd.s32 %s241, %s242
        %s244 = smul.addr %s243, 4
        %s245 = scalar_lea.vmem %s0, %s244
        %s246 = smul.u32 32, %s20
      $region28: #{attn_block_pallas.5} parent=23 // pred_fallthru
        _
      // Predicated region
      $region29: #{attn_block_pallas.5} parent=23 // pred_check
        %p247 = pneg %p79
      $region30: #{attn_block_pallas.5} parent=23 // pred_check_branch
        %249 = sbr.rel (%p247) target = $region32
      $region31: #{attn_block_pallas.5} parent=23 // pred_region
        %p250 = scmp.lt.s32.totalorder %s19, 1
        %s251 = scalar_select %p250, %s19, 1
        %s252 = smul.addr %s251, 32
        %s253 = smul.addr %s252, 4
        %s254 = scalar_lea.vmem %s1, %s253
      $region32: #{attn_block_pallas.5} parent=23 // pred_fallthru
        _
      // Predicated region
      $region33: #{attn_block_pallas.5} parent=23 // pred_check
        %p255 = pneg %p105
      $region34: #{attn_block_pallas.5} parent=23 // pred_check_branch
        %257 = sbr.rel (%p255) target = $region36
      $region35: #{attn_block_pallas.5} parent=23 // pred_region
        %p258 = scmp.lt.s32.totalorder %s19, 1
        %s259 = scalar_select %p258, %s19, 1
        %s260 = smul.addr %s259, 32
        %s261 = smul.addr %s260, 4
        %s262 = scalar_lea.vmem %s2, %s261
      $region36: #{attn_block_pallas.5} parent=23 // pred_fallthru
        _
      // Predicated region
      $region37: #{attn_block_pallas.5} parent=23 // pred_check
        %p263 = pneg %p133
      $region38: #{attn_block_pallas.5} parent=23 // pred_check_branch
        %265 = sbr.rel (%p263) target = $region40
      $region39: #{attn_block_pallas.5} parent=23 // pred_region
        %s266 = smul.u32 32, %s20
        %p267 = scmp.lt.s32.totalorder %s19, 1
        %s268 = scalar_select %p267, %s19, 1
        %p269 = scmp.lt.s32.totalorder %s266, 31
        %s270 = scalar_select %p269, %s266, 31
        %s271 = smul.addr %s268, 32
        %s272 = sadd.s32 %s270, %s271
        %s273 = smul.addr %s272, 8
        %s274 = scalar_lea.vmem %s3, %s273
        %s275 = smul.u32 32, %s20
      $region40: #{attn_block_pallas.5} parent=23 // pred_fallthru
        _
    $region24: #{attn_block_pallas.5} parent=5 // pred_fallthru
      _
    %p276 = scmp.le.s32.totalorder 1, %s12
    %p277 = scmp.lt.s32.totalorder %s12, 3
    %p278 = pnand %p276, %p277
    %p279 = pneg %p278
    // Predicated region
    $region41: #{attn_block_pallas.5} parent=5 // pred_check
      _
    $region42: #{attn_block_pallas.5} parent=5 // pred_check_branch
      %281 = sbr.rel (%p278) target = $region44
    $region43: #{attn_block_pallas.5} parent=5 // pred_region
      %s282 = ssub.s32 %s12, 1
      %s283 = smul.u32 32, %s23
      %p284 = scmp.lt.s32.totalorder %s22, 1
      %s285 = scalar_select %p284, %s22, 1
      %p286 = scmp.lt.s32.totalorder %s283, 31
      %s287 = scalar_select %p286, %s283, 31
      %s288 = smul.addr %s285, 32
      %s289 = sadd.s32 %s287, %s288
      %s290 = smul.addr %s289, 4
      %s291 = scalar_lea.vmem %s0, %s290
      %p292 = pneg %p59
      %p293 = pneg %p56
      %p294 = scmp.lt.s32.totalorder %s22, 1
      %s295 = scalar_select %p294, %s22, 1
      %s296 = smul.addr %s295, 32
      %s297 = smul.addr %s296, 4
      %s298 = scalar_lea.vmem %s1, %s297
      %p299 = pneg %p85
      %p300 = pneg %p82
      %p301 = scmp.lt.s32.totalorder %s22, 1
      %s302 = scalar_select %p301, %s22, 1
      %s303 = smul.addr %s302, 32
      %s304 = smul.addr %s303, 4
      %s305 = scalar_lea.vmem %s2, %s304
      %p306 = pneg %p111
      %p307 = pneg %p108
      %s308 = smul.u32 32, %s23
      %p309 = scmp.lt.s32.totalorder %s22, 1
      %s310 = scalar_select %p309, %s22, 1
      %p311 = scmp.lt.s32.totalorder %s308, 31
      %s312 = scalar_select %p311, %s308, 31
      %s313 = smul.addr %s310, 32
      %s314 = sadd.s32 %s312, %s313
      %s315 = smul.addr %s314, 8
      %s316 = scalar_lea.vmem %s3, %s315
      %p317 = pneg %p139
      %p318 = pneg %p136
      %p319 = pneg %p160
      %p320 = pneg %p157
      %p321 = pneg %p181
      %p322 = pneg %p178
      %p323 = pneg %p209
      %p324 = pneg %p206
      %s325 = smul.u32 32, %s23
      %p326 = scmp.lt.s32.totalorder %s22, 1
      %s327 = scalar_select %p326, %s22, 1
      %p328 = scmp.lt.s32.totalorder %s325, 31
      %s329 = scalar_select %p328, %s325, 31
      %s330 = smul.addr %s327, 32
      %s331 = sadd.s32 %s329, %s330
      %s332 = smul.addr %s331, 8
      %s333 = scalar_lea.vmem %s6, %s332
      %s334 = smul.u32 32, %s23
      %p335 = scmp.lt.s32.totalorder %s22, 1
      %s336 = scalar_select %p335, %s22, 1
      %p337 = scmp.lt.s32.totalorder %s334, 31
      %s338 = scalar_select %p337, %s334, 31
      %s339 = smul.addr %s336, 32
      %s340 = sadd.s32 %s338, %s339
      %s341 = smul.addr %s340, 4
      %s342 = scalar_lea.vmem %s0, %s341
      %s343 = smul.u32 32, %s23
      %p344 = scmp.lt.s32.totalorder %s22, 1
      %s345 = scalar_select %p344, %s22, 1
      %s346 = smul.addr %s345, 32
      %s347 = smul.addr %s346, 4
      %s348 = scalar_lea.vmem %s1, %s347
      %p349 = scmp.lt.s32.totalorder %s22, 1
      %s350 = scalar_select %p349, %s22, 1
      %s351 = smul.addr %s350, 32
      %s352 = smul.addr %s351, 4
      %s353 = scalar_lea.vmem %s2, %s352
      %s354 = smul.u32 32, %s23
      %p355 = scmp.lt.s32.totalorder %s22, 1
      %s356 = scalar_select %p355, %s22, 1
      %p357 = scmp.lt.s32.totalorder %s354, 31
      %s358 = scalar_select %p357, %s354, 31
      %s359 = smul.addr %s356, 32
      %s360 = sadd.s32 %s358, %s359
      %s361 = smul.addr %s360, 8
      %s362 = scalar_lea.vmem %s3, %s361
      %s363 = smul.u32 32, %s23
      %s364 = smul.u32 32, %s23
      %p365 = scmp.lt.s32.totalorder %s22, 1
      %s366 = scalar_select %p365, %s22, 1
      %p367 = scmp.lt.s32.totalorder %s364, 31
      %s368 = scalar_select %p367, %s364, 31
      %s369 = smul.addr %s366, 32
      %s370 = sadd.s32 %s368, %s369
      %s371 = smul.addr %s370, 8
      %s372 = scalar_lea.vmem %s6, %s371
      %s373 = smul.u32 32, %s23
      %p375 = scmp.eq.s32.totalorder %s24, 0
      // Predicated region
      $region45: #{attn_block_pallas.5} parent=43 // pred_check
        %p376 = pneg %p375
      $region46: #{attn_block_pallas.5} parent=43 // pred_check_branch
        %378 = sbr.rel (%p376) target = $region48
      $region47: #{attn_block_pallas.5} parent=43 // pred_region
        %379 = vst [vmem:[#allocation2] sm:$0xff] -inf
        %380 = vst [vmem:[#allocation2 + $0x8] sm:$0xff] -inf
        %381 = vst [vmem:[#allocation2 + $0x10] sm:$0xff] -inf
        %382 = vst [vmem:[#allocation2 + $0x18] sm:$0xff] -inf
        %383 = vst [vmem:[#allocation2 + $0x20] sm:$0xff] -inf
        %384 = vst [vmem:[#allocation2 + $0x28] sm:$0xff] -inf
        %385 = vst [vmem:[#allocation2 + $0x30] sm:$0xff] -inf
        %386 = vst [vmem:[#allocation2 + $0x38] sm:$0xff] -inf
        %387 = vst [vmem:[#allocation2 + $0x40] sm:$0xff] -inf
        %388 = vst [vmem:[#allocation2 + $0x48] sm:$0xff] -inf
        %389 = vst [vmem:[#allocation2 + $0x50] sm:$0xff] -inf
        %390 = vst [vmem:[#allocation2 + $0x58] sm:$0xff] -inf
        %391 = vst [vmem:[#allocation2 + $0x60] sm:$0xff] -inf
        %392 = vst [vmem:[#allocation2 + $0x68] sm:$0xff] -inf
        %393 = vst [vmem:[#allocation2 + $0x70] sm:$0xff] -inf
        %394 = vst [vmem:[#allocation2 + $0x78] sm:$0xff] -inf
        %395 = vst [vmem:[#allocation2 + $0x80] sm:$0xff] -inf
        %396 = vst [vmem:[#allocation2 + $0x88] sm:$0xff] -inf
        %397 = vst [vmem:[#allocation2 + $0x90] sm:$0xff] -inf
        %398 = vst [vmem:[#allocation2 + $0x98] sm:$0xff] -inf
        %399 = vst [vmem:[#allocation2 + $0xa0] sm:$0xff] -inf
        %400 = vst [vmem:[#allocation2 + $0xa8] sm:$0xff] -inf
        %401 = vst [vmem:[#allocation2 + $0xb0] sm:$0xff] -inf
        %402 = vst [vmem:[#allocation2 + $0xb8] sm:$0xff] -inf
        %403 = vst [vmem:[#allocation2 + $0xc0] sm:$0xff] -inf
        %404 = vst [vmem:[#allocation2 + $0xc8] sm:$0xff] -inf
        %405 = vst [vmem:[#allocation2 + $0xd0] sm:$0xff] -inf
        %406 = vst [vmem:[#allocation2 + $0xd8] sm:$0xff] -inf
        %407 = vst [vmem:[#allocation2 + $0xe0] sm:$0xff] -inf
        %408 = vst [vmem:[#allocation2 + $0xe8] sm:$0xff] -inf
        %409 = vst [vmem:[#allocation2 + $0xf0] sm:$0xff] -inf
        %410 = vst [vmem:[#allocation2 + $0xf8] sm:$0xff] -inf
        %411 = vst [vmem:[#allocation3] sm:$0xff] 0.0
        %412 = vst [vmem:[#allocation3 + $0x8] sm:$0xff] 0.0
        %413 = vst [vmem:[#allocation3 + $0x10] sm:$0xff] 0.0
        %414 = vst [vmem:[#allocation3 + $0x18] sm:$0xff] 0.0
        %415 = vst [vmem:[#allocation3 + $0x20] sm:$0xff] 0.0
        %416 = vst [vmem:[#allocation3 + $0x28] sm:$0xff] 0.0
        %417 = vst [vmem:[#allocation3 + $0x30] sm:$0xff] 0.0
        %418 = vst [vmem:[#allocation3 + $0x38] sm:$0xff] 0.0
        %419 = vst [vmem:[#allocation3 + $0x40] sm:$0xff] 0.0
        %420 = vst [vmem:[#allocation3 + $0x48] sm:$0xff] 0.0
        %421 = vst [vmem:[#allocation3 + $0x50] sm:$0xff] 0.0
        %422 = vst [vmem:[#allocation3 + $0x58] sm:$0xff] 0.0
        %423 = vst [vmem:[#allocation3 + $0x60] sm:$0xff] 0.0
        %424 = vst [vmem:[#allocation3 + $0x68] sm:$0xff] 0.0
        %425 = vst [vmem:[#allocation3 + $0x70] sm:$0xff] 0.0
        %426 = vst [vmem:[#allocation3 + $0x78] sm:$0xff] 0.0
        %427 = vst [vmem:[#allocation3 + $0x80] sm:$0xff] 0.0
        %428 = vst [vmem:[#allocation3 + $0x88] sm:$0xff] 0.0
        %429 = vst [vmem:[#allocation3 + $0x90] sm:$0xff] 0.0
        %430 = vst [vmem:[#allocation3 + $0x98] sm:$0xff] 0.0
        %431 = vst [vmem:[#allocation3 + $0xa0] sm:$0xff] 0.0
        %432 = vst [vmem:[#allocation3 + $0xa8] sm:$0xff] 0.0
        %433 = vst [vmem:[#allocation3 + $0xb0] sm:$0xff] 0.0
        %434 = vst [vmem:[#allocation3 + $0xb8] sm:$0xff] 0.0
        %435 = vst [vmem:[#allocation3 + $0xc0] sm:$0xff] 0.0
        %436 = vst [vmem:[#allocation3 + $0xc8] sm:$0xff] 0.0
        %437 = vst [vmem:[#allocation3 + $0xd0] sm:$0xff] 0.0
        %438 = vst [vmem:[#allocation3 + $0xd8] sm:$0xff] 0.0
        %439 = vst [vmem:[#allocation3 + $0xe0] sm:$0xff] 0.0
        %440 = vst [vmem:[#allocation3 + $0xe8] sm:$0xff] 0.0
        %441 = vst [vmem:[#allocation3 + $0xf0] sm:$0xff] 0.0
        %442 = vst [vmem:[#allocation3 + $0xf8] sm:$0xff] 0.0
        %443 = vst [vmem:[#allocation4] sm:$0xff] 0.0
        %444 = vst [vmem:[#allocation4 + $0x8] sm:$0xff] 0.0
        %445 = vst [vmem:[#allocation4 + $0x10] sm:$0xff] 0.0
        %446 = vst [vmem:[#allocation4 + $0x18] sm:$0xff] 0.0
        %447 = vst [vmem:[#allocation4 + $0x20] sm:$0xff] 0.0
        %448 = vst [vmem:[#allocation4 + $0x28] sm:$0xff] 0.0
        %449 = vst [vmem:[#allocation4 + $0x30] sm:$0xff] 0.0
        %450 = vst [vmem:[#allocation4 + $0x38] sm:$0xff] 0.0
        %451 = vst [vmem:[#allocation4 + $0x40] sm:$0xff] 0.0
        %452 = vst [vmem:[#allocation4 + $0x48] sm:$0xff] 0.0
        %453 = vst [vmem:[#allocation4 + $0x50] sm:$0xff] 0.0
        %454 = vst [vmem:[#allocation4 + $0x58] sm:$0xff] 0.0
        %455 = vst [vmem:[#allocation4 + $0x60] sm:$0xff] 0.0
        %456 = vst [vmem:[#allocation4 + $0x68] sm:$0xff] 0.0
        %457 = vst [vmem:[#allocation4 + $0x70] sm:$0xff] 0.0
        %458 = vst [vmem:[#allocation4 + $0x78] sm:$0xff] 0.0
        %459 = vst [vmem:[#allocation4 + $0x80] sm:$0xff] 0.0
        %460 = vst [vmem:[#allocation4 + $0x88] sm:$0xff] 0.0
        %461 = vst [vmem:[#allocation4 + $0x90] sm:$0xff] 0.0
        %462 = vst [vmem:[#allocation4 + $0x98] sm:$0xff] 0.0
        %463 = vst [vmem:[#allocation4 + $0xa0] sm:$0xff] 0.0
        %464 = vst [vmem:[#allocation4 + $0xa8] sm:$0xff] 0.0
        %465 = vst [vmem:[#allocation4 + $0xb0] sm:$0xff] 0.0
        %466 = vst [vmem:[#allocation4 + $0xb8] sm:$0xff] 0.0
        %467 = vst [vmem:[#allocation4 + $0xc0] sm:$0xff] 0.0
        %468 = vst [vmem:[#allocation4 + $0xc8] sm:$0xff] 0.0
        %469 = vst [vmem:[#allocation4 + $0xd0] sm:$0xff] 0.0
        %470 = vst [vmem:[#allocation4 + $0xd8] sm:$0xff] 0.0
        %471 = vst [vmem:[#allocation4 + $0xe0] sm:$0xff] 0.0
        %472 = vst [vmem:[#allocation4 + $0xe8] sm:$0xff] 0.0
        %473 = vst [vmem:[#allocation4 + $0xf0] sm:$0xff] 0.0
        %474 = vst [vmem:[#allocation4 + $0xf8] sm:$0xff] 0.0
      $region48: #{attn_block_pallas.5} parent=43 // pred_fallthru
        _
      %s475 = smul.u32 %s24, 256
      %s476 = sshra.s32 %s475, 3
      %s477 = sand.u32 %s475, 7
      %s478 = smul.addr %s476, 4
      %s479 = scalar_lea.vmem %s348, %s478
      %v480 = vld [vmem:[%s479] sm:$0xf]
      %v481 = vld [vmem:[%s479 + $0x4] sm:$0xf]
      %v482 = vld [vmem:[%s479 + $0x8] sm:$0xf]
      %v483 = vld [vmem:[%s479 + $0xc] sm:$0xf]
      %v484 = vld [vmem:[%s479 + $0x10] sm:$0xf]
      %v485 = vld [vmem:[%s479 + $0x14] sm:$0xf]
      %v486 = vld [vmem:[%s479 + $0x18] sm:$0xf]
      %v487 = vld [vmem:[%s479 + $0x1c] sm:$0xf]
      %v488 = vld [vmem:[%s479 + $0x20] sm:$0xf]
      %v489 = vld [vmem:[%s479 + $0x24] sm:$0xf]
      %v490 = vld [vmem:[%s479 + $0x28] sm:$0xf]
      %v491 = vld [vmem:[%s479 + $0x2c] sm:$0xf]
      %v492 = vld [vmem:[%s479 + $0x30] sm:$0xf]
      %v493 = vld [vmem:[%s479 + $0x34] sm:$0xf]
      %v494 = vld [vmem:[%s479 + $0x38] sm:$0xf]
      %v495 = vld [vmem:[%s479 + $0x3c] sm:$0xf]
      %v496 = vld [vmem:[%s479 + $0x40] sm:$0xf]
      %v497 = vld [vmem:[%s479 + $0x44] sm:$0xf]
      %v498 = vld [vmem:[%s479 + $0x48] sm:$0xf]
      %v499 = vld [vmem:[%s479 + $0x4c] sm:$0xf]
      %v500 = vld [vmem:[%s479 + $0x50] sm:$0xf]
      %v501 = vld [vmem:[%s479 + $0x54] sm:$0xf]
      %v502 = vld [vmem:[%s479 + $0x58] sm:$0xf]
      %v503 = vld [vmem:[%s479 + $0x5c] sm:$0xf]
      %v504 = vld [vmem:[%s479 + $0x60] sm:$0xf]
      %v505 = vld [vmem:[%s479 + $0x64] sm:$0xf]
      %v506 = vld [vmem:[%s479 + $0x68] sm:$0xf]
      %v507 = vld [vmem:[%s479 + $0x6c] sm:$0xf]
      %v508 = vld [vmem:[%s479 + $0x70] sm:$0xf]
      %v509 = vld [vmem:[%s479 + $0x74] sm:$0xf]
      %v510 = vld [vmem:[%s479 + $0x78] sm:$0xf]
      %v511 = vld [vmem:[%s479 + $0x7c] sm:$0xf]
      %s512 = smul.addr %s476, 4
      %s513 = scalar_lea.vmem %s353, %s512
      %v514 = vld [vmem:[%s513] sm:$0xf]
      %v515 = vld [vmem:[%s513 + $0x4] sm:$0xf]
      %v516 = vld [vmem:[%s513 + $0x8] sm:$0xf]
      %v517 = vld [vmem:[%s513 + $0xc] sm:$0xf]
      %v518 = vld [vmem:[%s513 + $0x10] sm:$0xf]
      %v519 = vld [vmem:[%s513 + $0x14] sm:$0xf]
      %v520 = vld [vmem:[%s513 + $0x18] sm:$0xf]
      %v521 = vld [vmem:[%s513 + $0x1c] sm:$0xf]
      %v522 = vld [vmem:[%s513 + $0x20] sm:$0xf]
      %v523 = vld [vmem:[%s513 + $0x24] sm:$0xf]
      %v524 = vld [vmem:[%s513 + $0x28] sm:$0xf]
      %v525 = vld [vmem:[%s513 + $0x2c] sm:$0xf]
      %v526 = vld [vmem:[%s513 + $0x30] sm:$0xf]
      %v527 = vld [vmem:[%s513 + $0x34] sm:$0xf]
      %v528 = vld [vmem:[%s513 + $0x38] sm:$0xf]
      %v529 = vld [vmem:[%s513 + $0x3c] sm:$0xf]
      %v530 = vld [vmem:[%s513 + $0x40] sm:$0xf]
      %v531 = vld [vmem:[%s513 + $0x44] sm:$0xf]
      %v532 = vld [vmem:[%s513 + $0x48] sm:$0xf]
      %v533 = vld [vmem:[%s513 + $0x4c] sm:$0xf]
      %v534 = vld [vmem:[%s513 + $0x50] sm:$0xf]
      %v535 = vld [vmem:[%s513 + $0x54] sm:$0xf]
      %v536 = vld [vmem:[%s513 + $0x58] sm:$0xf]
      %v537 = vld [vmem:[%s513 + $0x5c] sm:$0xf]
      %v538 = vld [vmem:[%s513 + $0x60] sm:$0xf]
      %v539 = vld [vmem:[%s513 + $0x64] sm:$0xf]
      %v540 = vld [vmem:[%s513 + $0x68] sm:$0xf]
      %v541 = vld [vmem:[%s513 + $0x6c] sm:$0xf]
      %v542 = vld [vmem:[%s513 + $0x70] sm:$0xf]
      %v543 = vld [vmem:[%s513 + $0x74] sm:$0xf]
      %v544 = vld [vmem:[%s513 + $0x78] sm:$0xf]
      %v545 = vld [vmem:[%s513 + $0x7c] sm:$0xf]
      %v546 = vld [vmem:[%s342] sm:$0xf]
      %v547 = vld [vmem:[%s342 + $0x4] sm:$0xf]
      %v548 = vld [vmem:[%s342 + $0x8] sm:$0xf]
      %v549 = vld [vmem:[%s342 + $0xc] sm:$0xf]
      %v550 = vld [vmem:[%s342 + $0x10] sm:$0xf]
      %v551 = vld [vmem:[%s342 + $0x14] sm:$0xf]
      %v552 = vld [vmem:[%s342 + $0x18] sm:$0xf]
      %v553 = vld [vmem:[%s342 + $0x1c] sm:$0xf]
      %v554 = vld [vmem:[%s342 + $0x20] sm:$0xf]
      %v555 = vld [vmem:[%s342 + $0x24] sm:$0xf]
      %v556 = vld [vmem:[%s342 + $0x28] sm:$0xf]
      %v557 = vld [vmem:[%s342 + $0x2c] sm:$0xf]
      %v558 = vld [vmem:[%s342 + $0x30] sm:$0xf]
      %v559 = vld [vmem:[%s342 + $0x34] sm:$0xf]
      %v560 = vld [vmem:[%s342 + $0x38] sm:$0xf]
      %v561 = vld [vmem:[%s342 + $0x3c] sm:$0xf]
      %v562 = vld [vmem:[%s342 + $0x40] sm:$0xf]
      %v563 = vld [vmem:[%s342 + $0x44] sm:$0xf]
      %v564 = vld [vmem:[%s342 + $0x48] sm:$0xf]
      %v565 = vld [vmem:[%s342 + $0x4c] sm:$0xf]
      %v566 = vld [vmem:[%s342 + $0x50] sm:$0xf]
      %v567 = vld [vmem:[%s342 + $0x54] sm:$0xf]
      %v568 = vld [vmem:[%s342 + $0x58] sm:$0xf]
      %v569 = vld [vmem:[%s342 + $0x5c] sm:$0xf]
      %v570 = vld [vmem:[%s342 + $0x60] sm:$0xf]
      %v571 = vld [vmem:[%s342 + $0x64] sm:$0xf]
      %v572 = vld [vmem:[%s342 + $0x68] sm:$0xf]
      %v573 = vld [vmem:[%s342 + $0x6c] sm:$0xf]
      %v574 = vld [vmem:[%s342 + $0x70] sm:$0xf]
      %v575 = vld [vmem:[%s342 + $0x74] sm:$0xf]
      %v576 = vld [vmem:[%s342 + $0x78] sm:$0xf]
      %v577 = vld [vmem:[%s342 + $0x7c] sm:$0xf]
      %v610 = vunpack.c.l.b16 %v546
      %v611 = vunpack.c.l.b16 %v547
      %v612 = vunpack.c.l.b16 %v548
      %v613 = vunpack.c.l.b16 %v549
      %v614 = vunpack.c.l.b16 %v550
      %v615 = vunpack.c.l.b16 %v551
      %v616 = vunpack.c.l.b16 %v552
      %v617 = vunpack.c.l.b16 %v553
      %v618 = vunpack.c.l.b16 %v554
      %v619 = vunpack.c.l.b16 %v555
      %v620 = vunpack.c.l.b16 %v556
      %v621 = vunpack.c.l.b16 %v557
      %v622 = vunpack.c.l.b16 %v558
      %v623 = vunpack.c.l.b16 %v559
      %v624 = vunpack.c.l.b16 %v560
      %v625 = vunpack.c.l.b16 %v561
      %v626 = vunpack.c.l.b16 %v562
      %v627 = vunpack.c.l.b16 %v563
      %v628 = vunpack.c.l.b16 %v564
      %v629 = vunpack.c.l.b16 %v565
      %v630 = vunpack.c.l.b16 %v566
      %v631 = vunpack.c.l.b16 %v567
      %v632 = vunpack.c.l.b16 %v568
      %v633 = vunpack.c.l.b16 %v569
      %v634 = vunpack.c.l.b16 %v570
      %v635 = vunpack.c.l.b16 %v571
      %v636 = vunpack.c.l.b16 %v572
      %v637 = vunpack.c.l.b16 %v573
      %v638 = vunpack.c.l.b16 %v574
      %v639 = vunpack.c.l.b16 %v575
      %v640 = vunpack.c.l.b16 %v576
      %v641 = vunpack.c.l.b16 %v577
      %v642 = vpack.c.b16 %v611, %v610
      %v643 = vpack.c.b16 %v613, %v612
      %v644 = vpack.c.b16 %v615, %v614
      %v645 = vpack.c.b16 %v617, %v616
      %v646 = vpack.c.b16 %v619, %v618
      %v647 = vpack.c.b16 %v621, %v620
      %v648 = vpack.c.b16 %v623, %v622
      %v649 = vpack.c.b16 %v625, %v624
      %v650 = vpack.c.b16 %v627, %v626
      %v651 = vpack.c.b16 %v629, %v628
      %v652 = vpack.c.b16 %v631, %v630
      %v653 = vpack.c.b16 %v633, %v632
      %v654 = vpack.c.b16 %v635, %v634
      %v655 = vpack.c.b16 %v637, %v636
      %v656 = vpack.c.b16 %v639, %v638
      %v657 = vpack.c.b16 %v641, %v640
      %v706 = vunpack.c.l.b16 %v480
      %v707 = vunpack.c.l.b16 %v481
      %v708 = vunpack.c.l.b16 %v482
      %v709 = vunpack.c.l.b16 %v483
      %v710 = vunpack.c.l.b16 %v484
      %v711 = vunpack.c.l.b16 %v485
      %v712 = vunpack.c.l.b16 %v486
      %v713 = vunpack.c.l.b16 %v487
      %v714 = vunpack.c.l.b16 %v488
      %v715 = vunpack.c.l.b16 %v489
      %v716 = vunpack.c.l.b16 %v490
      %v717 = vunpack.c.l.b16 %v491
      %v718 = vunpack.c.l.b16 %v492
      %v719 = vunpack.c.l.b16 %v493
      %v720 = vunpack.c.l.b16 %v494
      %v721 = vunpack.c.l.b16 %v495
      %v722 = vunpack.c.l.b16 %v496
      %v723 = vunpack.c.l.b16 %v497
      %v724 = vunpack.c.l.b16 %v498
      %v725 = vunpack.c.l.b16 %v499
      %v726 = vunpack.c.l.b16 %v500
      %v727 = vunpack.c.l.b16 %v501
      %v728 = vunpack.c.l.b16 %v502
      %v729 = vunpack.c.l.b16 %v503
      %v730 = vunpack.c.l.b16 %v504
      %v731 = vunpack.c.l.b16 %v505
      %v732 = vunpack.c.l.b16 %v506
      %v733 = vunpack.c.l.b16 %v507
      %v734 = vunpack.c.l.b16 %v508
      %v735 = vunpack.c.l.b16 %v509
      %v736 = vunpack.c.l.b16 %v510
      %v737 = vunpack.c.l.b16 %v511
      %v738 = vpack.c.b16 %v707, %v706
      %v739 = vpack.c.b16 %v709, %v708
      %v740 = vpack.c.b16 %v711, %v710
      %v741 = vpack.c.b16 %v713, %v712
      %v742 = vpack.c.b16 %v715, %v714
      %v743 = vpack.c.b16 %v717, %v716
      %v744 = vpack.c.b16 %v719, %v718
      %v745 = vpack.c.b16 %v721, %v720
      %v746 = vpack.c.b16 %v723, %v722
      %v747 = vpack.c.b16 %v725, %v724
      %v748 = vpack.c.b16 %v727, %v726
      %v749 = vpack.c.b16 %v729, %v728
      %v750 = vpack.c.b16 %v731, %v730
      %v751 = vpack.c.b16 %v733, %v732
      %v752 = vpack.c.b16 %v735, %v734
      %v753 = vpack.c.b16 %v737, %v736
      %770 = vmatprep.subr.bf16.mxu0 0
      %771 = vmatpush1.bf16.xpose.msra.mxu0 %v738
      %772 = vmatprep.subr.bf16.mxu0 0
      %773 = vmatpush1.bf16.xpose.msra.mxu0 %v739
      %774 = vmatprep.subr.bf16.mxu0 0
      %775 = vmatpush1.bf16.xpose.msra.mxu0 %v740
      %776 = vmatprep.subr.bf16.mxu0 0
      %777 = vmatpush1.bf16.xpose.msra.mxu0 %v741
      %778 = vmatprep.subr.bf16.mxu0 0
      %779 = vmatpush1.bf16.xpose.msra.mxu0 %v742
      %780 = vmatprep.subr.bf16.mxu0 0
      %781 = vmatpush1.bf16.xpose.msra.mxu0 %v743
      %782 = vmatprep.subr.bf16.mxu0 0
      %783 = vmatpush1.bf16.xpose.msra.mxu0 %v744
      %784 = vmatprep.subr.bf16.mxu0 0
      %785 = vmatpush1.bf16.xpose.msra.mxu0 %v745
      %786 = vmatprep.subr.bf16.mxu0 0
      %787 = vmatpush1.bf16.xpose.msra.mxu0 %v746
      %788 = vmatprep.subr.bf16.mxu0 0
      %789 = vmatpush1.bf16.xpose.msra.mxu0 %v747
      %790 = vmatprep.subr.bf16.mxu0 0
      %791 = vmatpush1.bf16.xpose.msra.mxu0 %v748
      %792 = vmatprep.subr.bf16.mxu0 0
      %793 = vmatpush1.bf16.xpose.msra.mxu0 %v749
      %794 = vmatprep.subr.bf16.mxu0 0
      %795 = vmatpush1.bf16.xpose.msra.mxu0 %v750
      %796 = vmatprep.subr.bf16.mxu0 0
      %797 = vmatpush1.bf16.xpose.msra.mxu0 %v751
      %798 = vmatprep.subr.bf16.mxu0 0
      %799 = vmatpush1.bf16.xpose.msra.mxu0 %v752
      %800 = vmatprep.subr.bf16.mxu0 0
      %801 = vmatpush1.bf16.xpose.msra.mxu0 %v753
      %802 = vmatprep.mubr.bf16.mxu0 0
      %803 = vmatmul.mubr.bf16.gmra.mrb[0].mxu0 %v642
      %v804 = vpop.f32.mrb[0].mxu0
      %v805 = vadd.f32 0.0, %v804
      %v806 = vpop.f32.mrb[0].mxu0
      %v807 = vadd.f32 0.0, %v806
      %v808 = vpop.f32.mrb[0].mxu0
      %v809 = vadd.f32 0.0, %v808
      %v810 = vpop.f32.mrb[0].mxu0
      %v811 = vadd.f32 0.0, %v810
      %812 = vmatprep.mubr.bf16.mxu0 0
      %813 = vmatmul.mubr.bf16.gmra.mrb[0].mxu0 %v643
      %v814 = vpop.f32.mrb[0].mxu0
      %v815 = vadd.f32 0.0, %v814
      %v816 = vpop.f32.mrb[0].mxu0
      %v817 = vadd.f32 0.0, %v816
      %v818 = vpop.f32.mrb[0].mxu0
      %v819 = vadd.f32 0.0, %v818
      %v820 = vpop.f32.mrb[0].mxu0
      %v821 = vadd.f32 0.0, %v820
      %822 = vmatprep.mubr.bf16.mxu0 0
      %823 = vmatmul.mubr.bf16.gmra.mrb[0].mxu0 %v644
      %v824 = vpop.f32.mrb[0].mxu0
      %v825 = vadd.f32 0.0, %v824
      %v826 = vpop.f32.mrb[0].mxu0
      %v827 = vadd.f32 0.0, %v826
      %v828 = vpop.f32.mrb[0].mxu0
      %v829 = vadd.f32 0.0, %v828
      %v830 = vpop.f32.mrb[0].mxu0
      %v831 = vadd.f32 0.0, %v830
      %832 = vmatprep.mubr.bf16.mxu0 0
      %833 = vmatmul.mubr.bf16.gmra.mrb[0].mxu0 %v645
      %v834 = vpop.f32.mrb[0].mxu0
      %v835 = vadd.f32 0.0, %v834
      %v836 = vpop.f32.mrb[0].mxu0
      %v837 = vadd.f32 0.0, %v836
      %v838 = vpop.f32.mrb[0].mxu0
      %v839 = vadd.f32 0.0, %v838
      %v840 = vpop.f32.mrb[0].mxu0
      %v841 = vadd.f32 0.0, %v840
      %842 = vmatprep.mubr.bf16.mxu0 0
      %843 = vmatmul.mubr.bf16.gmra.mrb[0].mxu0 %v646
      %v844 = vpop.f32.mrb[0].mxu0
      %v845 = vadd.f32 0.0, %v844
      %v846 = vpop.f32.mrb[0].mxu0
      %v847 = vadd.f32 0.0, %v846
      %v848 = vpop.f32.mrb[0].mxu0
      %v849 = vadd.f32 0.0, %v848
      %v850 = vpop.f32.mrb[0].mxu0
      %v851 = vadd.f32 0.0, %v850
      %852 = vmatprep.mubr.bf16.mxu0 0
      %853 = vmatmul.mubr.bf16.gmra.mrb[0].mxu0 %v647
      %v854 = vpop.f32.mrb[0].mxu0
      %v855 = vadd.f32 0.0, %v854
      %v856 = vpop.f32.mrb[0].mxu0
      %v857 = vadd.f32 0.0, %v856
      %v858 = vpop.f32.mrb[0].mxu0
      %v859 = vadd.f32 0.0, %v858
      %v860 = vpop.f32.mrb[0].mxu0
      %v861 = vadd.f32 0.0, %v860
      %862 = vmatprep.mubr.bf16.mxu0 0
      %863 = vmatmul.mubr.bf16.gmra.mrb[0].mxu0 %v648
      %v864 = vpop.f32.mrb[0].mxu0
      %v865 = vadd.f32 0.0, %v864
      %v866 = vpop.f32.mrb[0].mxu0
      %v867 = vadd.f32 0.0, %v866
      %v868 = vpop.f32.mrb[0].mxu0
      %v869 = vadd.f32 0.0, %v868
      %v870 = vpop.f32.mrb[0].mxu0
      %v871 = vadd.f32 0.0, %v870
      %872 = vmatprep.mubr.bf16.mxu0 0
      %873 = vmatmul.mubr.bf16.gmra.mrb[0].mxu0 %v649
      %v874 = vpop.f32.mrb[0].mxu0
      %v875 = vadd.f32 0.0, %v874
      %v876 = vpop.f32.mrb[0].mxu0
      %v877 = vadd.f32 0.0, %v876
      %v878 = vpop.f32.mrb[0].mxu0
      %v879 = vadd.f32 0.0, %v878
      %v880 = vpop.f32.mrb[0].mxu0
      %v881 = vadd.f32 0.0, %v880
      %882 = vmatprep.mubr.bf16.mxu0 0
      %883 = vmatmul.mubr.bf16.gmra.mrb[0].mxu0 %v650
      %v884 = vpop.f32.mrb[0].mxu0
      %v885 = vadd.f32 0.0, %v884
      %v886 = vpop.f32.mrb[0].mxu0
      %v887 = vadd.f32 0.0, %v886
      %v888 = vpop.f32.mrb[0].mxu0
      %v889 = vadd.f32 0.0, %v888
      %v890 = vpop.f32.mrb[0].mxu0
      %v891 = vadd.f32 0.0, %v890
      %892 = vmatprep.mubr.bf16.mxu0 0
      %893 = vmatmul.mubr.bf16.gmra.mrb[0].mxu0 %v651
      %v894 = vpop.f32.mrb[0].mxu0
      %v895 = vadd.f32 0.0, %v894
      %v896 = vpop.f32.mrb[0].mxu0
      %v897 = vadd.f32 0.0, %v896
      %v898 = vpop.f32.mrb[0].mxu0
      %v899 = vadd.f32 0.0, %v898
      %v900 = vpop.f32.mrb[0].mxu0
      %v901 = vadd.f32 0.0, %v900
      %902 = vmatprep.mubr.bf16.mxu0 0
      %903 = vmatmul.mubr.bf16.gmra.mrb[0].mxu0 %v652
      %v904 = vpop.f32.mrb[0].mxu0
      %v905 = vadd.f32 0.0, %v904
      %v906 = vpop.f32.mrb[0].mxu0
      %v907 = vadd.f32 0.0, %v906
      %v908 = vpop.f32.mrb[0].mxu0
      %v909 = vadd.f32 0.0, %v908
      %v910 = vpop.f32.mrb[0].mxu0
      %v911 = vadd.f32 0.0, %v910
      %912 = vmatprep.mubr.bf16.mxu0 0
      %913 = vmatmul.mubr.bf16.gmra.mrb[0].mxu0 %v653
      %v914 = vpop.f32.mrb[0].mxu0
      %v915 = vadd.f32 0.0, %v914
      %v916 = vpop.f32.mrb[0].mxu0
      %v917 = vadd.f32 0.0, %v916
      %v918 = vpop.f32.mrb[0].mxu0
      %v919 = vadd.f32 0.0, %v918
      %v920 = vpop.f32.mrb[0].mxu0
      %v921 = vadd.f32 0.0, %v920
      %922 = vmatprep.mubr.bf16.mxu0 0
      %923 = vmatmul.mubr.bf16.gmra.mrb[0].mxu0 %v654
      %v924 = vpop.f32.mrb[0].mxu0
      %v925 = vadd.f32 0.0, %v924
      %v926 = vpop.f32.mrb[0].mxu0
      %v927 = vadd.f32 0.0, %v926
      %v928 = vpop.f32.mrb[0].mxu0
      %v929 = vadd.f32 0.0, %v928
      %v930 = vpop.f32.mrb[0].mxu0
      %v931 = vadd.f32 0.0, %v930
      %932 = vmatprep.mubr.bf16.mxu0 0
      %933 = vmatmul.mubr.bf16.gmra.mrb[0].mxu0 %v655
      %v934 = vpop.f32.mrb[0].mxu0
      %v935 = vadd.f32 0.0, %v934
      %v936 = vpop.f32.mrb[0].mxu0
      %v937 = vadd.f32 0.0, %v936
      %v938 = vpop.f32.mrb[0].mxu0
      %v939 = vadd.f32 0.0, %v938
      %v940 = vpop.f32.mrb[0].mxu0
      %v941 = vadd.f32 0.0, %v940
      %942 = vmatprep.mubr.bf16.mxu0 0
      %943 = vmatmul.mubr.bf16.gmra.mrb[0].mxu0 %v656
      %v944 = vpop.f32.mrb[0].mxu0
      %v945 = vadd.f32 0.0, %v944
      %v946 = vpop.f32.mrb[0].mxu0
      %v947 = vadd.f32 0.0, %v946
      %v948 = vpop.f32.mrb[0].mxu0
      %v949 = vadd.f32 0.0, %v948
      %v950 = vpop.f32.mrb[0].mxu0
      %v951 = vadd.f32 0.0, %v950
      %952 = vmatprep.mubr.bf16.mxu0 0
      %953 = vmatmul.mubr.bf16.gmra.mrb[0].mxu0 %v657
      %v954 = vpop.f32.mrb[0].mxu0
      %v955 = vadd.f32 0.0, %v954
      %v956 = vpop.f32.mrb[0].mxu0
      %v957 = vadd.f32 0.0, %v956
      %v958 = vpop.f32.mrb[0].mxu0
      %v959 = vadd.f32 0.0, %v958
      %v960 = vpop.f32.mrb[0].mxu0
      %v961 = vadd.f32 0.0, %v960
      %962 = vdwg.mxu0
      %v963 = vld [vmem:[#allocation2] sm:$0xff]
      %v964 = vld [vmem:[#allocation2 + $0x8] sm:$0xff]
      %v965 = vld [vmem:[#allocation2 + $0x10] sm:$0xff]
      %v966 = vld [vmem:[#allocation2 + $0x18] sm:$0xff]
      %v967 = vld [vmem:[#allocation2 + $0x20] sm:$0xff]
      %v968 = vld [vmem:[#allocation2 + $0x28] sm:$0xff]
      %v969 = vld [vmem:[#allocation2 + $0x30] sm:$0xff]
      %v970 = vld [vmem:[#allocation2 + $0x38] sm:$0xff]
      %v971 = vld [vmem:[#allocation2 + $0x40] sm:$0xff]
      %v972 = vld [vmem:[#allocation2 + $0x48] sm:$0xff]
      %v973 = vld [vmem:[#allocation2 + $0x50] sm:$0xff]
      %v974 = vld [vmem:[#allocation2 + $0x58] sm:$0xff]
      %v975 = vld [vmem:[#allocation2 + $0x60] sm:$0xff]
      %v976 = vld [vmem:[#allocation2 + $0x68] sm:$0xff]
      %v977 = vld [vmem:[#allocation2 + $0x70] sm:$0xff]
      %v978 = vld [vmem:[#allocation2 + $0x78] sm:$0xff]
      %v979 = vld [vmem:[#allocation2 + $0x80] sm:$0xff]
      %v980 = vld [vmem:[#allocation2 + $0x88] sm:$0xff]
      %v981 = vld [vmem:[#allocation2 + $0x90] sm:$0xff]
      %v982 = vld [vmem:[#allocation2 + $0x98] sm:$0xff]
      %v983 = vld [vmem:[#allocation2 + $0xa0] sm:$0xff]
      %v984 = vld [vmem:[#allocation2 + $0xa8] sm:$0xff]
      %v985 = vld [vmem:[#allocation2 + $0xb0] sm:$0xff]
      %v986 = vld [vmem:[#allocation2 + $0xb8] sm:$0xff]
      %v987 = vld [vmem:[#allocation2 + $0xc0] sm:$0xff]
      %v988 = vld [vmem:[#allocation2 + $0xc8] sm:$0xff]
      %v989 = vld [vmem:[#allocation2 + $0xd0] sm:$0xff]
      %v990 = vld [vmem:[#allocation2 + $0xd8] sm:$0xff]
      %v991 = vld [vmem:[#allocation2 + $0xe0] sm:$0xff]
      %v992 = vld [vmem:[#allocation2 + $0xe8] sm:$0xff]
      %v993 = vld [vmem:[#allocation2 + $0xf0] sm:$0xff]
      %v994 = vld [vmem:[#allocation2 + $0xf8] sm:$0xff]
      %v995 = vld [vmem:[#allocation3] sm:$0xff]
      %v996 = vld [vmem:[#allocation3 + $0x8] sm:$0xff]
      %v997 = vld [vmem:[#allocation3 + $0x10] sm:$0xff]
      %v998 = vld [vmem:[#allocation3 + $0x18] sm:$0xff]
      %v999 = vld [vmem:[#allocation3 + $0x20] sm:$0xff]
      %v1000 = vld [vmem:[#allocation3 + $0x28] sm:$0xff]
      %v1001 = vld [vmem:[#allocation3 + $0x30] sm:$0xff]
      %v1002 = vld [vmem:[#allocation3 + $0x38] sm:$0xff]
      %v1003 = vld [vmem:[#allocation3 + $0x40] sm:$0xff]
      %v1004 = vld [vmem:[#allocation3 + $0x48] sm:$0xff]
      %v1005 = vld [vmem:[#allocation3 + $0x50] sm:$0xff]
      %v1006 = vld [vmem:[#allocation3 + $0x58] sm:$0xff]
      %v1007 = vld [vmem:[#allocation3 + $0x60] sm:$0xff]
      %v1008 = vld [vmem:[#allocation3 + $0x68] sm:$0xff]
      %v1009 = vld [vmem:[#allocation3 + $0x70] sm:$0xff]
      %v1010 = vld [vmem:[#allocation3 + $0x78] sm:$0xff]
      %v1011 = vld [vmem:[#allocation3 + $0x80] sm:$0xff]
      %v1012 = vld [vmem:[#allocation3 + $0x88] sm:$0xff]
      %v1013 = vld [vmem:[#allocation3 + $0x90] sm:$0xff]
      %v1014 = vld [vmem:[#allocation3 + $0x98] sm:$0xff]
      %v1015 = vld [vmem:[#allocation3 + $0xa0] sm:$0xff]
      %v1016 = vld [vmem:[#allocation3 + $0xa8] sm:$0xff]
      %v1017 = vld [vmem:[#allocation3 + $0xb0] sm:$0xff]
      %v1018 = vld [vmem:[#allocation3 + $0xb8] sm:$0xff]
      %v1019 = vld [vmem:[#allocation3 + $0xc0] sm:$0xff]
      %v1020 = vld [vmem:[#allocation3 + $0xc8] sm:$0xff]
      %v1021 = vld [vmem:[#allocation3 + $0xd0] sm:$0xff]
      %v1022 = vld [vmem:[#allocation3 + $0xd8] sm:$0xff]
      %v1023 = vld [vmem:[#allocation3 + $0xe0] sm:$0xff]
      %v1024 = vld [vmem:[#allocation3 + $0xe8] sm:$0xff]
      %v1025 = vld [vmem:[#allocation3 + $0xf0] sm:$0xff]
      %v1026 = vld [vmem:[#allocation3 + $0xf8] sm:$0xff]
      %v1027 = vmax.f32 %v805, %v807
      %1028 = vmax.xlane.f32.xlu0 %v1027
      %v1029 = vpop.xlane.xlu0 %1028
      %v1030 = vmax.f32 %v809, %v811
      %1031 = vmax.xlane.f32.xlu0 %v1030
      %v1032 = vpop.xlane.xlu0 %1031
      %v1033 = vmax.f32 %v815, %v817
      %1034 = vmax.xlane.f32.xlu0 %v1033
      %v1035 = vpop.xlane.xlu0 %1034
      %v1036 = vmax.f32 %v819, %v821
      %1037 = vmax.xlane.f32.xlu0 %v1036
      %v1038 = vpop.xlane.xlu0 %1037
      %v1039 = vmax.f32 %v825, %v827
      %1040 = vmax.xlane.f32.xlu0 %v1039
      %v1041 = vpop.xlane.xlu0 %1040
      %v1042 = vmax.f32 %v829, %v831
      %1043 = vmax.xlane.f32.xlu0 %v1042
      %v1044 = vpop.xlane.xlu0 %1043
      %v1045 = vmax.f32 %v835, %v837
      %1046 = vmax.xlane.f32.xlu0 %v1045
      %v1047 = vpop.xlane.xlu0 %1046
      %v1048 = vmax.f32 %v839, %v841
      %1049 = vmax.xlane.f32.xlu0 %v1048
      %v1050 = vpop.xlane.xlu0 %1049
      %v1051 = vmax.f32 %v845, %v847
      %1052 = vmax.xlane.f32.xlu0 %v1051
      %v1053 = vpop.xlane.xlu0 %1052
      %v1054 = vmax.f32 %v849, %v851
      %1055 = vmax.xlane.f32.xlu0 %v1054
      %v1056 = vpop.xlane.xlu0 %1055
      %v1057 = vmax.f32 %v855, %v857
      %1058 = vmax.xlane.f32.xlu0 %v1057
      %v1059 = vpop.xlane.xlu0 %1058
      %v1060 = vmax.f32 %v859, %v861
      %1061 = vmax.xlane.f32.xlu0 %v1060
      %v1062 = vpop.xlane.xlu0 %1061
      %v1063 = vmax.f32 %v865, %v867
      %1064 = vmax.xlane.f32.xlu0 %v1063
      %v1065 = vpop.xlane.xlu0 %1064
      %v1066 = vmax.f32 %v869, %v871
      %1067 = vmax.xlane.f32.xlu0 %v1066
      %v1068 = vpop.xlane.xlu0 %1067
      %v1069 = vmax.f32 %v875, %v877
      %1070 = vmax.xlane.f32.xlu0 %v1069
      %v1071 = vpop.xlane.xlu0 %1070
      %v1072 = vmax.f32 %v879, %v881
      %1073 = vmax.xlane.f32.xlu0 %v1072
      %v1074 = vpop.xlane.xlu0 %1073
      %v1075 = vmax.f32 %v885, %v887
      %1076 = vmax.xlane.f32.xlu0 %v1075
      %v1077 = vpop.xlane.xlu0 %1076
      %v1078 = vmax.f32 %v889, %v891
      %1079 = vmax.xlane.f32.xlu0 %v1078
      %v1080 = vpop.xlane.xlu0 %1079
      %v1081 = vmax.f32 %v895, %v897
      %1082 = vmax.xlane.f32.xlu0 %v1081
      %v1083 = vpop.xlane.xlu0 %1082
      %v1084 = vmax.f32 %v899, %v901
      %1085 = vmax.xlane.f32.xlu0 %v1084
      %v1086 = vpop.xlane.xlu0 %1085
      %v1087 = vmax.f32 %v905, %v907
      %1088 = vmax.xlane.f32.xlu0 %v1087
      %v1089 = vpop.xlane.xlu0 %1088
      %v1090 = vmax.f32 %v909, %v911
      %1091 = vmax.xlane.f32.xlu0 %v1090
      %v1092 = vpop.xlane.xlu0 %1091
      %v1093 = vmax.f32 %v915, %v917
      %1094 = vmax.xlane.f32.xlu0 %v1093
      %v1095 = vpop.xlane.xlu0 %1094
      %v1096 = vmax.f32 %v919, %v921
      %1097 = vmax.xlane.f32.xlu0 %v1096
      %v1098 = vpop.xlane.xlu0 %1097
      %v1099 = vmax.f32 %v925, %v927
      %1100 = vmax.xlane.f32.xlu0 %v1099
      %v1101 = vpop.xlane.xlu0 %1100
      %v1102 = vmax.f32 %v929, %v931
      %1103 = vmax.xlane.f32.xlu0 %v1102
      %v1104 = vpop.xlane.xlu0 %1103
      %v1105 = vmax.f32 %v935, %v937
      %1106 = vmax.xlane.f32.xlu0 %v1105
      %v1107 = vpop.xlane.xlu0 %1106
      %v1108 = vmax.f32 %v939, %v941
      %1109 = vmax.xlane.f32.xlu0 %v1108
      %v1110 = vpop.xlane.xlu0 %1109
      %v1111 = vmax.f32 %v945, %v947
      %1112 = vmax.xlane.f32.xlu0 %v1111
      %v1113 = vpop.xlane.xlu0 %1112
      %v1114 = vmax.f32 %v949, %v951
      %1115 = vmax.xlane.f32.xlu0 %v1114
      %v1116 = vpop.xlane.xlu0 %1115
      %v1117 = vmax.f32 %v955, %v957
      %1118 = vmax.xlane.f32.xlu0 %v1117
      %v1119 = vpop.xlane.xlu0 %1118
      %v1120 = vmax.f32 %v959, %v961
      %1121 = vmax.xlane.f32.xlu0 %v1120
      %v1122 = vpop.xlane.xlu0 %1121
      %v1123 = vmax.f32 %v963, %v1029
      %v1124 = vmax.f32 %v964, %v1032
      %v1125 = vmax.f32 %v965, %v1035
      %v1126 = vmax.f32 %v966, %v1038
      %v1127 = vmax.f32 %v967, %v1041
      %v1128 = vmax.f32 %v968, %v1044
      %v1129 = vmax.f32 %v969, %v1047
      %v1130 = vmax.f32 %v970, %v1050
      %v1131 = vmax.f32 %v971, %v1053
      %v1132 = vmax.f32 %v972, %v1056
      %v1133 = vmax.f32 %v973, %v1059
      %v1134 = vmax.f32 %v974, %v1062
      %v1135 = vmax.f32 %v975, %v1065
      %v1136 = vmax.f32 %v976, %v1068
      %v1137 = vmax.f32 %v977, %v1071
      %v1138 = vmax.f32 %v978, %v1074
      %v1139 = vmax.f32 %v979, %v1077
      %v1140 = vmax.f32 %v980, %v1080
      %v1141 = vmax.f32 %v981, %v1083
      %v1142 = vmax.f32 %v982, %v1086
      %v1143 = vmax.f32 %v983, %v1089
      %v1144 = vmax.f32 %v984, %v1092
      %v1145 = vmax.f32 %v985, %v1095
      %v1146 = vmax.f32 %v986, %v1098
      %v1147 = vmax.f32 %v987, %v1101
      %v1148 = vmax.f32 %v988, %v1104
      %v1149 = vmax.f32 %v989, %v1107
      %v1150 = vmax.f32 %v990, %v1110
      %v1151 = vmax.f32 %v991, %v1113
      %v1152 = vmax.f32 %v992, %v1116
      %v1153 = vmax.f32 %v993, %v1119
      %v1154 = vmax.f32 %v994, %v1122
      %v1155 = vsub.f32 %v963, %v1123
      %v1156 = vsub.f32 %v964, %v1124
      %v1157 = vsub.f32 %v965, %v1125
      %v1158 = vsub.f32 %v966, %v1126
      %v1159 = vsub.f32 %v967, %v1127
      %v1160 = vsub.f32 %v968, %v1128
      %v1161 = vsub.f32 %v969, %v1129
      %v1162 = vsub.f32 %v970, %v1130
      %v1163 = vsub.f32 %v971, %v1131
      %v1164 = vsub.f32 %v972, %v1132
      %v1165 = vsub.f32 %v973, %v1133
      %v1166 = vsub.f32 %v974, %v1134
      %v1167 = vsub.f32 %v975, %v1135
      %v1168 = vsub.f32 %v976, %v1136
      %v1169 = vsub.f32 %v977, %v1137
      %v1170 = vsub.f32 %v978, %v1138
      %v1171 = vsub.f32 %v979, %v1139
      %v1172 = vsub.f32 %v980, %v1140
      %v1173 = vsub.f32 %v981, %v1141
      %v1174 = vsub.f32 %v982, %v1142
      %v1175 = vsub.f32 %v983, %v1143
      %v1176 = vsub.f32 %v984, %v1144
      %v1177 = vsub.f32 %v985, %v1145
      %v1178 = vsub.f32 %v986, %v1146
      %v1179 = vsub.f32 %v987, %v1147
      %v1180 = vsub.f32 %v988, %v1148
      %v1181 = vsub.f32 %v989, %v1149
      %v1182 = vsub.f32 %v990, %v1150
      %v1183 = vsub.f32 %v991, %v1151
      %v1184 = vsub.f32 %v992, %v1152
      %v1185 = vsub.f32 %v993, %v1153
      %v1186 = vsub.f32 %v994, %v1154
      %v1187 = vmul.f32 %v1155, 1.442695
      %v1188 = vpow.pop %v1187
      %v1189 = vmul.f32 %v1156, 1.442695
      %v1190 = vpow.pop %v1189
      %v1191 = vmul.f32 %v1157, 1.442695
      %v1192 = vpow.pop %v1191
      %v1193 = vmul.f32 %v1158, 1.442695
      %v1194 = vpow.pop %v1193
      %v1195 = vmul.f32 %v1159, 1.442695
      %v1196 = vpow.pop %v1195
      %v1197 = vmul.f32 %v1160, 1.442695
      %v1198 = vpow.pop %v1197
      %v1199 = vmul.f32 %v1161, 1.442695
      %v1200 = vpow.pop %v1199
      %v1201 = vmul.f32 %v1162, 1.442695
      %v1202 = vpow.pop %v1201
      %v1203 = vmul.f32 %v1163, 1.442695
      %v1204 = vpow.pop %v1203
      %v1205 = vmul.f32 %v1164, 1.442695
      %v1206 = vpow.pop %v1205
      %v1207 = vmul.f32 %v1165, 1.442695
      %v1208 = vpow.pop %v1207
      %v1209 = vmul.f32 %v1166, 1.442695
      %v1210 = vpow.pop %v1209
      %v1211 = vmul.f32 %v1167, 1.442695
      %v1212 = vpow.pop %v1211
      %v1213 = vmul.f32 %v1168, 1.442695
      %v1214 = vpow.pop %v1213
      %v1215 = vmul.f32 %v1169, 1.442695
      %v1216 = vpow.pop %v1215
      %v1217 = vmul.f32 %v1170, 1.442695
      %v1218 = vpow.pop %v1217
      %v1219 = vmul.f32 %v1171, 1.442695
      %v1220 = vpow.pop %v1219
      %v1221 = vmul.f32 %v1172, 1.442695
      %v1222 = vpow.pop %v1221
      %v1223 = vmul.f32 %v1173, 1.442695
      %v1224 = vpow.pop %v1223
      %v1225 = vmul.f32 %v1174, 1.442695
      %v1226 = vpow.pop %v1225
      %v1227 = vmul.f32 %v1175, 1.442695
      %v1228 = vpow.pop %v1227
      %v1229 = vmul.f32 %v1176, 1.442695
      %v1230 = vpow.pop %v1229
      %v1231 = vmul.f32 %v1177, 1.442695
      %v1232 = vpow.pop %v1231
      %v1233 = vmul.f32 %v1178, 1.442695
      %v1234 = vpow.pop %v1233
      %v1235 = vmul.f32 %v1179, 1.442695
      %v1236 = vpow.pop %v1235
      %v1237 = vmul.f32 %v1180, 1.442695
      %v1238 = vpow.pop %v1237
      %v1239 = vmul.f32 %v1181, 1.442695
      %v1240 = vpow.pop %v1239
      %v1241 = vmul.f32 %v1182, 1.442695
      %v1242 = vpow.pop %v1241
      %v1243 = vmul.f32 %v1183, 1.442695
      %v1244 = vpow.pop %v1243
      %v1245 = vmul.f32 %v1184, 1.442695
      %v1246 = vpow.pop %v1245
      %v1247 = vmul.f32 %v1185, 1.442695
      %v1248 = vpow.pop %v1247
      %v1249 = vmul.f32 %v1186, 1.442695
      %v1250 = vpow.pop %v1249
      %v1251 = vsub.f32 %v805, %v1123
      %v1252 = vsub.f32 %v807, %v1123
      %v1253 = vsub.f32 %v809, %v1124
      %v1254 = vsub.f32 %v811, %v1124
      %v1255 = vsub.f32 %v815, %v1125
      %v1256 = vsub.f32 %v817, %v1125
      %v1257 = vsub.f32 %v819, %v1126
      %v1258 = vsub.f32 %v821, %v1126
      %v1259 = vsub.f32 %v825, %v1127
      %v1260 = vsub.f32 %v827, %v1127
      %v1261 = vsub.f32 %v829, %v1128
      %v1262 = vsub.f32 %v831, %v1128
      %v1263 = vsub.f32 %v835, %v1129
      %v1264 = vsub.f32 %v837, %v1129
      %v1265 = vsub.f32 %v839, %v1130
      %v1266 = vsub.f32 %v841, %v1130
      %v1267 = vsub.f32 %v845, %v1131
      %v1268 = vsub.f32 %v847, %v1131
      %v1269 = vsub.f32 %v849, %v1132
      %v1270 = vsub.f32 %v851, %v1132
      %v1271 = vsub.f32 %v855, %v1133
      %v1272 = vsub.f32 %v857, %v1133
      %v1273 = vsub.f32 %v859, %v1134
      %v1274 = vsub.f32 %v861, %v1134
      %v1275 = vsub.f32 %v865, %v1135
      %v1276 = vsub.f32 %v867, %v1135
      %v1277 = vsub.f32 %v869, %v1136
      %v1278 = vsub.f32 %v871, %v1136
      %v1279 = vsub.f32 %v875, %v1137
      %v1280 = vsub.f32 %v877, %v1137
      %v1281 = vsub.f32 %v879, %v1138
      %v1282 = vsub.f32 %v881, %v1138
      %v1283 = vsub.f32 %v885, %v1139
      %v1284 = vsub.f32 %v887, %v1139
      %v1285 = vsub.f32 %v889, %v1140
      %v1286 = vsub.f32 %v891, %v1140
      %v1287 = vsub.f32 %v895, %v1141
      %v1288 = vsub.f32 %v897, %v1141
      %v1289 = vsub.f32 %v899, %v1142
      %v1290 = vsub.f32 %v901, %v1142
      %v1291 = vsub.f32 %v905, %v1143
      %v1292 = vsub.f32 %v907, %v1143
      %v1293 = vsub.f32 %v909, %v1144
      %v1294 = vsub.f32 %v911, %v1144
      %v1295 = vsub.f32 %v915, %v1145
      %v1296 = vsub.f32 %v917, %v1145
      %v1297 = vsub.f32 %v919, %v1146
      %v1298 = vsub.f32 %v921, %v1146
      %v1299 = vsub.f32 %v925, %v1147
      %v1300 = vsub.f32 %v927, %v1147
      %v1301 = vsub.f32 %v929, %v1148
      %v1302 = vsub.f32 %v931, %v1148
      %v1303 = vsub.f32 %v935, %v1149
      %v1304 = vsub.f32 %v937, %v1149
      %v1305 = vsub.f32 %v939, %v1150
      %v1306 = vsub.f32 %v941, %v1150
      %v1307 = vsub.f32 %v945, %v1151
      %v1308 = vsub.f32 %v947, %v1151
      %v1309 = vsub.f32 %v949, %v1152
      %v1310 = vsub.f32 %v951, %v1152
      %v1311 = vsub.f32 %v955, %v1153
      %v1312 = vsub.f32 %v957, %v1153
      %v1313 = vsub.f32 %v959, %v1154
      %v1314 = vsub.f32 %v961, %v1154
      %v1315 = vmul.f32 %v1251, 1.442695
      %v1316 = vpow.pop %v1315
      %v1317 = vmul.f32 %v1252, 1.442695
      %v1318 = vpow.pop %v1317
      %v1319 = vmul.f32 %v1253, 1.442695
      %v1320 = vpow.pop %v1319
      %v1321 = vmul.f32 %v1254, 1.442695
      %v1322 = vpow.pop %v1321
      %v1323 = vmul.f32 %v1255, 1.442695
      %v1324 = vpow.pop %v1323
      %v1325 = vmul.f32 %v1256, 1.442695
      %v1326 = vpow.pop %v1325
      %v1327 = vmul.f32 %v1257, 1.442695
      %v1328 = vpow.pop %v1327
      %v1329 = vmul.f32 %v1258, 1.442695
      %v1330 = vpow.pop %v1329
      %v1331 = vmul.f32 %v1259, 1.442695
      %v1332 = vpow.pop %v1331
      %v1333 = vmul.f32 %v1260, 1.442695
      %v1334 = vpow.pop %v1333
      %v1335 = vmul.f32 %v1261, 1.442695
      %v1336 = vpow.pop %v1335
      %v1337 = vmul.f32 %v1262, 1.442695
      %v1338 = vpow.pop %v1337
      %v1339 = vmul.f32 %v1263, 1.442695
      %v1340 = vpow.pop %v1339
      %v1341 = vmul.f32 %v1264, 1.442695
      %v1342 = vpow.pop %v1341
      %v1343 = vmul.f32 %v1265, 1.442695
      %v1344 = vpow.pop %v1343
      %v1345 = vmul.f32 %v1266, 1.442695
      %v1346 = vpow.pop %v1345
      %v1347 = vmul.f32 %v1267, 1.442695
      %v1348 = vpow.pop %v1347
      %v1349 = vmul.f32 %v1268, 1.442695
      %v1350 = vpow.pop %v1349
      %v1351 = vmul.f32 %v1269, 1.442695
      %v1352 = vpow.pop %v1351
      %v1353 = vmul.f32 %v1270, 1.442695
      %v1354 = vpow.pop %v1353
      %v1355 = vmul.f32 %v1271, 1.442695
      %v1356 = vpow.pop %v1355
      %v1357 = vmul.f32 %v1272, 1.442695
      %v1358 = vpow.pop %v1357
      %v1359 = vmul.f32 %v1273, 1.442695
      %v1360 = vpow.pop %v1359
      %v1361 = vmul.f32 %v1274, 1.442695
      %v1362 = vpow.pop %v1361
      %v1363 = vmul.f32 %v1275, 1.442695
      %v1364 = vpow.pop %v1363
      %v1365 = vmul.f32 %v1276, 1.442695
      %v1366 = vpow.pop %v1365
      %v1367 = vmul.f32 %v1277, 1.442695
      %v1368 = vpow.pop %v1367
      %v1369 = vmul.f32 %v1278, 1.442695
      %v1370 = vpow.pop %v1369
      %v1371 = vmul.f32 %v1279, 1.442695
      %v1372 = vpow.pop %v1371
      %v1373 = vmul.f32 %v1280, 1.442695
      %v1374 = vpow.pop %v1373
      %v1375 = vmul.f32 %v1281, 1.442695
      %v1376 = vpow.pop %v1375
      %v1377 = vmul.f32 %v1282, 1.442695
      %v1378 = vpow.pop %v1377
      %v1379 = vmul.f32 %v1283, 1.442695
      %v1380 = vpow.pop %v1379
      %v1381 = vmul.f32 %v1284, 1.442695
      %v1382 = vpow.pop %v1381
      %v1383 = vmul.f32 %v1285, 1.442695
      %v1384 = vpow.pop %v1383
      %v1385 = vmul.f32 %v1286, 1.442695
      %v1386 = vpow.pop %v1385
      %v1387 = vmul.f32 %v1287, 1.442695
      %v1388 = vpow.pop %v1387
      %v1389 = vmul.f32 %v1288, 1.442695
      %v1390 = vpow.pop %v1389
      %v1391 = vmul.f32 %v1289, 1.442695
      %v1392 = vpow.pop %v1391
      %v1393 = vmul.f32 %v1290, 1.442695
      %v1394 = vpow.pop %v1393
      %v1395 = vmul.f32 %v1291, 1.442695
      %v1396 = vpow.pop %v1395
      %v1397 = vmul.f32 %v1292, 1.442695
      %v1398 = vpow.pop %v1397
      %v1399 = vmul.f32 %v1293, 1.442695
      %v1400 = vpow.pop %v1399
      %v1401 = vmul.f32 %v1294, 1.442695
      %v1402 = vpow.pop %v1401
      %v1403 = vmul.f32 %v1295, 1.442695
      %v1404 = vpow.pop %v1403
      %v1405 = vmul.f32 %v1296, 1.442695
      %v1406 = vpow.pop %v1405
      %v1407 = vmul.f32 %v1297, 1.442695
      %v1408 = vpow.pop %v1407
      %v1409 = vmul.f32 %v1298, 1.442695
      %v1410 = vpow.pop %v1409
      %v1411 = vmul.f32 %v1299, 1.442695
      %v1412 = vpow.pop %v1411
      %v1413 = vmul.f32 %v1300, 1.442695
      %v1414 = vpow.pop %v1413
      %v1415 = vmul.f32 %v1301, 1.442695
      %v1416 = vpow.pop %v1415
      %v1417 = vmul.f32 %v1302, 1.442695
      %v1418 = vpow.pop %v1417
      %v1419 = vmul.f32 %v1303, 1.442695
      %v1420 = vpow.pop %v1419
      %v1421 = vmul.f32 %v1304, 1.442695
      %v1422 = vpow.pop %v1421
      %v1423 = vmul.f32 %v1305, 1.442695
      %v1424 = vpow.pop %v1423
      %v1425 = vmul.f32 %v1306, 1.442695
      %v1426 = vpow.pop %v1425
      %v1427 = vmul.f32 %v1307, 1.442695
      %v1428 = vpow.pop %v1427
      %v1429 = vmul.f32 %v1308, 1.442695
      %v1430 = vpow.pop %v1429
      %v1431 = vmul.f32 %v1309, 1.442695
      %v1432 = vpow.pop %v1431
      %v1433 = vmul.f32 %v1310, 1.442695
      %v1434 = vpow.pop %v1433
      %v1435 = vmul.f32 %v1311, 1.442695
      %v1436 = vpow.pop %v1435
      %v1437 = vmul.f32 %v1312, 1.442695
      %v1438 = vpow.pop %v1437
      %v1439 = vmul.f32 %v1313, 1.442695
      %v1440 = vpow.pop %v1439
      %v1441 = vmul.f32 %v1314, 1.442695
      %v1442 = vpow.pop %v1441
      %v1443 = vmul.f32 %v1188, %v995
      %v1444 = vmul.f32 %v1190, %v996
      %v1445 = vmul.f32 %v1192, %v997
      %v1446 = vmul.f32 %v1194, %v998
      %v1447 = vmul.f32 %v1196, %v999
      %v1448 = vmul.f32 %v1198, %v1000
      %v1449 = vmul.f32 %v1200, %v1001
      %v1450 = vmul.f32 %v1202, %v1002
      %v1451 = vmul.f32 %v1204, %v1003
      %v1452 = vmul.f32 %v1206, %v1004
      %v1453 = vmul.f32 %v1208, %v1005
      %v1454 = vmul.f32 %v1210, %v1006
      %v1455 = vmul.f32 %v1212, %v1007
      %v1456 = vmul.f32 %v1214, %v1008
      %v1457 = vmul.f32 %v1216, %v1009
      %v1458 = vmul.f32 %v1218, %v1010
      %v1459 = vmul.f32 %v1220, %v1011
      %v1460 = vmul.f32 %v1222, %v1012
      %v1461 = vmul.f32 %v1224, %v1013
      %v1462 = vmul.f32 %v1226, %v1014
      %v1463 = vmul.f32 %v1228, %v1015
      %v1464 = vmul.f32 %v1230, %v1016
      %v1465 = vmul.f32 %v1232, %v1017
      %v1466 = vmul.f32 %v1234, %v1018
      %v1467 = vmul.f32 %v1236, %v1019
      %v1468 = vmul.f32 %v1238, %v1020
      %v1469 = vmul.f32 %v1240, %v1021
      %v1470 = vmul.f32 %v1242, %v1022
      %v1471 = vmul.f32 %v1244, %v1023
      %v1472 = vmul.f32 %v1246, %v1024
      %v1473 = vmul.f32 %v1248, %v1025
      %v1474 = vmul.f32 %v1250, %v1026
      %v1475 = vadd.f32 %v1316, %v1318
      %1476 = vadd.xlane.f32.xlu0 %v1475
      %v1477 = vpop.xlane.xlu0 %1476
      %v1478 = vadd.f32 %v1320, %v1322
      %1479 = vadd.xlane.f32.xlu0 %v1478
      %v1480 = vpop.xlane.xlu0 %1479
      %v1481 = vadd.f32 %v1324, %v1326
      %1482 = vadd.xlane.f32.xlu0 %v1481
      %v1483 = vpop.xlane.xlu0 %1482
      %v1484 = vadd.f32 %v1328, %v1330
      %1485 = vadd.xlane.f32.xlu0 %v1484
      %v1486 = vpop.xlane.xlu0 %1485
      %v1487 = vadd.f32 %v1332, %v1334
      %1488 = vadd.xlane.f32.xlu0 %v1487
      %v1489 = vpop.xlane.xlu0 %1488
      %v1490 = vadd.f32 %v1336, %v1338
      %1491 = vadd.xlane.f32.xlu0 %v1490
      %v1492 = vpop.xlane.xlu0 %1491
      %v1493 = vadd.f32 %v1340, %v1342
      %1494 = vadd.xlane.f32.xlu0 %v1493
      %v1495 = vpop.xlane.xlu0 %1494
      %v1496 = vadd.f32 %v1344, %v1346
      %1497 = vadd.xlane.f32.xlu0 %v1496
      %v1498 = vpop.xlane.xlu0 %1497
      %v1499 = vadd.f32 %v1348, %v1350
      %1500 = vadd.xlane.f32.xlu0 %v1499
      %v1501 = vpop.xlane.xlu0 %1500
      %v1502 = vadd.f32 %v1352, %v1354
      %1503 = vadd.xlane.f32.xlu0 %v1502
      %v1504 = vpop.xlane.xlu0 %1503
      %v1505 = vadd.f32 %v1356, %v1358
      %1506 = vadd.xlane.f32.xlu0 %v1505
      %v1507 = vpop.xlane.xlu0 %1506
      %v1508 = vadd.f32 %v1360, %v1362
      %1509 = vadd.xlane.f32.xlu0 %v1508
      %v1510 = vpop.xlane.xlu0 %1509
      %v1511 = vadd.f32 %v1364, %v1366
      %1512 = vadd.xlane.f32.xlu0 %v1511
      %v1513 = vpop.xlane.xlu0 %1512
      %v1514 = vadd.f32 %v1368, %v1370
      %1515 = vadd.xlane.f32.xlu0 %v1514
      %v1516 = vpop.xlane.xlu0 %1515
      %v1517 = vadd.f32 %v1372, %v1374
      %1518 = vadd.xlane.f32.xlu0 %v1517
      %v1519 = vpop.xlane.xlu0 %1518
      %v1520 = vadd.f32 %v1376, %v1378
      %1521 = vadd.xlane.f32.xlu0 %v1520
      %v1522 = vpop.xlane.xlu0 %1521
      %v1523 = vadd.f32 %v1380, %v1382
      %1524 = vadd.xlane.f32.xlu0 %v1523
      %v1525 = vpop.xlane.xlu0 %1524
      %v1526 = vadd.f32 %v1384, %v1386
      %1527 = vadd.xlane.f32.xlu0 %v1526
      %v1528 = vpop.xlane.xlu0 %1527
      %v1529 = vadd.f32 %v1388, %v1390
      %1530 = vadd.xlane.f32.xlu0 %v1529
      %v1531 = vpop.xlane.xlu0 %1530
      %v1532 = vadd.f32 %v1392, %v1394
      %1533 = vadd.xlane.f32.xlu0 %v1532
      %v1534 = vpop.xlane.xlu0 %1533
      %v1535 = vadd.f32 %v1396, %v1398
      %1536 = vadd.xlane.f32.xlu0 %v1535
      %v1537 = vpop.xlane.xlu0 %1536
      %v1538 = vadd.f32 %v1400, %v1402
      %1539 = vadd.xlane.f32.xlu0 %v1538
      %v1540 = vpop.xlane.xlu0 %1539
      %v1541 = vadd.f32 %v1404, %v1406
      %1542 = vadd.xlane.f32.xlu0 %v1541
      %v1543 = vpop.xlane.xlu0 %1542
      %v1544 = vadd.f32 %v1408, %v1410
      %1545 = vadd.xlane.f32.xlu0 %v1544
      %v1546 = vpop.xlane.xlu0 %1545
      %v1547 = vadd.f32 %v1412, %v1414
      %1548 = vadd.xlane.f32.xlu0 %v1547
      %v1549 = vpop.xlane.xlu0 %1548
      %v1550 = vadd.f32 %v1416, %v1418
      %1551 = vadd.xlane.f32.xlu0 %v1550
      %v1552 = vpop.xlane.xlu0 %1551
      %v1553 = vadd.f32 %v1420, %v1422
      %1554 = vadd.xlane.f32.xlu0 %v1553
      %v1555 = vpop.xlane.xlu0 %1554
      %v1556 = vadd.f32 %v1424, %v1426
      %1557 = vadd.xlane.f32.xlu0 %v1556
      %v1558 = vpop.xlane.xlu0 %1557
      %v1559 = vadd.f32 %v1428, %v1430
      %1560 = vadd.xlane.f32.xlu0 %v1559
      %v1561 = vpop.xlane.xlu0 %1560
      %v1562 = vadd.f32 %v1432, %v1434
      %1563 = vadd.xlane.f32.xlu0 %v1562
      %v1564 = vpop.xlane.xlu0 %1563
      %v1565 = vadd.f32 %v1436, %v1438
      %1566 = vadd.xlane.f32.xlu0 %v1565
      %v1567 = vpop.xlane.xlu0 %1566
      %v1568 = vadd.f32 %v1440, %v1442
      %1569 = vadd.xlane.f32.xlu0 %v1568
      %v1570 = vpop.xlane.xlu0 %1569
      %v1571 = vadd.f32 %v1443, %v1477
      %v1572 = vadd.f32 %v1444, %v1480
      %v1573 = vadd.f32 %v1445, %v1483
      %v1574 = vadd.f32 %v1446, %v1486
      %v1575 = vadd.f32 %v1447, %v1489
      %v1576 = vadd.f32 %v1448, %v1492
      %v1577 = vadd.f32 %v1449, %v1495
      %v1578 = vadd.f32 %v1450, %v1498
      %v1579 = vadd.f32 %v1451, %v1501
      %v1580 = vadd.f32 %v1452, %v1504
      %v1581 = vadd.f32 %v1453, %v1507
      %v1582 = vadd.f32 %v1454, %v1510
      %v1583 = vadd.f32 %v1455, %v1513
      %v1584 = vadd.f32 %v1456, %v1516
      %v1585 = vadd.f32 %v1457, %v1519
      %v1586 = vadd.f32 %v1458, %v1522
      %v1587 = vadd.f32 %v1459, %v1525
      %v1588 = vadd.f32 %v1460, %v1528
      %v1589 = vadd.f32 %v1461, %v1531
      %v1590 = vadd.f32 %v1462, %v1534
      %v1591 = vadd.f32 %v1463, %v1537
      %v1592 = vadd.f32 %v1464, %v1540
      %v1593 = vadd.f32 %v1465, %v1543
      %v1594 = vadd.f32 %v1466, %v1546
      %v1595 = vadd.f32 %v1467, %v1549
      %v1596 = vadd.f32 %v1468, %v1552
      %v1597 = vadd.f32 %v1469, %v1555
      %v1598 = vadd.f32 %v1470, %v1558
      %v1599 = vadd.f32 %v1471, %v1561
      %v1600 = vadd.f32 %v1472, %v1564
      %v1601 = vadd.f32 %v1473, %v1567
      %v1602 = vadd.f32 %v1474, %v1570
      %1603 = vst [vmem:[#allocation3] sm:$0xff] %v1571
      %1604 = vst [vmem:[#allocation3 + $0x8] sm:$0xff] %v1572
      %1605 = vst [vmem:[#allocation3 + $0x10] sm:$0xff] %v1573
      %1606 = vst [vmem:[#allocation3 + $0x18] sm:$0xff] %v1574
      %1607 = vst [vmem:[#allocation3 + $0x20] sm:$0xff] %v1575
      %1608 = vst [vmem:[#allocation3 + $0x28] sm:$0xff] %v1576
      %1609 = vst [vmem:[#allocation3 + $0x30] sm:$0xff] %v1577
      %1610 = vst [vmem:[#allocation3 + $0x38] sm:$0xff] %v1578
      %1611 = vst [vmem:[#allocation3 + $0x40] sm:$0xff] %v1579
      %1612 = vst [vmem:[#allocation3 + $0x48] sm:$0xff] %v1580
      %1613 = vst [vmem:[#allocation3 + $0x50] sm:$0xff] %v1581
      %1614 = vst [vmem:[#allocation3 + $0x58] sm:$0xff] %v1582
      %1615 = vst [vmem:[#allocation3 + $0x60] sm:$0xff] %v1583
      %1616 = vst [vmem:[#allocation3 + $0x68] sm:$0xff] %v1584
      %1617 = vst [vmem:[#allocation3 + $0x70] sm:$0xff] %v1585
      %1618 = vst [vmem:[#allocation3 + $0x78] sm:$0xff] %v1586
      %1619 = vst [vmem:[#allocation3 + $0x80] sm:$0xff] %v1587
      %1620 = vst [vmem:[#allocation3 + $0x88] sm:$0xff] %v1588
      %1621 = vst [vmem:[#allocation3 + $0x90] sm:$0xff] %v1589
      %1622 = vst [vmem:[#allocation3 + $0x98] sm:$0xff] %v1590
      %1623 = vst [vmem:[#allocation3 + $0xa0] sm:$0xff] %v1591
      %1624 = vst [vmem:[#allocation3 + $0xa8] sm:$0xff] %v1592
      %1625 = vst [vmem:[#allocation3 + $0xb0] sm:$0xff] %v1593
      %1626 = vst [vmem:[#allocation3 + $0xb8] sm:$0xff] %v1594
      %1627 = vst [vmem:[#allocation3 + $0xc0] sm:$0xff] %v1595
      %1628 = vst [vmem:[#allocation3 + $0xc8] sm:$0xff] %v1596
      %1629 = vst [vmem:[#allocation3 + $0xd0] sm:$0xff] %v1597
      %1630 = vst [vmem:[#allocation3 + $0xd8] sm:$0xff] %v1598
      %1631 = vst [vmem:[#allocation3 + $0xe0] sm:$0xff] %v1599
      %1632 = vst [vmem:[#allocation3 + $0xe8] sm:$0xff] %v1600
      %1633 = vst [vmem:[#allocation3 + $0xf0] sm:$0xff] %v1601
      %1634 = vst [vmem:[#allocation3 + $0xf8] sm:$0xff] %v1602
      %v1635 = vld [vmem:[#allocation4] sm:$0xff]
      %v1636 = vld [vmem:[#allocation4 + $0x8] sm:$0xff]
      %v1637 = vld [vmem:[#allocation4 + $0x10] sm:$0xff]
      %v1638 = vld [vmem:[#allocation4 + $0x18] sm:$0xff]
      %v1639 = vld [vmem:[#allocation4 + $0x20] sm:$0xff]
      %v1640 = vld [vmem:[#allocation4 + $0x28] sm:$0xff]
      %v1641 = vld [vmem:[#allocation4 + $0x30] sm:$0xff]
      %v1642 = vld [vmem:[#allocation4 + $0x38] sm:$0xff]
      %v1643 = vld [vmem:[#allocation4 + $0x40] sm:$0xff]
      %v1644 = vld [vmem:[#allocation4 + $0x48] sm:$0xff]
      %v1645 = vld [vmem:[#allocation4 + $0x50] sm:$0xff]
      %v1646 = vld [vmem:[#allocation4 + $0x58] sm:$0xff]
      %v1647 = vld [vmem:[#allocation4 + $0x60] sm:$0xff]
      %v1648 = vld [vmem:[#allocation4 + $0x68] sm:$0xff]
      %v1649 = vld [vmem:[#allocation4 + $0x70] sm:$0xff]
      %v1650 = vld [vmem:[#allocation4 + $0x78] sm:$0xff]
      %v1651 = vld [vmem:[#allocation4 + $0x80] sm:$0xff]
      %v1652 = vld [vmem:[#allocation4 + $0x88] sm:$0xff]
      %v1653 = vld [vmem:[#allocation4 + $0x90] sm:$0xff]
      %v1654 = vld [vmem:[#allocation4 + $0x98] sm:$0xff]
      %v1655 = vld [vmem:[#allocation4 + $0xa0] sm:$0xff]
      %v1656 = vld [vmem:[#allocation4 + $0xa8] sm:$0xff]
      %v1657 = vld [vmem:[#allocation4 + $0xb0] sm:$0xff]
      %v1658 = vld [vmem:[#allocation4 + $0xb8] sm:$0xff]
      %v1659 = vld [vmem:[#allocation4 + $0xc0] sm:$0xff]
      %v1660 = vld [vmem:[#allocation4 + $0xc8] sm:$0xff]
      %v1661 = vld [vmem:[#allocation4 + $0xd0] sm:$0xff]
      %v1662 = vld [vmem:[#allocation4 + $0xd8] sm:$0xff]
      %v1663 = vld [vmem:[#allocation4 + $0xe0] sm:$0xff]
      %v1664 = vld [vmem:[#allocation4 + $0xe8] sm:$0xff]
      %v1665 = vld [vmem:[#allocation4 + $0xf0] sm:$0xff]
      %v1666 = vld [vmem:[#allocation4 + $0xf8] sm:$0xff]
      %v1667 = vmul.f32 %v1188, %v1635
      %v1668 = vmul.f32 %v1190, %v1636
      %v1669 = vmul.f32 %v1192, %v1637
      %v1670 = vmul.f32 %v1194, %v1638
      %v1671 = vmul.f32 %v1196, %v1639
      %v1672 = vmul.f32 %v1198, %v1640
      %v1673 = vmul.f32 %v1200, %v1641
      %v1674 = vmul.f32 %v1202, %v1642
      %v1675 = vmul.f32 %v1204, %v1643
      %v1676 = vmul.f32 %v1206, %v1644
      %v1677 = vmul.f32 %v1208, %v1645
      %v1678 = vmul.f32 %v1210, %v1646
      %v1679 = vmul.f32 %v1212, %v1647
      %v1680 = vmul.f32 %v1214, %v1648
      %v1681 = vmul.f32 %v1216, %v1649
      %v1682 = vmul.f32 %v1218, %v1650
      %v1683 = vmul.f32 %v1220, %v1651
      %v1684 = vmul.f32 %v1222, %v1652
      %v1685 = vmul.f32 %v1224, %v1653
      %v1686 = vmul.f32 %v1226, %v1654
      %v1687 = vmul.f32 %v1228, %v1655
      %v1688 = vmul.f32 %v1230, %v1656
      %v1689 = vmul.f32 %v1232, %v1657
      %v1690 = vmul.f32 %v1234, %v1658
      %v1691 = vmul.f32 %v1236, %v1659
      %v1692 = vmul.f32 %v1238, %v1660
      %v1693 = vmul.f32 %v1240, %v1661
      %v1694 = vmul.f32 %v1242, %v1662
      %v1695 = vmul.f32 %v1244, %v1663
      %v1696 = vmul.f32 %v1246, %v1664
      %v1697 = vmul.f32 %v1248, %v1665
      %v1698 = vmul.f32 %v1250, %v1666
      %v1699 = vpack.c.bf16 %v1320, %v1316
      %v1700 = vpack.c.bf16 %v1322, %v1318
      %v1701 = vpack.c.bf16 %v1328, %v1324
      %v1702 = vpack.c.bf16 %v1330, %v1326
      %v1703 = vpack.c.bf16 %v1336, %v1332
      %v1704 = vpack.c.bf16 %v1338, %v1334
      %v1705 = vpack.c.bf16 %v1344, %v1340
      %v1706 = vpack.c.bf16 %v1346, %v1342
      %v1707 = vpack.c.bf16 %v1352, %v1348
      %v1708 = vpack.c.bf16 %v1354, %v1350
      %v1709 = vpack.c.bf16 %v1360, %v1356
      %v1710 = vpack.c.bf16 %v1362, %v1358
      %v1711 = vpack.c.bf16 %v1368, %v1364
      %v1712 = vpack.c.bf16 %v1370, %v1366
      %v1713 = vpack.c.bf16 %v1376, %v1372
      %v1714 = vpack.c.bf16 %v1378, %v1374
      %v1715 = vpack.c.bf16 %v1384, %v1380
      %v1716 = vpack.c.bf16 %v1386, %v1382
      %v1717 = vpack.c.bf16 %v1392, %v1388
      %v1718 = vpack.c.bf16 %v1394, %v1390
      %v1719 = vpack.c.bf16 %v1400, %v1396
      %v1720 = vpack.c.bf16 %v1402, %v1398
      %v1721 = vpack.c.bf16 %v1408, %v1404
      %v1722 = vpack.c.bf16 %v1410, %v1406
      %v1723 = vpack.c.bf16 %v1416, %v1412
      %v1724 = vpack.c.bf16 %v1418, %v1414
      %v1725 = vpack.c.bf16 %v1424, %v1420
      %v1726 = vpack.c.bf16 %v1426, %v1422
      %v1727 = vpack.c.bf16 %v1432, %v1428
      %v1728 = vpack.c.bf16 %v1434, %v1430
      %v1729 = vpack.c.bf16 %v1440, %v1436
      %v1730 = vpack.c.bf16 %v1442, %v1438
      %v1763 = vunpack.c.l.b16 %v514
      %v1764 = vunpack.c.l.b16 %v515
      %v1765 = vunpack.c.l.b16 %v516
      %v1766 = vunpack.c.l.b16 %v517
      %v1767 = vunpack.c.l.b16 %v518
      %v1768 = vunpack.c.l.b16 %v519
      %v1769 = vunpack.c.l.b16 %v520
      %v1770 = vunpack.c.l.b16 %v521
      %v1771 = vunpack.c.l.b16 %v522
      %v1772 = vunpack.c.l.b16 %v523
      %v1773 = vunpack.c.l.b16 %v524
      %v1774 = vunpack.c.l.b16 %v525
      %v1775 = vunpack.c.l.b16 %v526
      %v1776 = vunpack.c.l.b16 %v527
      %v1777 = vunpack.c.l.b16 %v528
      %v1778 = vunpack.c.l.b16 %v529
      %v1779 = vunpack.c.l.b16 %v530
      %v1780 = vunpack.c.l.b16 %v531
      %v1781 = vunpack.c.l.b16 %v532
      %v1782 = vunpack.c.l.b16 %v533
      %v1783 = vunpack.c.l.b16 %v534
      %v1784 = vunpack.c.l.b16 %v535
      %v1785 = vunpack.c.l.b16 %v536
      %v1786 = vunpack.c.l.b16 %v537
      %v1787 = vunpack.c.l.b16 %v538
      %v1788 = vunpack.c.l.b16 %v539
      %v1789 = vunpack.c.l.b16 %v540
      %v1790 = vunpack.c.l.b16 %v541
      %v1791 = vunpack.c.l.b16 %v542
      %v1792 = vunpack.c.l.b16 %v543
      %v1793 = vunpack.c.l.b16 %v544
      %v1794 = vunpack.c.l.b16 %v545
      %v1795 = vpack.c.b16 %v1764, %v1763
      %v1796 = vpack.c.b16 %v1766, %v1765
      %v1797 = vpack.c.b16 %v1768, %v1767
      %v1798 = vpack.c.b16 %v1770, %v1769
      %v1799 = vpack.c.b16 %v1772, %v1771
      %v1800 = vpack.c.b16 %v1774, %v1773
      %v1801 = vpack.c.b16 %v1776, %v1775
      %v1802 = vpack.c.b16 %v1778, %v1777
      %v1803 = vpack.c.b16 %v1780, %v1779
      %v1804 = vpack.c.b16 %v1782, %v1781
      %v1805 = vpack.c.b16 %v1784, %v1783
      %v1806 = vpack.c.b16 %v1786, %v1785
      %v1807 = vpack.c.b16 %v1788, %v1787
      %v1808 = vpack.c.b16 %v1790, %v1789
      %v1809 = vpack.c.b16 %v1792, %v1791
      %v1810 = vpack.c.b16 %v1794, %v1793
      %1827 = vmatprep.subr.bf16.mxu0 0
      %1828 = vmatpush1.bf16.msra.mxu0 %v1795
      %1829 = vmatprep.subr.bf16.mxu0 0
      %1830 = vmatpush1.bf16.msra.mxu0 %v1796
      %1831 = vmatprep.subr.bf16.mxu0 0
      %1832 = vmatpush1.bf16.msra.mxu0 %v1797
      %1833 = vmatprep.subr.bf16.mxu0 0
      %1834 = vmatpush1.bf16.msra.mxu0 %v1798
      %1835 = vmatprep.subr.bf16.mxu0 0
      %1836 = vmatpush1.bf16.msra.mxu0 %v1799
      %1837 = vmatprep.subr.bf16.mxu0 0
      %1838 = vmatpush1.bf16.msra.mxu0 %v1800
      %1839 = vmatprep.subr.bf16.mxu0 0
      %1840 = vmatpush1.bf16.msra.mxu0 %v1801
      %1841 = vmatprep.subr.bf16.mxu0 0
      %1842 = vmatpush1.bf16.msra.mxu0 %v1802
      %1843 = vmatprep.subr.bf16.mxu0 0
      %1844 = vmatpush1.bf16.msra.mxu0 %v1803
      %1845 = vmatprep.subr.bf16.mxu0 0
      %1846 = vmatpush1.bf16.msra.mxu0 %v1804
      %1847 = vmatprep.subr.bf16.mxu0 0
      %1848 = vmatpush1.bf16.msra.mxu0 %v1805
      %1849 = vmatprep.subr.bf16.mxu0 0
      %1850 = vmatpush1.bf16.msra.mxu0 %v1806
      %1851 = vmatprep.subr.bf16.mxu0 0
      %1852 = vmatpush1.bf16.msra.mxu0 %v1807
      %1853 = vmatprep.subr.bf16.mxu0 0
      %1854 = vmatpush1.bf16.msra.mxu0 %v1808
      %1855 = vmatprep.subr.bf16.mxu0 0
      %1856 = vmatpush1.bf16.msra.mxu0 %v1809
      %1857 = vmatprep.subr.bf16.mxu0 0
      %1858 = vmatpush1.bf16.msra.mxu0 %v1810
      %1859 = vmatprep.mubr.bf16.mxu0 %v1700
      %1860 = vmatmul.mubr.bf16.gmra.mrb[0].mxu0 %v1699
      %v1861 = vpop.f32.mrb[0].mxu0
      %v1862 = vadd.f32 0.0, %v1861
      %v1863 = vpop.f32.mrb[0].mxu0
      %v1864 = vpop.f32.mrb[0].mxu0
      %v1865 = vadd.f32 0.0, %v1864
      %v1866 = vpop.f32.mrb[0].mxu0
      %1867 = vmatprep.mubr.bf16.mxu0 %v1702
      %1868 = vmatmul.mubr.bf16.gmra.mrb[0].mxu0 %v1701
      %v1869 = vpop.f32.mrb[0].mxu0
      %v1870 = vadd.f32 0.0, %v1869
      %v1871 = vpop.f32.mrb[0].mxu0
      %v1872 = vpop.f32.mrb[0].mxu0
      %v1873 = vadd.f32 0.0, %v1872
      %v1874 = vpop.f32.mrb[0].mxu0
      %1875 = vmatprep.mubr.bf16.mxu0 %v1704
      %1876 = vmatmul.mubr.bf16.gmra.mrb[0].mxu0 %v1703
      %v1877 = vpop.f32.mrb[0].mxu0
      %v1878 = vadd.f32 0.0, %v1877
      %v1879 = vpop.f32.mrb[0].mxu0
      %v1880 = vpop.f32.mrb[0].mxu0
      %v1881 = vadd.f32 0.0, %v1880
      %v1882 = vpop.f32.mrb[0].mxu0
      %1883 = vmatprep.mubr.bf16.mxu0 %v1706
      %1884 = vmatmul.mubr.bf16.gmra.mrb[0].mxu0 %v1705
      %v1885 = vpop.f32.mrb[0].mxu0
      %v1886 = vadd.f32 0.0, %v1885
      %v1887 = vpop.f32.mrb[0].mxu0
      %v1888 = vpop.f32.mrb[0].mxu0
      %v1889 = vadd.f32 0.0, %v1888
      %v1890 = vpop.f32.mrb[0].mxu0
      %1891 = vmatprep.mubr.bf16.mxu0 %v1708
      %1892 = vmatmul.mubr.bf16.gmra.mrb[0].mxu0 %v1707
      %v1893 = vpop.f32.mrb[0].mxu0
      %v1894 = vadd.f32 0.0, %v1893
      %v1895 = vpop.f32.mrb[0].mxu0
      %v1896 = vpop.f32.mrb[0].mxu0
      %v1897 = vadd.f32 0.0, %v1896
      %v1898 = vpop.f32.mrb[0].mxu0
      %1899 = vmatprep.mubr.bf16.mxu0 %v1710
      %1900 = vmatmul.mubr.bf16.gmra.mrb[0].mxu0 %v1709
      %v1901 = vpop.f32.mrb[0].mxu0
      %v1902 = vadd.f32 0.0, %v1901
      %v1903 = vpop.f32.mrb[0].mxu0
      %v1904 = vpop.f32.mrb[0].mxu0
      %v1905 = vadd.f32 0.0, %v1904
      %v1906 = vpop.f32.mrb[0].mxu0
      %1907 = vmatprep.mubr.bf16.mxu0 %v1712
      %1908 = vmatmul.mubr.bf16.gmra.mrb[0].mxu0 %v1711
      %v1909 = vpop.f32.mrb[0].mxu0
      %v1910 = vadd.f32 0.0, %v1909
      %v1911 = vpop.f32.mrb[0].mxu0
      %v1912 = vpop.f32.mrb[0].mxu0
      %v1913 = vadd.f32 0.0, %v1912
      %v1914 = vpop.f32.mrb[0].mxu0
      %1915 = vmatprep.mubr.bf16.mxu0 %v1714
      %1916 = vmatmul.mubr.bf16.gmra.mrb[0].mxu0 %v1713
      %v1917 = vpop.f32.mrb[0].mxu0
      %v1918 = vadd.f32 0.0, %v1917
      %v1919 = vpop.f32.mrb[0].mxu0
      %v1920 = vpop.f32.mrb[0].mxu0
      %v1921 = vadd.f32 0.0, %v1920
      %v1922 = vpop.f32.mrb[0].mxu0
      %1923 = vmatprep.mubr.bf16.mxu0 %v1716
      %1924 = vmatmul.mubr.bf16.gmra.mrb[0].mxu0 %v1715
      %v1925 = vpop.f32.mrb[0].mxu0
      %v1926 = vadd.f32 0.0, %v1925
      %v1927 = vpop.f32.mrb[0].mxu0
      %v1928 = vpop.f32.mrb[0].mxu0
      %v1929 = vadd.f32 0.0, %v1928
      %v1930 = vpop.f32.mrb[0].mxu0
      %1931 = vmatprep.mubr.bf16.mxu0 %v1718
      %1932 = vmatmul.mubr.bf16.gmra.mrb[0].mxu0 %v1717
      %v1933 = vpop.f32.mrb[0].mxu0
      %v1934 = vadd.f32 0.0, %v1933
      %v1935 = vpop.f32.mrb[0].mxu0
      %v1936 = vpop.f32.mrb[0].mxu0
      %v1937 = vadd.f32 0.0, %v1936
      %v1938 = vpop.f32.mrb[0].mxu0
      %1939 = vmatprep.mubr.bf16.mxu0 %v1720
      %1940 = vmatmul.mubr.bf16.gmra.mrb[0].mxu0 %v1719
      %v1941 = vpop.f32.mrb[0].mxu0
      %v1942 = vadd.f32 0.0, %v1941
      %v1943 = vpop.f32.mrb[0].mxu0
      %v1944 = vpop.f32.mrb[0].mxu0
      %v1945 = vadd.f32 0.0, %v1944
      %v1946 = vpop.f32.mrb[0].mxu0
      %1947 = vmatprep.mubr.bf16.mxu0 %v1722
      %1948 = vmatmul.mubr.bf16.gmra.mrb[0].mxu0 %v1721
      %v1949 = vpop.f32.mrb[0].mxu0
      %v1950 = vadd.f32 0.0, %v1949
      %v1951 = vpop.f32.mrb[0].mxu0
      %v1952 = vpop.f32.mrb[0].mxu0
      %v1953 = vadd.f32 0.0, %v1952
      %v1954 = vpop.f32.mrb[0].mxu0
      %1955 = vmatprep.mubr.bf16.mxu0 %v1724
      %1956 = vmatmul.mubr.bf16.gmra.mrb[0].mxu0 %v1723
      %v1957 = vpop.f32.mrb[0].mxu0
      %v1958 = vadd.f32 0.0, %v1957
      %v1959 = vpop.f32.mrb[0].mxu0
      %v1960 = vpop.f32.mrb[0].mxu0
      %v1961 = vadd.f32 0.0, %v1960
      %v1962 = vpop.f32.mrb[0].mxu0
      %1963 = vmatprep.mubr.bf16.mxu0 %v1726
      %1964 = vmatmul.mubr.bf16.gmra.mrb[0].mxu0 %v1725
      %v1965 = vpop.f32.mrb[0].mxu0
      %v1966 = vadd.f32 0.0, %v1965
      %v1967 = vpop.f32.mrb[0].mxu0
      %v1968 = vpop.f32.mrb[0].mxu0
      %v1969 = vadd.f32 0.0, %v1968
      %v1970 = vpop.f32.mrb[0].mxu0
      %1971 = vmatprep.mubr.bf16.mxu0 %v1728
      %1972 = vmatmul.mubr.bf16.gmra.mrb[0].mxu0 %v1727
      %v1973 = vpop.f32.mrb[0].mxu0
      %v1974 = vadd.f32 0.0, %v1973
      %v1975 = vpop.f32.mrb[0].mxu0
      %v1976 = vpop.f32.mrb[0].mxu0
      %v1977 = vadd.f32 0.0, %v1976
      %v1978 = vpop.f32.mrb[0].mxu0
      %1979 = vmatprep.mubr.bf16.mxu0 %v1730
      %1980 = vmatmul.mubr.bf16.gmra.mrb[0].mxu0 %v1729
      %v1981 = vpop.f32.mrb[0].mxu0
      %v1982 = vadd.f32 0.0, %v1981
      %v1983 = vpop.f32.mrb[0].mxu0
      %v1984 = vpop.f32.mrb[0].mxu0
      %v1985 = vadd.f32 0.0, %v1984
      %v1986 = vpop.f32.mrb[0].mxu0
      %1987 = vdwg.mxu0
      %v1988 = vadd.f32 %v1667, %v1862
      %v1989 = vadd.f32 %v1668, %v1865
      %v1990 = vadd.f32 %v1669, %v1870
      %v1991 = vadd.f32 %v1670, %v1873
      %v1992 = vadd.f32 %v1671, %v1878
      %v1993 = vadd.f32 %v1672, %v1881
      %v1994 = vadd.f32 %v1673, %v1886
      %v1995 = vadd.f32 %v1674, %v1889
      %v1996 = vadd.f32 %v1675, %v1894
      %v1997 = vadd.f32 %v1676, %v1897
      %v1998 = vadd.f32 %v1677, %v1902
      %v1999 = vadd.f32 %v1678, %v1905
      %v2000 = vadd.f32 %v1679, %v1910
      %v2001 = vadd.f32 %v1680, %v1913
      %v2002 = vadd.f32 %v1681, %v1918
      %v2003 = vadd.f32 %v1682, %v1921
      %v2004 = vadd.f32 %v1683, %v1926
      %v2005 = vadd.f32 %v1684, %v1929
      %v2006 = vadd.f32 %v1685, %v1934
      %v2007 = vadd.f32 %v1686, %v1937
      %v2008 = vadd.f32 %v1687, %v1942
      %v2009 = vadd.f32 %v1688, %v1945
      %v2010 = vadd.f32 %v1689, %v1950
      %v2011 = vadd.f32 %v1690, %v1953
      %v2012 = vadd.f32 %v1691, %v1958
      %v2013 = vadd.f32 %v1692, %v1961
      %v2014 = vadd.f32 %v1693, %v1966
      %v2015 = vadd.f32 %v1694, %v1969
      %v2016 = vadd.f32 %v1695, %v1974
      %v2017 = vadd.f32 %v1696, %v1977
      %v2018 = vadd.f32 %v1697, %v1982
      %v2019 = vadd.f32 %v1698, %v1985
      %2020 = vst [vmem:[#allocation4] sm:$0xff] %v1988
      %2021 = vst [vmem:[#allocation4 + $0x8] sm:$0xff] %v1989
      %2022 = vst [vmem:[#allocation4 + $0x10] sm:$0xff] %v1990
      %2023 = vst [vmem:[#allocation4 + $0x18] sm:$0xff] %v1991
      %2024 = vst [vmem:[#allocation4 + $0x20] sm:$0xff] %v1992
      %2025 = vst [vmem:[#allocation4 + $0x28] sm:$0xff] %v1993
      %2026 = vst [vmem:[#allocation4 + $0x30] sm:$0xff] %v1994
      %2027 = vst [vmem:[#allocation4 + $0x38] sm:$0xff] %v1995
      %2028 = vst [vmem:[#allocation4 + $0x40] sm:$0xff] %v1996
      %2029 = vst [vmem:[#allocation4 + $0x48] sm:$0xff] %v1997
      %2030 = vst [vmem:[#allocation4 + $0x50] sm:$0xff] %v1998
      %2031 = vst [vmem:[#allocation4 + $0x58] sm:$0xff] %v1999
      %2032 = vst [vmem:[#allocation4 + $0x60] sm:$0xff] %v2000
      %2033 = vst [vmem:[#allocation4 + $0x68] sm:$0xff] %v2001
      %2034 = vst [vmem:[#allocation4 + $0x70] sm:$0xff] %v2002
      %2035 = vst [vmem:[#allocation4 + $0x78] sm:$0xff] %v2003
      %2036 = vst [vmem:[#allocation4 + $0x80] sm:$0xff] %v2004
      %2037 = vst [vmem:[#allocation4 + $0x88] sm:$0xff] %v2005
      %2038 = vst [vmem:[#allocation4 + $0x90] sm:$0xff] %v2006
      %2039 = vst [vmem:[#allocation4 + $0x98] sm:$0xff] %v2007
      %2040 = vst [vmem:[#allocation4 + $0xa0] sm:$0xff] %v2008
      %2041 = vst [vmem:[#allocation4 + $0xa8] sm:$0xff] %v2009
      %2042 = vst [vmem:[#allocation4 + $0xb0] sm:$0xff] %v2010
      %2043 = vst [vmem:[#allocation4 + $0xb8] sm:$0xff] %v2011
      %2044 = vst [vmem:[#allocation4 + $0xc0] sm:$0xff] %v2012
      %2045 = vst [vmem:[#allocation4 + $0xc8] sm:$0xff] %v2013
      %2046 = vst [vmem:[#allocation4 + $0xd0] sm:$0xff] %v2014
      %2047 = vst [vmem:[#allocation4 + $0xd8] sm:$0xff] %v2015
      %2048 = vst [vmem:[#allocation4 + $0xe0] sm:$0xff] %v2016
      %2049 = vst [vmem:[#allocation4 + $0xe8] sm:$0xff] %v2017
      %2050 = vst [vmem:[#allocation4 + $0xf0] sm:$0xff] %v2018
      %2051 = vst [vmem:[#allocation4 + $0xf8] sm:$0xff] %v2019
      %2052 = vst [vmem:[#allocation2] sm:$0xff] %v1123
      %2053 = vst [vmem:[#allocation2 + $0x8] sm:$0xff] %v1124
      %2054 = vst [vmem:[#allocation2 + $0x10] sm:$0xff] %v1125
      %2055 = vst [vmem:[#allocation2 + $0x18] sm:$0xff] %v1126
      %2056 = vst [vmem:[#allocation2 + $0x20] sm:$0xff] %v1127
      %2057 = vst [vmem:[#allocation2 + $0x28] sm:$0xff] %v1128
      %2058 = vst [vmem:[#allocation2 + $0x30] sm:$0xff] %v1129
      %2059 = vst [vmem:[#allocation2 + $0x38] sm:$0xff] %v1130
      %2060 = vst [vmem:[#allocation2 + $0x40] sm:$0xff] %v1131
      %2061 = vst [vmem:[#allocation2 + $0x48] sm:$0xff] %v1132
      %2062 = vst [vmem:[#allocation2 + $0x50] sm:$0xff] %v1133
      %2063 = vst [vmem:[#allocation2 + $0x58] sm:$0xff] %v1134
      %2064 = vst [vmem:[#allocation2 + $0x60] sm:$0xff] %v1135
      %2065 = vst [vmem:[#allocation2 + $0x68] sm:$0xff] %v1136
      %2066 = vst [vmem:[#allocation2 + $0x70] sm:$0xff] %v1137
      %2067 = vst [vmem:[#allocation2 + $0x78] sm:$0xff] %v1138
      %2068 = vst [vmem:[#allocation2 + $0x80] sm:$0xff] %v1139
      %2069 = vst [vmem:[#allocation2 + $0x88] sm:$0xff] %v1140
      %2070 = vst [vmem:[#allocation2 + $0x90] sm:$0xff] %v1141
      %2071 = vst [vmem:[#allocation2 + $0x98] sm:$0xff] %v1142
      %2072 = vst [vmem:[#allocation2 + $0xa0] sm:$0xff] %v1143
      %2073 = vst [vmem:[#allocation2 + $0xa8] sm:$0xff] %v1144
      %2074 = vst [vmem:[#allocation2 + $0xb0] sm:$0xff] %v1145
      %2075 = vst [vmem:[#allocation2 + $0xb8] sm:$0xff] %v1146
      %2076 = vst [vmem:[#allocation2 + $0xc0] sm:$0xff] %v1147
      %2077 = vst [vmem:[#allocation2 + $0xc8] sm:$0xff] %v1148
      %2078 = vst [vmem:[#allocation2 + $0xd0] sm:$0xff] %v1149
      %2079 = vst [vmem:[#allocation2 + $0xd8] sm:$0xff] %v1150
      %2080 = vst [vmem:[#allocation2 + $0xe0] sm:$0xff] %v1151
      %2081 = vst [vmem:[#allocation2 + $0xe8] sm:$0xff] %v1152
      %2082 = vst [vmem:[#allocation2 + $0xf0] sm:$0xff] %v1153
      %2083 = vst [vmem:[#allocation2 + $0xf8] sm:$0xff] %v1154
      // Predicated region
      $region49: #{attn_block_pallas.5} parent=43 // pred_check
        %p2084 = pneg %p375
      $region50: #{attn_block_pallas.5} parent=43 // pred_check_branch
        %2086 = sbr.rel (%p2084) target = $region52
      $region51: #{attn_block_pallas.5} parent=43 // pred_region
        %v2087 = vld [vmem:[#allocation3] sm:$0xff]
        %v2088 = vld [vmem:[#allocation3 + $0x8] sm:$0xff]
        %v2089 = vld [vmem:[#allocation3 + $0x10] sm:$0xff]
        %v2090 = vld [vmem:[#allocation3 + $0x18] sm:$0xff]
        %v2091 = vld [vmem:[#allocation3 + $0x20] sm:$0xff]
        %v2092 = vld [vmem:[#allocation3 + $0x28] sm:$0xff]
        %v2093 = vld [vmem:[#allocation3 + $0x30] sm:$0xff]
        %v2094 = vld [vmem:[#allocation3 + $0x38] sm:$0xff]
        %v2095 = vld [vmem:[#allocation3 + $0x40] sm:$0xff]
        %v2096 = vld [vmem:[#allocation3 + $0x48] sm:$0xff]
        %v2097 = vld [vmem:[#allocation3 + $0x50] sm:$0xff]
        %v2098 = vld [vmem:[#allocation3 + $0x58] sm:$0xff]
        %v2099 = vld [vmem:[#allocation3 + $0x60] sm:$0xff]
        %v2100 = vld [vmem:[#allocation3 + $0x68] sm:$0xff]
        %v2101 = vld [vmem:[#allocation3 + $0x70] sm:$0xff]
        %v2102 = vld [vmem:[#allocation3 + $0x78] sm:$0xff]
        %v2103 = vld [vmem:[#allocation3 + $0x80] sm:$0xff]
        %v2104 = vld [vmem:[#allocation3 + $0x88] sm:$0xff]
        %v2105 = vld [vmem:[#allocation3 + $0x90] sm:$0xff]
        %v2106 = vld [vmem:[#allocation3 + $0x98] sm:$0xff]
        %v2107 = vld [vmem:[#allocation3 + $0xa0] sm:$0xff]
        %v2108 = vld [vmem:[#allocation3 + $0xa8] sm:$0xff]
        %v2109 = vld [vmem:[#allocation3 + $0xb0] sm:$0xff]
        %v2110 = vld [vmem:[#allocation3 + $0xb8] sm:$0xff]
        %v2111 = vld [vmem:[#allocation3 + $0xc0] sm:$0xff]
        %v2112 = vld [vmem:[#allocation3 + $0xc8] sm:$0xff]
        %v2113 = vld [vmem:[#allocation3 + $0xd0] sm:$0xff]
        %v2114 = vld [vmem:[#allocation3 + $0xd8] sm:$0xff]
        %v2115 = vld [vmem:[#allocation3 + $0xe0] sm:$0xff]
        %v2116 = vld [vmem:[#allocation3 + $0xe8] sm:$0xff]
        %v2117 = vld [vmem:[#allocation3 + $0xf0] sm:$0xff]
        %v2118 = vld [vmem:[#allocation3 + $0xf8] sm:$0xff]
        %v2119 = vrcp.pop %v2087
        %v2120 = vrcp.pop %v2088
        %v2121 = vrcp.pop %v2089
        %v2122 = vrcp.pop %v2090
        %v2123 = vrcp.pop %v2091
        %v2124 = vrcp.pop %v2092
        %v2125 = vrcp.pop %v2093
        %v2126 = vrcp.pop %v2094
        %v2127 = vrcp.pop %v2095
        %v2128 = vrcp.pop %v2096
        %v2129 = vrcp.pop %v2097
        %v2130 = vrcp.pop %v2098
        %v2131 = vrcp.pop %v2099
        %v2132 = vrcp.pop %v2100
        %v2133 = vrcp.pop %v2101
        %v2134 = vrcp.pop %v2102
        %v2135 = vrcp.pop %v2103
        %v2136 = vrcp.pop %v2104
        %v2137 = vrcp.pop %v2105
        %v2138 = vrcp.pop %v2106
        %v2139 = vrcp.pop %v2107
        %v2140 = vrcp.pop %v2108
        %v2141 = vrcp.pop %v2109
        %v2142 = vrcp.pop %v2110
        %v2143 = vrcp.pop %v2111
        %v2144 = vrcp.pop %v2112
        %v2145 = vrcp.pop %v2113
        %v2146 = vrcp.pop %v2114
        %v2147 = vrcp.pop %v2115
        %v2148 = vrcp.pop %v2116
        %v2149 = vrcp.pop %v2117
        %v2150 = vrcp.pop %v2118
        %v2151 = vld [vmem:[#allocation4] sm:$0xff]
        %v2152 = vld [vmem:[#allocation4 + $0x8] sm:$0xff]
        %v2153 = vld [vmem:[#allocation4 + $0x10] sm:$0xff]
        %v2154 = vld [vmem:[#allocation4 + $0x18] sm:$0xff]
        %v2155 = vld [vmem:[#allocation4 + $0x20] sm:$0xff]
        %v2156 = vld [vmem:[#allocation4 + $0x28] sm:$0xff]
        %v2157 = vld [vmem:[#allocation4 + $0x30] sm:$0xff]
        %v2158 = vld [vmem:[#allocation4 + $0x38] sm:$0xff]
        %v2159 = vld [vmem:[#allocation4 + $0x40] sm:$0xff]
        %v2160 = vld [vmem:[#allocation4 + $0x48] sm:$0xff]
        %v2161 = vld [vmem:[#allocation4 + $0x50] sm:$0xff]
        %v2162 = vld [vmem:[#allocation4 + $0x58] sm:$0xff]
        %v2163 = vld [vmem:[#allocation4 + $0x60] sm:$0xff]
        %v2164 = vld [vmem:[#allocation4 + $0x68] sm:$0xff]
        %v2165 = vld [vmem:[#allocation4 + $0x70] sm:$0xff]
        %v2166 = vld [vmem:[#allocation4 + $0x78] sm:$0xff]
        %v2167 = vld [vmem:[#allocation4 + $0x80] sm:$0xff]
        %v2168 = vld [vmem:[#allocation4 + $0x88] sm:$0xff]
        %v2169 = vld [vmem:[#allocation4 + $0x90] sm:$0xff]
        %v2170 = vld [vmem:[#allocation4 + $0x98] sm:$0xff]
        %v2171 = vld [vmem:[#allocation4 + $0xa0] sm:$0xff]
        %v2172 = vld [vmem:[#allocation4 + $0xa8] sm:$0xff]
        %v2173 = vld [vmem:[#allocation4 + $0xb0] sm:$0xff]
        %v2174 = vld [vmem:[#allocation4 + $0xb8] sm:$0xff]
        %v2175 = vld [vmem:[#allocation4 + $0xc0] sm:$0xff]
        %v2176 = vld [vmem:[#allocation4 + $0xc8] sm:$0xff]
        %v2177 = vld [vmem:[#allocation4 + $0xd0] sm:$0xff]
        %v2178 = vld [vmem:[#allocation4 + $0xd8] sm:$0xff]
        %v2179 = vld [vmem:[#allocation4 + $0xe0] sm:$0xff]
        %v2180 = vld [vmem:[#allocation4 + $0xe8] sm:$0xff]
        %v2181 = vld [vmem:[#allocation4 + $0xf0] sm:$0xff]
        %v2182 = vld [vmem:[#allocation4 + $0xf8] sm:$0xff]
        %v2183 = vmul.f32 %v2151, %v2119
        %v2184 = vmul.f32 %v2152, %v2120
        %v2185 = vmul.f32 %v2153, %v2121
        %v2186 = vmul.f32 %v2154, %v2122
        %v2187 = vmul.f32 %v2155, %v2123
        %v2188 = vmul.f32 %v2156, %v2124
        %v2189 = vmul.f32 %v2157, %v2125
        %v2190 = vmul.f32 %v2158, %v2126
        %v2191 = vmul.f32 %v2159, %v2127
        %v2192 = vmul.f32 %v2160, %v2128
        %v2193 = vmul.f32 %v2161, %v2129
        %v2194 = vmul.f32 %v2162, %v2130
        %v2195 = vmul.f32 %v2163, %v2131
        %v2196 = vmul.f32 %v2164, %v2132
        %v2197 = vmul.f32 %v2165, %v2133
        %v2198 = vmul.f32 %v2166, %v2134
        %v2199 = vmul.f32 %v2167, %v2135
        %v2200 = vmul.f32 %v2168, %v2136
        %v2201 = vmul.f32 %v2169, %v2137
        %v2202 = vmul.f32 %v2170, %v2138
        %v2203 = vmul.f32 %v2171, %v2139
        %v2204 = vmul.f32 %v2172, %v2140
        %v2205 = vmul.f32 %v2173, %v2141
        %v2206 = vmul.f32 %v2174, %v2142
        %v2207 = vmul.f32 %v2175, %v2143
        %v2208 = vmul.f32 %v2176, %v2144
        %v2209 = vmul.f32 %v2177, %v2145
        %v2210 = vmul.f32 %v2178, %v2146
        %v2211 = vmul.f32 %v2179, %v2147
        %v2212 = vmul.f32 %v2180, %v2148
        %v2213 = vmul.f32 %v2181, %v2149
        %v2214 = vmul.f32 %v2182, %v2150
        %v2215 = vpack.c.bf16 %v2184, %v2183
        %v2216 = vpack.c.bf16 %v2186, %v2185
        %v2217 = vpack.c.bf16 %v2188, %v2187
        %v2218 = vpack.c.bf16 %v2190, %v2189
        %v2219 = vpack.c.bf16 %v2192, %v2191
        %v2220 = vpack.c.bf16 %v2194, %v2193
        %v2221 = vpack.c.bf16 %v2196, %v2195
        %v2222 = vpack.c.bf16 %v2198, %v2197
        %v2223 = vpack.c.bf16 %v2200, %v2199
        %v2224 = vpack.c.bf16 %v2202, %v2201
        %v2225 = vpack.c.bf16 %v2204, %v2203
        %v2226 = vpack.c.bf16 %v2206, %v2205
        %v2227 = vpack.c.bf16 %v2208, %v2207
        %v2228 = vpack.c.bf16 %v2210, %v2209
        %v2229 = vpack.c.bf16 %v2212, %v2211
        %v2230 = vpack.c.bf16 %v2214, %v2213
        %v2231 = vld [vmem:[%s4] sm:$0xf]
        %v2232 = vld [vmem:[%s4 + $0x4] sm:$0xf]
        %v2233 = vld [vmem:[%s4 + $0x8] sm:$0xf]
        %v2234 = vld [vmem:[%s4 + $0xc] sm:$0xf]
        %v2235 = vld [vmem:[%s4 + $0x10] sm:$0xf]
        %v2236 = vld [vmem:[%s4 + $0x14] sm:$0xf]
        %v2237 = vld [vmem:[%s4 + $0x18] sm:$0xf]
        %v2238 = vld [vmem:[%s4 + $0x1c] sm:$0xf]
        %v2239 = vld [vmem:[%s4 + $0x20] sm:$0xf]
        %v2240 = vld [vmem:[%s4 + $0x24] sm:$0xf]
        %v2241 = vld [vmem:[%s4 + $0x28] sm:$0xf]
        %v2242 = vld [vmem:[%s4 + $0x2c] sm:$0xf]
        %v2243 = vld [vmem:[%s4 + $0x30] sm:$0xf]
        %v2244 = vld [vmem:[%s4 + $0x34] sm:$0xf]
        %v2245 = vld [vmem:[%s4 + $0x38] sm:$0xf]
        %v2246 = vld [vmem:[%s4 + $0x3c] sm:$0xf]
        %v2247 = vld [vmem:[%s5] sm:$0x1]
        %v2249 = vlaneseq
        %v2250 = vshrl.u32 %v2249, 7
        %v2251 = vsub.s32 0, %v2250
        %v2252 = vrot.slane %v2247, %v2251
        %v2270 = vunpack.c.l.b16 %v2231
        %v2271 = vunpack.c.l.b16 %v2232
        %v2272 = vunpack.c.l.b16 %v2233
        %v2273 = vunpack.c.l.b16 %v2234
        %v2274 = vunpack.c.l.b16 %v2235
        %v2275 = vunpack.c.l.b16 %v2236
        %v2276 = vunpack.c.l.b16 %v2237
        %v2277 = vunpack.c.l.b16 %v2238
        %v2278 = vunpack.c.l.b16 %v2239
        %v2279 = vunpack.c.l.b16 %v2240
        %v2280 = vunpack.c.l.b16 %v2241
        %v2281 = vunpack.c.l.b16 %v2242
        %v2282 = vunpack.c.l.b16 %v2243
        %v2283 = vunpack.c.l.b16 %v2244
        %v2284 = vunpack.c.l.b16 %v2245
        %v2285 = vunpack.c.l.b16 %v2246
        %v2286 = vpack.c.b16 %v2271, %v2270
        %v2287 = vpack.c.b16 %v2273, %v2272
        %v2288 = vpack.c.b16 %v2275, %v2274
        %v2289 = vpack.c.b16 %v2277, %v2276
        %v2290 = vpack.c.b16 %v2279, %v2278
        %v2291 = vpack.c.b16 %v2281, %v2280
        %v2292 = vpack.c.b16 %v2283, %v2282
        %v2293 = vpack.c.b16 %v2285, %v2284
        %2302 = vmatprep.subr.bf16.mxu0 0
        %2303 = vmatpush1.bf16.msra.mxu0 %v2286
        %2304 = vmatprep.subr.bf16.mxu0 0
        %2305 = vmatpush1.bf16.msra.mxu0 %v2287
        %2306 = vmatprep.subr.bf16.mxu0 0
        %2307 = vmatpush1.bf16.msra.mxu0 %v2288
        %2308 = vmatprep.subr.bf16.mxu0 0
        %2309 = vmatpush1.bf16.msra.mxu0 %v2289
        %2310 = vmatprep.subr.bf16.mxu0 0
        %2311 = vmatpush1.bf16.msra.mxu0 %v2290
        %2312 = vmatprep.subr.bf16.mxu0 0
        %2313 = vmatpush1.bf16.msra.mxu0 %v2291
        %2314 = vmatprep.subr.bf16.mxu0 0
        %2315 = vmatpush1.bf16.msra.mxu0 %v2292
        %2316 = vmatprep.subr.bf16.mxu0 0
        %2317 = vmatpush1.bf16.msra.mxu0 %v2293
        %2318 = vmatprep.subr.bf16.mxu0 0
        %2319 = vmatpush1.bf16.msra.mxu0 0
        %2320 = vmatprep.subr.bf16.mxu0 0
        %2321 = vmatpush1.bf16.msra.mxu0 0
        %2322 = vmatprep.subr.bf16.mxu0 0
        %2323 = vmatpush1.bf16.msra.mxu0 0
        %2324 = vmatprep.subr.bf16.mxu0 0
        %2325 = vmatpush1.bf16.msra.mxu0 0
        %2326 = vmatprep.subr.bf16.mxu0 0
        %2327 = vmatpush1.bf16.msra.mxu0 0
        %2328 = vmatprep.subr.bf16.mxu0 0
        %2329 = vmatpush1.bf16.msra.mxu0 0
        %2330 = vmatprep.subr.bf16.mxu0 0
        %2331 = vmatpush1.bf16.msra.mxu0 0
        %2332 = vmatprep.subr.bf16.mxu0 0
        %2333 = vmatpush1.bf16.msra.mxu0 0
        %2334 = vmatprep.mubr.bf16.mxu0 0
        %2335 = vmatmul.mubr.bf16.gmra.mrb[0].mxu0 %v2215
        %v2336 = vpop.f32.mrb[0].mxu0
        %v2337 = vadd.f32 %v2252, %v2336
        %v2338 = vpop.f32.mrb[0].mxu0
        %v2339 = vpop.f32.mrb[0].mxu0
        %v2340 = vadd.f32 %v2252, %v2339
        %v2341 = vpop.f32.mrb[0].mxu0
        %2342 = vmatprep.mubr.bf16.mxu0 0
        %2343 = vmatmul.mubr.bf16.gmra.mrb[0].mxu0 %v2216
        %v2344 = vpop.f32.mrb[0].mxu0
        %v2345 = vadd.f32 %v2252, %v2344
        %v2346 = vpop.f32.mrb[0].mxu0
        %v2347 = vpop.f32.mrb[0].mxu0
        %v2348 = vadd.f32 %v2252, %v2347
        %v2349 = vpop.f32.mrb[0].mxu0
        %2350 = vmatprep.mubr.bf16.mxu0 0
        %2351 = vmatmul.mubr.bf16.gmra.mrb[0].mxu0 %v2217
        %v2352 = vpop.f32.mrb[0].mxu0
        %v2353 = vadd.f32 %v2252, %v2352
        %v2354 = vpop.f32.mrb[0].mxu0
        %v2355 = vpop.f32.mrb[0].mxu0
        %v2356 = vadd.f32 %v2252, %v2355
        %v2357 = vpop.f32.mrb[0].mxu0
        %2358 = vmatprep.mubr.bf16.mxu0 0
        %2359 = vmatmul.mubr.bf16.gmra.mrb[0].mxu0 %v2218
        %v2360 = vpop.f32.mrb[0].mxu0
        %v2361 = vadd.f32 %v2252, %v2360
        %v2362 = vpop.f32.mrb[0].mxu0
        %v2363 = vpop.f32.mrb[0].mxu0
        %v2364 = vadd.f32 %v2252, %v2363
        %v2365 = vpop.f32.mrb[0].mxu0
        %2366 = vmatprep.mubr.bf16.mxu0 0
        %2367 = vmatmul.mubr.bf16.gmra.mrb[0].mxu0 %v2219
        %v2368 = vpop.f32.mrb[0].mxu0
        %v2369 = vadd.f32 %v2252, %v2368
        %v2370 = vpop.f32.mrb[0].mxu0
        %v2371 = vpop.f32.mrb[0].mxu0
        %v2372 = vadd.f32 %v2252, %v2371
        %v2373 = vpop.f32.mrb[0].mxu0
        %2374 = vmatprep.mubr.bf16.mxu0 0
        %2375 = vmatmul.mubr.bf16.gmra.mrb[0].mxu0 %v2220
        %v2376 = vpop.f32.mrb[0].mxu0
        %v2377 = vadd.f32 %v2252, %v2376
        %v2378 = vpop.f32.mrb[0].mxu0
        %v2379 = vpop.f32.mrb[0].mxu0
        %v2380 = vadd.f32 %v2252, %v2379
        %v2381 = vpop.f32.mrb[0].mxu0
        %2382 = vmatprep.mubr.bf16.mxu0 0
        %2383 = vmatmul.mubr.bf16.gmra.mrb[0].mxu0 %v2221
        %v2384 = vpop.f32.mrb[0].mxu0
        %v2385 = vadd.f32 %v2252, %v2384
        %v2386 = vpop.f32.mrb[0].mxu0
        %v2387 = vpop.f32.mrb[0].mxu0
        %v2388 = vadd.f32 %v2252, %v2387
        %v2389 = vpop.f32.mrb[0].mxu0
        %2390 = vmatprep.mubr.bf16.mxu0 0
        %2391 = vmatmul.mubr.bf16.gmra.mrb[0].mxu0 %v2222
        %v2392 = vpop.f32.mrb[0].mxu0
        %v2393 = vadd.f32 %v2252, %v2392
        %v2394 = vpop.f32.mrb[0].mxu0
        %v2395 = vpop.f32.mrb[0].mxu0
        %v2396 = vadd.f32 %v2252, %v2395
        %v2397 = vpop.f32.mrb[0].mxu0
        %2398 = vmatprep.mubr.bf16.mxu0 0
        %2399 = vmatmul.mubr.bf16.gmra.mrb[0].mxu0 %v2223
        %v2400 = vpop.f32.mrb[0].mxu0
        %v2401 = vadd.f32 %v2252, %v2400
        %v2402 = vpop.f32.mrb[0].mxu0
        %v2403 = vpop.f32.mrb[0].mxu0
        %v2404 = vadd.f32 %v2252, %v2403
        %v2405 = vpop.f32.mrb[0].mxu0
        %2406 = vmatprep.mubr.bf16.mxu0 0
        %2407 = vmatmul.mubr.bf16.gmra.mrb[0].mxu0 %v2224
        %v2408 = vpop.f32.mrb[0].mxu0
        %v2409 = vadd.f32 %v2252, %v2408
        %v2410 = vpop.f32.mrb[0].mxu0
        %v2411 = vpop.f32.mrb[0].mxu0
        %v2412 = vadd.f32 %v2252, %v2411
        %v2413 = vpop.f32.mrb[0].mxu0
        %2414 = vmatprep.mubr.bf16.mxu0 0
        %2415 = vmatmul.mubr.bf16.gmra.mrb[0].mxu0 %v2225
        %v2416 = vpop.f32.mrb[0].mxu0
        %v2417 = vadd.f32 %v2252, %v2416
        %v2418 = vpop.f32.mrb[0].mxu0
        %v2419 = vpop.f32.mrb[0].mxu0
        %v2420 = vadd.f32 %v2252, %v2419
        %v2421 = vpop.f32.mrb[0].mxu0
        %2422 = vmatprep.mubr.bf16.mxu0 0
        %2423 = vmatmul.mubr.bf16.gmra.mrb[0].mxu0 %v2226
        %v2424 = vpop.f32.mrb[0].mxu0
        %v2425 = vadd.f32 %v2252, %v2424
        %v2426 = vpop.f32.mrb[0].mxu0
        %v2427 = vpop.f32.mrb[0].mxu0
        %v2428 = vadd.f32 %v2252, %v2427
        %v2429 = vpop.f32.mrb[0].mxu0
        %2430 = vmatprep.mubr.bf16.mxu0 0
        %2431 = vmatmul.mubr.bf16.gmra.mrb[0].mxu0 %v2227
        %v2432 = vpop.f32.mrb[0].mxu0
        %v2433 = vadd.f32 %v2252, %v2432
        %v2434 = vpop.f32.mrb[0].mxu0
        %v2435 = vpop.f32.mrb[0].mxu0
        %v2436 = vadd.f32 %v2252, %v2435
        %v2437 = vpop.f32.mrb[0].mxu0
        %2438 = vmatprep.mubr.bf16.mxu0 0
        %2439 = vmatmul.mubr.bf16.gmra.mrb[0].mxu0 %v2228
        %v2440 = vpop.f32.mrb[0].mxu0
        %v2441 = vadd.f32 %v2252, %v2440
        %v2442 = vpop.f32.mrb[0].mxu0
        %v2443 = vpop.f32.mrb[0].mxu0
        %v2444 = vadd.f32 %v2252, %v2443
        %v2445 = vpop.f32.mrb[0].mxu0
        %2446 = vmatprep.mubr.bf16.mxu0 0
        %2447 = vmatmul.mubr.bf16.gmra.mrb[0].mxu0 %v2229
        %v2448 = vpop.f32.mrb[0].mxu0
        %v2449 = vadd.f32 %v2252, %v2448
        %v2450 = vpop.f32.mrb[0].mxu0
        %v2451 = vpop.f32.mrb[0].mxu0
        %v2452 = vadd.f32 %v2252, %v2451
        %v2453 = vpop.f32.mrb[0].mxu0
        %2454 = vmatprep.mubr.bf16.mxu0 0
        %2455 = vmatmul.mubr.bf16.gmra.mrb[0].mxu0 %v2230
        %v2456 = vpop.f32.mrb[0].mxu0
        %v2457 = vadd.f32 %v2252, %v2456
        %v2458 = vpop.f32.mrb[0].mxu0
        %v2459 = vpop.f32.mrb[0].mxu0
        %v2460 = vadd.f32 %v2252, %v2459
        %v2461 = vpop.f32.mrb[0].mxu0
        %2462 = vdwg.mxu0
        %v2463 = vld [vmem:[%s362] sm:$0xff]
        %v2464 = vld [vmem:[%s362 + $0x8] sm:$0xff]
        %v2465 = vld [vmem:[%s362 + $0x10] sm:$0xff]
        %v2466 = vld [vmem:[%s362 + $0x18] sm:$0xff]
        %v2467 = vld [vmem:[%s362 + $0x20] sm:$0xff]
        %v2468 = vld [vmem:[%s362 + $0x28] sm:$0xff]
        %v2469 = vld [vmem:[%s362 + $0x30] sm:$0xff]
        %v2470 = vld [vmem:[%s362 + $0x38] sm:$0xff]
        %v2471 = vld [vmem:[%s362 + $0x40] sm:$0xff]
        %v2472 = vld [vmem:[%s362 + $0x48] sm:$0xff]
        %v2473 = vld [vmem:[%s362 + $0x50] sm:$0xff]
        %v2474 = vld [vmem:[%s362 + $0x58] sm:$0xff]
        %v2475 = vld [vmem:[%s362 + $0x60] sm:$0xff]
        %v2476 = vld [vmem:[%s362 + $0x68] sm:$0xff]
        %v2477 = vld [vmem:[%s362 + $0x70] sm:$0xff]
        %v2478 = vld [vmem:[%s362 + $0x78] sm:$0xff]
        %v2479 = vld [vmem:[%s362 + $0x80] sm:$0xff]
        %v2480 = vld [vmem:[%s362 + $0x88] sm:$0xff]
        %v2481 = vld [vmem:[%s362 + $0x90] sm:$0xff]
        %v2482 = vld [vmem:[%s362 + $0x98] sm:$0xff]
        %v2483 = vld [vmem:[%s362 + $0xa0] sm:$0xff]
        %v2484 = vld [vmem:[%s362 + $0xa8] sm:$0xff]
        %v2485 = vld [vmem:[%s362 + $0xb0] sm:$0xff]
        %v2486 = vld [vmem:[%s362 + $0xb8] sm:$0xff]
        %v2487 = vld [vmem:[%s362 + $0xc0] sm:$0xff]
        %v2488 = vld [vmem:[%s362 + $0xc8] sm:$0xff]
        %v2489 = vld [vmem:[%s362 + $0xd0] sm:$0xff]
        %v2490 = vld [vmem:[%s362 + $0xd8] sm:$0xff]
        %v2491 = vld [vmem:[%s362 + $0xe0] sm:$0xff]
        %v2492 = vld [vmem:[%s362 + $0xe8] sm:$0xff]
        %v2493 = vld [vmem:[%s362 + $0xf0] sm:$0xff]
        %v2494 = vld [vmem:[%s362 + $0xf8] sm:$0xff]
        %v2495 = vadd.f32 %v2463, %v2337
        %v2496 = vadd.f32 %v2464, %v2340
        %v2497 = vadd.f32 %v2465, %v2345
        %v2498 = vadd.f32 %v2466, %v2348
        %v2499 = vadd.f32 %v2467, %v2353
        %v2500 = vadd.f32 %v2468, %v2356
        %v2501 = vadd.f32 %v2469, %v2361
        %v2502 = vadd.f32 %v2470, %v2364
        %v2503 = vadd.f32 %v2471, %v2369
        %v2504 = vadd.f32 %v2472, %v2372
        %v2505 = vadd.f32 %v2473, %v2377
        %v2506 = vadd.f32 %v2474, %v2380
        %v2507 = vadd.f32 %v2475, %v2385
        %v2508 = vadd.f32 %v2476, %v2388
        %v2509 = vadd.f32 %v2477, %v2393
        %v2510 = vadd.f32 %v2478, %v2396
        %v2511 = vadd.f32 %v2479, %v2401
        %v2512 = vadd.f32 %v2480, %v2404
        %v2513 = vadd.f32 %v2481, %v2409
        %v2514 = vadd.f32 %v2482, %v2412
        %v2515 = vadd.f32 %v2483, %v2417
        %v2516 = vadd.f32 %v2484, %v2420
        %v2517 = vadd.f32 %v2485, %v2425
        %v2518 = vadd.f32 %v2486, %v2428
        %v2519 = vadd.f32 %v2487, %v2433
        %v2520 = vadd.f32 %v2488, %v2436
        %v2521 = vadd.f32 %v2489, %v2441
        %v2522 = vadd.f32 %v2490, %v2444
        %v2523 = vadd.f32 %v2491, %v2449
        %v2524 = vadd.f32 %v2492, %v2452
        %v2525 = vadd.f32 %v2493, %v2457
        %v2526 = vadd.f32 %v2494, %v2460
        %2527 = vst [vmem:[%s372] sm:$0xff] %v2495
        %2528 = vst [vmem:[%s372 + $0x8] sm:$0xff] %v2496
        %2529 = vst [vmem:[%s372 + $0x10] sm:$0xff] %v2497
        %2530 = vst [vmem:[%s372 + $0x18] sm:$0xff] %v2498
        %2531 = vst [vmem:[%s372 + $0x20] sm:$0xff] %v2499
        %2532 = vst [vmem:[%s372 + $0x28] sm:$0xff] %v2500
        %2533 = vst [vmem:[%s372 + $0x30] sm:$0xff] %v2501
        %2534 = vst [vmem:[%s372 + $0x38] sm:$0xff] %v2502
        %2535 = vst [vmem:[%s372 + $0x40] sm:$0xff] %v2503
        %2536 = vst [vmem:[%s372 + $0x48] sm:$0xff] %v2504
        %2537 = vst [vmem:[%s372 + $0x50] sm:$0xff] %v2505
        %2538 = vst [vmem:[%s372 + $0x58] sm:$0xff] %v2506
        %2539 = vst [vmem:[%s372 + $0x60] sm:$0xff] %v2507
        %2540 = vst [vmem:[%s372 + $0x68] sm:$0xff] %v2508
        %2541 = vst [vmem:[%s372 + $0x70] sm:$0xff] %v2509
        %2542 = vst [vmem:[%s372 + $0x78] sm:$0xff] %v2510
        %2543 = vst [vmem:[%s372 + $0x80] sm:$0xff] %v2511
        %2544 = vst [vmem:[%s372 + $0x88] sm:$0xff] %v2512
        %2545 = vst [vmem:[%s372 + $0x90] sm:$0xff] %v2513
        %2546 = vst [vmem:[%s372 + $0x98] sm:$0xff] %v2514
        %2547 = vst [vmem:[%s372 + $0xa0] sm:$0xff] %v2515
        %2548 = vst [vmem:[%s372 + $0xa8] sm:$0xff] %v2516
        %2549 = vst [vmem:[%s372 + $0xb0] sm:$0xff] %v2517
        %2550 = vst [vmem:[%s372 + $0xb8] sm:$0xff] %v2518
        %2551 = vst [vmem:[%s372 + $0xc0] sm:$0xff] %v2519
        %2552 = vst [vmem:[%s372 + $0xc8] sm:$0xff] %v2520
        %2553 = vst [vmem:[%s372 + $0xd0] sm:$0xff] %v2521
        %2554 = vst [vmem:[%s372 + $0xd8] sm:$0xff] %v2522
        %2555 = vst [vmem:[%s372 + $0xe0] sm:$0xff] %v2523
        %2556 = vst [vmem:[%s372 + $0xe8] sm:$0xff] %v2524
        %2557 = vst [vmem:[%s372 + $0xf0] sm:$0xff] %v2525
        %2558 = vst [vmem:[%s372 + $0xf8] sm:$0xff] %v2526
      $region52: #{attn_block_pallas.5} parent=43 // pred_fallthru
        _
      %s2559 = smul.u32 32, %s23
      %p2560 = scmp.lt.s32.totalorder %s22, 1
      %s2561 = scalar_select %p2560, %s22, 1
      %p2562 = scmp.lt.s32.totalorder %s2559, 31
      %s2563 = scalar_select %p2562, %s2559, 31
      %s2564 = smul.addr %s2561, 32
      %s2565 = sadd.s32 %s2563, %s2564
      %s2566 = smul.addr %s2565, 8
      %s2567 = scalar_lea.vmem %s6, %s2566
      // Predicated region
      $region53: #{attn_block_pallas.5} parent=43 // pred_check
        %p2568 = pneg %p206
      $region54: #{attn_block_pallas.5} parent=43 // pred_check_branch
        %2570 = sbr.rel (%p2568) target = $region56
      $region55: #{attn_block_pallas.5} parent=43 // pred_region
        %s2571 = smul.u32 32, %s23
      $region56: #{attn_block_pallas.5} parent=43 // pred_fallthru
        _
    $region44: #{attn_block_pallas.5} parent=5 // pred_fallthru
      _
    %p2572 = scmp.le.s32.totalorder 2, %s12
    // Predicated region
    $region57: #{attn_block_pallas.5} parent=5 // pred_check
      %p2573 = pneg %p2572
    $region58: #{attn_block_pallas.5} parent=5 // pred_check_branch
      %2575 = sbr.rel (%p2573) target = $region60
    $region59: #{attn_block_pallas.5} parent=5 // pred_region
      %s2576 = ssub.s32 %s12, 2
      // Predicated region
      $region61: #{attn_block_pallas.5} parent=59 // pred_check
        %p2577 = pneg %p212
      $region62: #{attn_block_pallas.5} parent=59 // pred_check_branch
        %2579 = sbr.rel (%p2577) target = $region64
      $region63: #{attn_block_pallas.5} parent=59 // pred_region
        %s2580 = smul.u32 32, %s26
        %p2581 = scmp.lt.s32.totalorder %s25, 1
        %s2582 = scalar_select %p2581, %s25, 1
        %p2583 = scmp.lt.s32.totalorder %s2580, 31
        %s2584 = scalar_select %p2583, %s2580, 31
        %s2585 = smul.addr %s2582, 32
        %s2586 = sadd.s32 %s2584, %s2585
        %s2587 = smul.addr %s2586, 8
        %s2588 = scalar_lea.vmem %s6, %s2587
      $region64: #{attn_block_pallas.5} parent=59 // pred_fallthru
        _
    $region60: #{attn_block_pallas.5} parent=5 // pred_fallthru
      _
  $region6: #{attn_block_pallas.5} parent=0 // loop_footer
    %s16 = sadd.s32 1, %s12
  $region7: #{attn_block_pallas.5} parent=0 // loop_footer_branch
    %11 = sbr.rel target = $region3
  $region8: #{attn_block_pallas.5} parent=0 // loop_exit
    _

</llo_original>
